<compile_context>
chip_gen: v6e
topology: v6e:2x2x1
jax: 0.10.0
libtpu: 0.0.40
codegen_flags: <defaults>
</compile_context>

<pallas_src>
import functools
import math

import jax
import jax.numpy as jnp
from jax.experimental import pallas as pl
from jax.experimental.pallas import tpu as pltpu


# ----------------------------------------------------------------------------
# Fused decoder-stack kernel (one grid step == one decoder layer, per batch row)
# ----------------------------------------------------------------------------

def decoder_stack_kernel(tgt_ref, mem_ref, memk_ref, qpos_ref,
                         sa_w_ref, sa_b_ref, ca_w_ref, ca_b_ref,
                         w1_ref, b1_ref, w2_ref, b2_ref,
                         ln_ref, norm_ref, out_ref, *, nhead, eps):
    layer = pl.program_id(1)
    num_layers = pl.num_programs(1)

    # Initialize the VMEM-resident carry from tgt at the first layer.
    @pl.when(layer == 0)
    def _():
        out_ref[...] = tgt_ref[...]

    B, St, D = out_ref.shape            # B == batch block (1 per grid row here)
    Sm = mem_ref.shape[1]
    hd = D // nhead
    scale = 1.0 / math.sqrt(hd)
    Nt = B * St

    x = out_ref[...]                    # (B, St, D)  carried decoder state
    mem_v = mem_ref[...]                # (B, Sm, D)  cross-attn V input
    mem_k = memk_ref[...]               # (B, Sm, D)  cross-attn K input (= memory + pos)
    qpos = qpos_ref[...]                # (B, St, D)

    # Per-layer params (lane-dense slabs); weights stored bf16, math in f32.
    sa_w = sa_w_ref[0].astype(jnp.float32)      # (D, 4D): [Wq|Wk|Wv|Wo]
    ca_w = ca_w_ref[0].astype(jnp.float32)      # (D, 4D)
    sa_b = sa_b_ref[0]                          # (1, 4D): [bq|bk|bv|bo]
    ca_b = ca_b_ref[0]                          # (1, 4D)
    w1 = w1_ref[0].astype(jnp.float32)          # (D, dff)
    w2 = w2_ref[0].astype(jnp.float32)          # (dff, D)
    b1 = b1_ref[0]                              # (1, dff)
    b2 = b2_ref[0]                              # (1, D)
    ln = ln_ref[0]                              # (6, D): [g1,b1,g2,b2,g3,b3]

    def layer_norm(z, g, b):
        mu = jnp.mean(z, axis=-1, keepdims=True)
        c = z - mu
        var = jnp.mean(c * c, axis=-1, keepdims=True)
        return c * jax.lax.rsqrt(var + eps) * g + b

    def split_heads(t2, S):
        # (B*S, D) -> (nhead*B, S, hd): heads folded into the einsum batch dim.
        t3 = t2.reshape(B, S, D)
        return jnp.concatenate(
            [t3[:, :, h * hd:(h + 1) * hd] for h in range(nhead)], axis=0)

    def attention(q2, k2, v2, Sq, Sk, wo, bo):
        # q2: (B*Sq, D); k2/v2: (B*Sk, D); wo: (D, D); bo: (1, D)
        qh = split_heads(q2, Sq)                # (H*B, Sq, hd)
        kh = split_heads(k2, Sk)                # (H*B, Sk, hd)
        vh = split_heads(v2, Sk)                # (H*B, Sk, hd)
        s = jnp.einsum('bqd,bkd->bqk', qh, kh,
                       preferred_element_type=jnp.float32) * scale
        s = s - jnp.max(s, axis=-1, keepdims=True)
        p = jnp.exp(s)
        p = p * pl.reciprocal(jnp.sum(p, axis=-1, keepdims=True), approx=True)
        ctx = jnp.einsum('bqk,bkd->bqd', p, vh,
                         preferred_element_type=jnp.float32)        # (H*B, Sq, hd)
        merged = jnp.concatenate(
            [ctx[h * B:(h + 1) * B] for h in range(nhead)], axis=-1)  # (B, Sq, D)
        o2 = jnp.dot(merged.reshape(B * Sq, D), wo,
                     preferred_element_type=jnp.float32) + bo
        return o2.reshape(B, Sq, D)

    # ---- self-attention block (q = k = x + query_pos, v = x) ----
    xq2 = (x + qpos).reshape(Nt, D)
    x2 = x.reshape(Nt, D)
    qk2 = jnp.dot(xq2, sa_w[:, :2 * D],
                  preferred_element_type=jnp.float32) + sa_b[:, :2 * D]
    v2 = jnp.dot(x2, sa_w[:, 2 * D:3 * D],
                 preferred_element_type=jnp.float32) + sa_b[:, 2 * D:3 * D]
    sa = attention(qk2[:, :D], qk2[:, D:2 * D], v2, St, St,
                   sa_w[:, 3 * D:], sa_b[:, 3 * D:])
    x = layer_norm(x + sa, ln[0:1], ln[1:2])

    # ---- cross-attention block (q = x + query_pos, k = memory + pos, v = memory)
    xq2 = (x + qpos).reshape(Nt, D)
    mk2 = mem_k.reshape(B * Sm, D)
    mv2 = mem_v.reshape(B * Sm, D)
    q2 = jnp.dot(xq2, ca_w[:, :D],
                 preferred_element_type=jnp.float32) + ca_b[:, :D]
    k2 = jnp.dot(mk2, ca_w[:, D:2 * D],
                 preferred_element_type=jnp.float32) + ca_b[:, D:2 * D]
    v2 = jnp.dot(mv2, ca_w[:, 2 * D:3 * D],
                 preferred_element_type=jnp.float32) + ca_b[:, 2 * D:3 * D]
    ca = attention(q2, k2, v2, St, Sm, ca_w[:, 3 * D:], ca_b[:, 3 * D:])
    x = layer_norm(x + ca, ln[2:3], ln[3:4])

    # ---- feed-forward block (ReLU) ----
    h1 = jnp.maximum(
        jnp.dot(x.reshape(Nt, D), w1, preferred_element_type=jnp.float32) + b1,
        0.0)
    f2 = jnp.dot(h1, w2, preferred_element_type=jnp.float32) + b2
    x = layer_norm(x + f2.reshape(B, St, D), ln[4:5], ln[5:6])

    out_ref[...] = x

    # Final stack LayerNorm folded into the last layer's step.
    @pl.when(layer == num_layers - 1)
    def _():
        norm = norm_ref[...]                    # (2, D): [gamma, beta]
        out_ref[...] = layer_norm(x, norm[0:1], norm[1:2])


# ----------------------------------------------------------------------------
# Wrapper (one pallas_call for the whole decoder), jitted
# ----------------------------------------------------------------------------

@functools.partial(jax.jit, static_argnames=("nhead",))
def transformer_decoder_fwd(tgt, memory, pos, query_pos, params, *, nhead):
    St, B, D = tgt.shape
    Sm = memory.shape[0]
    L = params["sa_w"].shape[0]
    dff = params["w1"].shape[2]
    assert D % nhead == 0, "d_model must be divisible by nhead"

    # One layout change at the boundary: (S, B, D) -> (B, S, D); the
    # layer-invariant cross-attn key input (memory + pos) is hoisted here.
    tgt_b = jnp.transpose(tgt, (1, 0, 2))
    mem_b = jnp.transpose(memory, (1, 0, 2))
    memk_b = mem_b + jnp.transpose(pos, (1, 0, 2))
    qpos_b = jnp.transpose(query_pos, (1, 0, 2))

    kernel = functools.partial(decoder_stack_kernel, nhead=nhead, eps=1e-5)

    out_bsd = pl.pallas_call(
        kernel,
        out_shape=jax.ShapeDtypeStruct((B, St, D), jnp.float32),
        grid_spec=pltpu.PrefetchScalarGridSpec(
            num_scalar_prefetch=0,
            grid=(B, L),                                           # (parallel, arbitrary)
            in_specs=[
                pl.BlockSpec((1, St, D), lambda b, l: (b, 0, 0)),      # tgt
                pl.BlockSpec((1, Sm, D), lambda b, l: (b, 0, 0)),      # memory (V)
                pl.BlockSpec((1, Sm, D), lambda b, l: (b, 0, 0)),      # memory + pos (K)
                pl.BlockSpec((1, St, D), lambda b, l: (b, 0, 0)),      # query_pos
                pl.BlockSpec((1, D, 4 * D), lambda b, l: (l, 0, 0)),   # self-attn W slab
                pl.BlockSpec((1, 1, 4 * D), lambda b, l: (l, 0, 0)),   # self-attn b slab
                pl.BlockSpec((1, D, 4 * D), lambda b, l: (l, 0, 0)),   # cross-attn W slab
                pl.BlockSpec((1, 1, 4 * D), lambda b, l: (l, 0, 0)),   # cross-attn b slab
                pl.BlockSpec((1, D, dff), lambda b, l: (l, 0, 0)),     # ffn w1
                pl.BlockSpec((1, 1, dff), lambda b, l: (l, 0, 0)),     # ffn b1
                pl.BlockSpec((1, dff, D), lambda b, l: (l, 0, 0)),     # ffn w2
                pl.BlockSpec((1, 1, D), lambda b, l: (l, 0, 0)),       # ffn b2
                pl.BlockSpec((1, 6, D), lambda b, l: (l, 0, 0)),       # 3x LN gamma/beta
                pl.BlockSpec((2, D), lambda b, l: (0, 0)),             # final norm
            ],
            out_specs=pl.BlockSpec((1, St, D), lambda b, l: (b, 0, 0)),
        ),
        compiler_params=pltpu.CompilerParams(
            dimension_semantics=("parallel", "arbitrary"),
            vmem_limit_bytes=32 * 1024 * 1024),
    )(tgt_b, mem_b, memk_b, qpos_b,
      params["sa_w"], params["sa_b"], params["ca_w"], params["ca_b"],
      params["w1"], params["b1"], params["w2"], params["b2"],
      params["ln"], params["norm"])

    # (B, S, D) -> (S, B, D), then unsqueeze(0) like the PyTorch module.
    return jnp.transpose(out_bsd, (1, 0, 2))[None]


# ----------------------------------------------------------------------------
# Deterministic parameter init (stacked per-layer arrays, lane-dense layouts)
# ----------------------------------------------------------------------------

def init_params(key, num_layers, D, dff, weight_dtype=jnp.bfloat16):
    s_attn = 1.0 / math.sqrt(D)

    def attn_slab(k):
        ks = jax.random.split(k, 4)
        # Columns: [Wq | Wk | Wv | Wo]  -> (D, 4D) lane-dense slab.
        w = jnp.concatenate(
            [jax.random.normal(ks[i], (D, D), jnp.float32) * s_attn
             for i in range(4)], axis=1)
        b = jnp.zeros((1, 4 * D), jnp.float32)          # [bq | bk | bv | bo]
        return w, b

    sa_w, sa_b, ca_w, ca_b = [], [], [], []
    w1, b1, w2, b2, ln = [], [], [], [], []
    for l in range(num_layers):
        k = jax.random.fold_in(key, l)
        ks = jax.random.split(k, 4)
        w, b = attn_slab(ks[0]); sa_w.append(w); sa_b.append(b)
        w, b = attn_slab(ks[1]); ca_w.append(w); ca_b.append(b)
        w1.append(jax.random.normal(ks[2], (D, dff), jnp.float32) / math.sqrt(D))
        b1.append(jnp.zeros((1, dff), jnp.float32))
        w2.append(jax.random.normal(ks[3], (dff, D), jnp.float32) / math.sqrt(dff))
        b2.append(jnp.zeros((1, D), jnp.float32))
        g = jnp.ones((D,), jnp.float32)
        z = jnp.zeros((D,), jnp.float32)
        ln.append(jnp.stack([g, z, g, z, g, z]))          # (6, D)

    return {
        # Big matmul weights stored bf16 (DMA/VMEM halved); math stays f32.
        "sa_w": jnp.stack(sa_w).astype(weight_dtype),     # (L, D, 4D)
        "sa_b": jnp.stack(sa_b),                          # (L, 1, 4D)
        "ca_w": jnp.stack(ca_w).astype(weight_dtype),     # (L, D, 4D)
        "ca_b": jnp.stack(ca_b),                          # (L, 1, 4D)
        "w1": jnp.stack(w1).astype(weight_dtype),         # (L, D, dff)
        "b1": jnp.stack(b1),                              # (L, 1, dff)
        "w2": jnp.stack(w2).astype(weight_dtype),         # (L, dff, D)
        "b2": jnp.stack(b2),                              # (L, 1, D)
        "ln": jnp.stack(ln),                              # (L, 6, D)
        "norm": jnp.stack([jnp.ones((D,), jnp.float32),
                           jnp.zeros((D,), jnp.float32)]),  # (2, D)
    }


# ----------------------------------------------------------------------------
# main
# ----------------------------------------------------------------------------

if __name__ == "__main__":
    S_TGT, S_MEM, B, D = 8, 16, 2, 32
    NHEAD, DFF, NUM_LAYERS = 4, 64, 2

    root = jax.random.PRNGKey(0)
    k_tgt, k_mem, k_pos, k_qpos, k_par = jax.random.split(root, 5)

    tgt = jax.random.normal(k_tgt, (S_TGT, B, D), jnp.float32)
    memory = jax.random.normal(k_mem, (S_MEM, B, D), jnp.float32)
    pos = jax.random.normal(k_pos, (S_MEM, B, D), jnp.float32)
    query_pos = jax.random.normal(k_qpos, (S_TGT, B, D), jnp.float32)

    params = init_params(k_par, NUM_LAYERS, D, DFF)

    out = transformer_decoder_fwd(tgt, memory, pos, query_pos, params,
                                  nhead=NHEAD)
    out = jax.block_until_ready(out)
    assert out.shape == (1, S_TGT, B, D), out.shape
    assert jnp.all(jnp.isfinite(out))
    print("KERNEL_OK")
</pallas_src>

<mosaic_0001>
module attributes {stable_mosaic.version = 11 : i64} {
  func.func @decoder_stack_kernel(%arg0: i32, %arg1: i32, %arg2: memref<1x8x32xf32, #tpu.memory_space<vmem>>, %arg3: memref<1x16x32xf32, #tpu.memory_space<vmem>>, %arg4: memref<1x16x32xf32, #tpu.memory_space<vmem>>, %arg5: memref<1x8x32xf32, #tpu.memory_space<vmem>>, %arg6: memref<1x32x128xbf16, #tpu.memory_space<vmem>>, %arg7: memref<1x1x128xf32, #tpu.memory_space<vmem>>, %arg8: memref<1x32x128xbf16, #tpu.memory_space<vmem>>, %arg9: memref<1x1x128xf32, #tpu.memory_space<vmem>>, %arg10: memref<1x32x64xbf16, #tpu.memory_space<vmem>>, %arg11: memref<1x1x64xf32, #tpu.memory_space<vmem>>, %arg12: memref<1x64x32xbf16, #tpu.memory_space<vmem>>, %arg13: memref<1x1x32xf32, #tpu.memory_space<vmem>>, %arg14: memref<1x6x32xf32, #tpu.memory_space<vmem>>, %arg15: memref<2x32xf32, #tpu.memory_space<vmem>>, %arg16: memref<1x8x32xf32, #tpu.memory_space<vmem>>) attributes {dimension_semantics = [#tpu.dimension_semantics<parallel>, #tpu.dimension_semantics<arbitrary>], iteration_bounds = array<i64: 2, 2>, scalar_prefetch = 0 : i64, scratch_operands = 0 : i64, tpu.core_type = #tpu.core_type<tc>, window_params = [{transform_indices = @transform_0, window_bounds = array<i64: 1, 8, 32>}, {transform_indices = @transform_1, window_bounds = array<i64: 1, 16, 32>}, {transform_indices = @transform_2, window_bounds = array<i64: 1, 16, 32>}, {transform_indices = @transform_3, window_bounds = array<i64: 1, 8, 32>}, {transform_indices = @transform_4, window_bounds = array<i64: 1, 32, 128>}, {transform_indices = @transform_5, window_bounds = array<i64: 1, 1, 128>}, {transform_indices = @transform_6, window_bounds = array<i64: 1, 32, 128>}, {transform_indices = @transform_7, window_bounds = array<i64: 1, 1, 128>}, {transform_indices = @transform_8, window_bounds = array<i64: 1, 32, 64>}, {transform_indices = @transform_9, window_bounds = array<i64: 1, 1, 64>}, {transform_indices = @transform_10, window_bounds = array<i64: 1, 64, 32>}, {transform_indices = @transform_11, window_bounds = array<i64: 1, 1, 32>}, {transform_indices = @transform_12, window_bounds = array<i64: 1, 6, 32>}, {pipeline_mode = #tpu.pipeline_mode<synchronous>, transform_indices = @transform_13, window_bounds = array<i64: 2, 32>}, {transform_indices = @transform_14, window_bounds = array<i64: 1, 8, 32>}]} {
    %c0_i32 = arith.constant 0 : i32
    %0 = arith.cmpi eq, %arg1, %c0_i32 : i32
    %1 = arith.extui %0 : i1 to i32
    %c0_i32_0 = arith.constant 0 : i32
    %2 = arith.cmpi ne, %1, %c0_i32_0 : i32
    scf.if %2 {
      %c0_77 = arith.constant 0 : index
      %c0_78 = arith.constant 0 : index
      %c0_79 = arith.constant 0 : index
      %240 = vector.load %arg2[%c0_77, %c0_78, %c0_79] : memref<1x8x32xf32, #tpu.memory_space<vmem>>, vector<1x8x32xf32>
      %c0_80 = arith.constant 0 : index
      %c0_81 = arith.constant 0 : index
      %c0_82 = arith.constant 0 : index
      %241 = vector.load %arg16[%c0_80, %c0_81, %c0_82] : memref<1x8x32xf32, #tpu.memory_space<vmem>>, vector<1x8x32xf32>
      tpu.vector_store %arg16[%c0_80, %c0_81, %c0_82], %240 {strides = array<i32>} : memref<1x8x32xf32, #tpu.memory_space<vmem>>, vector<1x8x32xf32>,
    } else {
    }
    %c0 = arith.constant 0 : index
    %c0_1 = arith.constant 0 : index
    %c0_2 = arith.constant 0 : index
    %3 = vector.load %arg16[%c0, %c0_1, %c0_2] : memref<1x8x32xf32, #tpu.memory_space<vmem>>, vector<1x8x32xf32>
    %c0_3 = arith.constant 0 : index
    %c0_4 = arith.constant 0 : index
    %c0_5 = arith.constant 0 : index
    %4 = vector.load %arg3[%c0_3, %c0_4, %c0_5] : memref<1x16x32xf32, #tpu.memory_space<vmem>>, vector<1x16x32xf32>
    %c0_6 = arith.constant 0 : index
    %c0_7 = arith.constant 0 : index
    %c0_8 = arith.constant 0 : index
    %5 = vector.load %arg4[%c0_6, %c0_7, %c0_8] : memref<1x16x32xf32, #tpu.memory_space<vmem>>, vector<1x16x32xf32>
    %c0_9 = arith.constant 0 : index
    %c0_10 = arith.constant 0 : index
    %c0_11 = arith.constant 0 : index
    %6 = vector.load %arg5[%c0_9, %c0_10, %c0_11] : memref<1x8x32xf32, #tpu.memory_space<vmem>>, vector<1x8x32xf32>
    %c0_12 = arith.constant 0 : index
    %c0_13 = arith.constant 0 : index
    %c0_14 = arith.constant 0 : index
    %7 = vector.load %arg6[%c0_12, %c0_13, %c0_14] : memref<1x32x128xbf16, #tpu.memory_space<vmem>>, vector<1x32x128xbf16>
    %8 = vector.shape_cast %7 : vector<1x32x128xbf16> to vector<32x128xbf16>
    %9 = arith.extf %8 : vector<32x128xbf16> to vector<32x128xf32>
    %c0_15 = arith.constant 0 : index
    %c0_16 = arith.constant 0 : index
    %c0_17 = arith.constant 0 : index
    %10 = vector.load %arg8[%c0_15, %c0_16, %c0_17] : memref<1x32x128xbf16, #tpu.memory_space<vmem>>, vector<1x32x128xbf16>
    %11 = vector.shape_cast %10 : vector<1x32x128xbf16> to vector<32x128xbf16>
    %12 = arith.extf %11 : vector<32x128xbf16> to vector<32x128xf32>
    %c0_18 = arith.constant 0 : index
    %c0_19 = arith.constant 0 : index
    %c0_20 = arith.constant 0 : index
    %13 = vector.load %arg7[%c0_18, %c0_19, %c0_20] : memref<1x1x128xf32, #tpu.memory_space<vmem>>, vector<1x1x128xf32>
    %14 = vector.shape_cast %13 : vector<1x1x128xf32> to vector<1x128xf32>
    %c0_21 = arith.constant 0 : index
    %c0_22 = arith.constant 0 : index
    %c0_23 = arith.constant 0 : index
    %15 = vector.load %arg9[%c0_21, %c0_22, %c0_23] : memref<1x1x128xf32, #tpu.memory_space<vmem>>, vector<1x1x128xf32>
    %16 = vector.shape_cast %15 : vector<1x1x128xf32> to vector<1x128xf32>
    %c0_24 = arith.constant 0 : index
    %c0_25 = arith.constant 0 : index
    %c0_26 = arith.constant 0 : index
    %17 = vector.load %arg10[%c0_24, %c0_25, %c0_26] : memref<1x32x64xbf16, #tpu.memory_space<vmem>>, vector<1x32x64xbf16>
    %18 = vector.shape_cast %17 : vector<1x32x64xbf16> to vector<32x64xbf16>
    %19 = arith.extf %18 : vector<32x64xbf16> to vector<32x64xf32>
    %c0_27 = arith.constant 0 : index
    %c0_28 = arith.constant 0 : index
    %c0_29 = arith.constant 0 : index
    %20 = vector.load %arg12[%c0_27, %c0_28, %c0_29] : memref<1x64x32xbf16, #tpu.memory_space<vmem>>, vector<1x64x32xbf16>
    %21 = vector.shape_cast %20 : vector<1x64x32xbf16> to vector<64x32xbf16>
    %22 = arith.extf %21 : vector<64x32xbf16> to vector<64x32xf32>
    %c0_30 = arith.constant 0 : index
    %c0_31 = arith.constant 0 : index
    %c0_32 = arith.constant 0 : index
    %23 = vector.load %arg11[%c0_30, %c0_31, %c0_32] : memref<1x1x64xf32, #tpu.memory_space<vmem>>, vector<1x1x64xf32>
    %24 = vector.shape_cast %23 : vector<1x1x64xf32> to vector<1x64xf32>
    %c0_33 = arith.constant 0 : index
    %c0_34 = arith.constant 0 : index
    %c0_35 = arith.constant 0 : index
    %25 = vector.load %arg13[%c0_33, %c0_34, %c0_35] : memref<1x1x32xf32, #tpu.memory_space<vmem>>, vector<1x1x32xf32>
    %26 = vector.shape_cast %25 : vector<1x1x32xf32> to vector<1x32xf32>
    %c0_36 = arith.constant 0 : index
    %c0_37 = arith.constant 0 : index
    %c0_38 = arith.constant 0 : index
    %27 = vector.load %arg14[%c0_36, %c0_37, %c0_38] : memref<1x6x32xf32, #tpu.memory_space<vmem>>, vector<1x6x32xf32>
    %28 = vector.shape_cast %27 : vector<1x6x32xf32> to vector<6x32xf32>
    %29 = arith.addf %3, %6 : vector<1x8x32xf32>
    %30 = vector.shape_cast %29 : vector<1x8x32xf32> to vector<8x32xf32>
    %31 = vector.shape_cast %3 : vector<1x8x32xf32> to vector<8x32xf32>
    %32 = vector.extract_strided_slice %9 {offsets = [0, 0], sizes = [32, 64], strides = [1, 1]} : vector<32x128xf32> to vector<32x64xf32>
    %cst = arith.constant dense<0.000000e+00> : vector<8x64xf32>
    %33 = tpu.matmul %30, %32, %cst {dimension_numbers = #tpu.dot_dimension_numbers<[1], [0], [0], [1], [0, 0, 1, 1], [], []>} : vector<8x32xf32>, vector<32x64xf32>, vector<8x64xf32> -> vector<8x64xf32>
    %34 = vector.extract_strided_slice %14 {offsets = [0, 0], sizes = [1, 64], strides = [1, 1]} : vector<1x128xf32> to vector<1x64xf32>
    %35 = vector.broadcast %34 : vector<1x64xf32> to vector<8x64xf32>
    %36 = arith.addf %33, %35 : vector<8x64xf32>
    %37 = vector.extract_strided_slice %9 {offsets = [0, 64], sizes = [32, 32], strides = [1, 1]} : vector<32x128xf32> to vector<32x32xf32>
    %cst_39 = arith.constant dense<0.000000e+00> : vector<8x32xf32>
    %38 = tpu.matmul %31, %37, %cst_39 {dimension_numbers = #tpu.dot_dimension_numbers<[1], [0], [0], [1], [0, 0, 1, 1], [], []>} : vector<8x32xf32>, vector<32x32xf32>, vector<8x32xf32> -> vector<8x32xf32>
    %39 = vector.extract_strided_slice %14 {offsets = [0, 64], sizes = [1, 32], strides = [1, 1]} : vector<1x128xf32> to vector<1x32xf32>
    %40 = vector.broadcast %39 : vector<1x32xf32> to vector<8x32xf32>
    %41 = arith.addf %38, %40 : vector<8x32xf32>
    %42 = vector.extract_strided_slice %36 {offsets = [0, 0], sizes = [8, 32], strides = [1, 1]} : vector<8x64xf32> to vector<8x32xf32>
    %43 = vector.extract_strided_slice %36 {offsets = [0, 32], sizes = [8, 32], strides = [1, 1]} : vector<8x64xf32> to vector<8x32xf32>
    %44 = vector.extract_strided_slice %9 {offsets = [0, 96], sizes = [32, 32], strides = [1, 1]} : vector<32x128xf32> to vector<32x32xf32>
    %45 = vector.extract_strided_slice %14 {offsets = [0, 96], sizes = [1, 32], strides = [1, 1]} : vector<1x128xf32> to vector<1x32xf32>
    %46 = vector.shape_cast %42 : vector<8x32xf32> to vector<1x8x32xf32>
    %47 = vector.extract_strided_slice %46 {offsets = [0, 0, 0], sizes = [1, 8, 8], strides = [1, 1, 1]} : vector<1x8x32xf32> to vector<1x8x8xf32>
    %48 = vector.extract_strided_slice %46 {offsets = [0, 0, 8], sizes = [1, 8, 8], strides = [1, 1, 1]} : vector<1x8x32xf32> to vector<1x8x8xf32>
    %49 = vector.extract_strided_slice %46 {offsets = [0, 0, 16], sizes = [1, 8, 8], strides = [1, 1, 1]} : vector<1x8x32xf32> to vector<1x8x8xf32>
    %50 = vector.extract_strided_slice %46 {offsets = [0, 0, 24], sizes = [1, 8, 8], strides = [1, 1, 1]} : vector<1x8x32xf32> to vector<1x8x8xf32>
    %51 = tpu.concatenate %47, %48, %49, %50 in 0 : vector<1x8x8xf32>, vector<1x8x8xf32>, vector<1x8x8xf32>, vector<1x8x8xf32> -> vector<4x8x8xf32>
    %52 = vector.shape_cast %43 : vector<8x32xf32> to vector<1x8x32xf32>
    %53 = vector.extract_strided_slice %52 {offsets = [0, 0, 0], sizes = [1, 8, 8], strides = [1, 1, 1]} : vector<1x8x32xf32> to vector<1x8x8xf32>
    %54 = vector.extract_strided_slice %52 {offsets = [0, 0, 8], sizes = [1, 8, 8], strides = [1, 1, 1]} : vector<1x8x32xf32> to vector<1x8x8xf32>
    %55 = vector.extract_strided_slice %52 {offsets = [0, 0, 16], sizes = [1, 8, 8], strides = [1, 1, 1]} : vector<1x8x32xf32> to vector<1x8x8xf32>
    %56 = vector.extract_strided_slice %52 {offsets = [0, 0, 24], sizes = [1, 8, 8], strides = [1, 1, 1]} : vector<1x8x32xf32> to vector<1x8x8xf32>
    %57 = tpu.concatenate %53, %54, %55, %56 in 0 : vector<1x8x8xf32>, vector<1x8x8xf32>, vector<1x8x8xf32>, vector<1x8x8xf32> -> vector<4x8x8xf32>
    %58 = vector.shape_cast %41 : vector<8x32xf32> to vector<1x8x32xf32>
    %59 = vector.extract_strided_slice %58 {offsets = [0, 0, 0], sizes = [1, 8, 8], strides = [1, 1, 1]} : vector<1x8x32xf32> to vector<1x8x8xf32>
    %60 = vector.extract_strided_slice %58 {offsets = [0, 0, 8], sizes = [1, 8, 8], strides = [1, 1, 1]} : vector<1x8x32xf32> to vector<1x8x8xf32>
    %61 = vector.extract_strided_slice %58 {offsets = [0, 0, 16], sizes = [1, 8, 8], strides = [1, 1, 1]} : vector<1x8x32xf32> to vector<1x8x8xf32>
    %62 = vector.extract_strided_slice %58 {offsets = [0, 0, 24], sizes = [1, 8, 8], strides = [1, 1, 1]} : vector<1x8x32xf32> to vector<1x8x8xf32>
    %63 = tpu.concatenate %59, %60, %61, %62 in 0 : vector<1x8x8xf32>, vector<1x8x8xf32>, vector<1x8x8xf32>, vector<1x8x8xf32> -> vector<4x8x8xf32>
    "tpu.trace_start"() <{level = 10 : i32, message = "bqd,bkd->bqk"}> : () -> ()
    %cst_40 = arith.constant dense<0.000000e+00> : vector<4x8x8xf32>
    %64 = tpu.matmul %51, %57, %cst_40 {dimension_numbers = #tpu.dot_dimension_numbers<[2], [2], [1], [1], [0, 0, 0, 1, 1, 1], [0], [0]>} : vector<4x8x8xf32>, vector<4x8x8xf32>, vector<4x8x8xf32> -> vector<4x8x8xf32>
    "tpu.trace_stop"() : () -> ()
    %cst_41 = arith.constant 0.353553385 : f32
    %65 = vector.broadcast %cst_41 : f32 to vector<4x8x8xf32>
    %66 = arith.mulf %64, %65 : vector<4x8x8xf32>
    %cst_42 = arith.constant dense<0xFF800000> : vector<4x8xf32>
    %67 = vector.multi_reduction <maximumf>, %66, %cst_42 [2] : vector<4x8x8xf32> to vector<4x8xf32>
    %68 = vector.shape_cast %67 : vector<4x8xf32> to vector<4x8x1xf32>
    %69 = vector.broadcast %68 : vector<4x8x1xf32> to vector<4x8x8xf32>
    %70 = arith.subf %66, %69 : vector<4x8x8xf32>
    %71 = math.exp %70 : vector<4x8x8xf32>
    %cst_43 = arith.constant dense<0.000000e+00> : vector<4x8xf32>
    %72 = vector.multi_reduction <add>, %71, %cst_43 [2] : vector<4x8x8xf32> to vector<4x8xf32>
    %73 = vector.shape_cast %72 : vector<4x8xf32> to vector<4x8x1xf32>
    %74 = tpu.reciprocal %73 {approx = true} : vector<4x8x1xf32> -> vector<4x8x1xf32>
    %75 = vector.broadcast %74 : vector<4x8x1xf32> to vector<4x8x8xf32>
    %76 = arith.mulf %71, %75 : vector<4x8x8xf32>
    "tpu.trace_start"() <{level = 10 : i32, message = "bqk,bkd->bqd"}> : () -> ()
    %cst_44 = arith.constant dense<0.000000e+00> : vector<4x8x8xf32>
    %77 = tpu.matmul %76, %63, %cst_44 {dimension_numbers = #tpu.dot_dimension_numbers<[2], [1], [1], [2], [0, 0, 0, 1, 1, 2], [0], [0]>} : vector<4x8x8xf32>, vector<4x8x8xf32>, vector<4x8x8xf32> -> vector<4x8x8xf32>
    "tpu.trace_stop"() : () -> ()
    %78 = vector.extract_strided_slice %77 {offsets = [0, 0, 0], sizes = [1, 8, 8], strides = [1, 1, 1]} : vector<4x8x8xf32> to vector<1x8x8xf32>
    %79 = vector.extract_strided_slice %77 {offsets = [1, 0, 0], sizes = [1, 8, 8], strides = [1, 1, 1]} : vector<4x8x8xf32> to vector<1x8x8xf32>
    %80 = vector.extract_strided_slice %77 {offsets = [2, 0, 0], sizes = [1, 8, 8], strides = [1, 1, 1]} : vector<4x8x8xf32> to vector<1x8x8xf32>
    %81 = vector.extract_strided_slice %77 {offsets = [3, 0, 0], sizes = [1, 8, 8], strides = [1, 1, 1]} : vector<4x8x8xf32> to vector<1x8x8xf32>
    %82 = tpu.concatenate %78, %79, %80, %81 in 2 : vector<1x8x8xf32>, vector<1x8x8xf32>, vector<1x8x8xf32>, vector<1x8x8xf32> -> vector<1x8x32xf32>
    %83 = vector.shape_cast %82 : vector<1x8x32xf32> to vector<8x32xf32>
    %cst_45 = arith.constant dense<0.000000e+00> : vector<8x32xf32>
    %84 = tpu.matmul %83, %44, %cst_45 {dimension_numbers = #tpu.dot_dimension_numbers<[1], [0], [0], [1], [0, 0, 1, 1], [], []>} : vector<8x32xf32>, vector<32x32xf32>, vector<8x32xf32> -> vector<8x32xf32>
    %85 = vector.broadcast %45 : vector<1x32xf32> to vector<8x32xf32>
    %86 = arith.addf %84, %85 : vector<8x32xf32>
    %87 = vector.shape_cast %86 : vector<8x32xf32> to vector<1x8x32xf32>
    %88 = arith.addf %3, %87 : vector<1x8x32xf32>
    %89 = vector.extract_strided_slice %28 {offsets = [0, 0], sizes = [1, 32], strides = [1, 1]} : vector<6x32xf32> to vector<1x32xf32>
    %90 = vector.extract_strided_slice %28 {offsets = [1, 0], sizes = [1, 32], strides = [1, 1]} : vector<6x32xf32> to vector<1x32xf32>
    %cst_46 = arith.constant dense<0.000000e+00> : vector<1x8xf32>
    %91 = vector.multi_reduction <add>, %88, %cst_46 [2] : vector<1x8x32xf32> to vector<1x8xf32>
    %92 = vector.shape_cast %91 : vector<1x8xf32> to vector<1x8x1xf32>
    %cst_47 = arith.constant 3.200000e+01 : f32
    %93 = vector.broadcast %cst_47 : f32 to vector<1x8x1xf32>
    %94 = arith.divf %92, %93 : vector<1x8x1xf32>
    %95 = vector.broadcast %94 : vector<1x8x1xf32> to vector<1x8x32xf32>
    %96 = arith.subf %88, %95 : vector<1x8x32xf32>
    %97 = arith.mulf %96, %96 : vector<1x8x32xf32>
    %cst_48 = arith.constant dense<0.000000e+00> : vector<1x8xf32>
    %98 = vector.multi_reduction <add>, %97, %cst_48 [2] : vector<1x8x32xf32> to vector<1x8xf32>
    %99 = vector.shape_cast %98 : vector<1x8xf32> to vector<1x8x1xf32>
    %cst_49 = arith.constant 3.200000e+01 : f32
    %100 = vector.broadcast %cst_49 : f32 to vector<1x8x1xf32>
    %101 = arith.divf %99, %100 : vector<1x8x1xf32>
    %cst_50 = arith.constant 9.99999974E-6 : f32
    %102 = vector.broadcast %cst_50 : f32 to vector<1x8x1xf32>
    %103 = arith.addf %101, %102 : vector<1x8x1xf32>
    %104 = math.rsqrt %103 : vector<1x8x1xf32>
    %105 = vector.broadcast %104 : vector<1x8x1xf32> to vector<1x8x32xf32>
    %106 = arith.mulf %96, %105 : vector<1x8x32xf32>
    %107 = vector.shape_cast %89 : vector<1x32xf32> to vector<1x1x32xf32>
    %108 = vector.broadcast %107 : vector<1x1x32xf32> to vector<1x8x32xf32>
    %109 = arith.mulf %106, %108 : vector<1x8x32xf32>
    %110 = vector.shape_cast %90 : vector<1x32xf32> to vector<1x1x32xf32>
    %111 = vector.broadcast %110 : vector<1x1x32xf32> to vector<1x8x32xf32>
    %112 = arith.addf %109, %111 : vector<1x8x32xf32>
    %113 = arith.addf %112, %6 : vector<1x8x32xf32>
    %114 = vector.shape_cast %113 : vector<1x8x32xf32> to vector<8x32xf32>
    %115 = vector.shape_cast %5 : vector<1x16x32xf32> to vector<16x32xf32>
    %116 = vector.shape_cast %4 : vector<1x16x32xf32> to vector<16x32xf32>
    %117 = vector.extract_strided_slice %12 {offsets = [0, 0], sizes = [32, 32], strides = [1, 1]} : vector<32x128xf32> to vector<32x32xf32>
    %cst_51 = arith.constant dense<0.000000e+00> : vector<8x32xf32>
    %118 = tpu.matmul %114, %117, %cst_51 {dimension_numbers = #tpu.dot_dimension_numbers<[1], [0], [0], [1], [0, 0, 1, 1], [], []>} : vector<8x32xf32>, vector<32x32xf32>, vector<8x32xf32> -> vector<8x32xf32>
    %119 = vector.extract_strided_slice %16 {offsets = [0, 0], sizes = [1, 32], strides = [1, 1]} : vector<1x128xf32> to vector<1x32xf32>
    %120 = vector.broadcast %119 : vector<1x32xf32> to vector<8x32xf32>
    %121 = arith.addf %118, %120 : vector<8x32xf32>
    %122 = vector.extract_strided_slice %12 {offsets = [0, 32], sizes = [32, 32], strides = [1, 1]} : vector<32x128xf32> to vector<32x32xf32>
    %cst_52 = arith.constant dense<0.000000e+00> : vector<16x32xf32>
    %123 = tpu.matmul %115, %122, %cst_52 {dimension_numbers = #tpu.dot_dimension_numbers<[1], [0], [0], [1], [0, 0, 1, 1], [], []>} : vector<16x32xf32>, vector<32x32xf32>, vector<16x32xf32> -> vector<16x32xf32>
    %124 = vector.extract_strided_slice %16 {offsets = [0, 32], sizes = [1, 32], strides = [1, 1]} : vector<1x128xf32> to vector<1x32xf32>
    %125 = vector.broadcast %124 : vector<1x32xf32> to vector<16x32xf32>
    %126 = arith.addf %123, %125 : vector<16x32xf32>
    %127 = vector.extract_strided_slice %12 {offsets = [0, 64], sizes = [32, 32], strides = [1, 1]} : vector<32x128xf32> to vector<32x32xf32>
    %cst_53 = arith.constant dense<0.000000e+00> : vector<16x32xf32>
    %128 = tpu.matmul %116, %127, %cst_53 {dimension_numbers = #tpu.dot_dimension_numbers<[1], [0], [0], [1], [0, 0, 1, 1], [], []>} : vector<16x32xf32>, vector<32x32xf32>, vector<16x32xf32> -> vector<16x32xf32>
    %129 = vector.extract_strided_slice %16 {offsets = [0, 64], sizes = [1, 32], strides = [1, 1]} : vector<1x128xf32> to vector<1x32xf32>
    %130 = vector.broadcast %129 : vector<1x32xf32> to vector<16x32xf32>
    %131 = arith.addf %128, %130 : vector<16x32xf32>
    %132 = vector.extract_strided_slice %12 {offsets = [0, 96], sizes = [32, 32], strides = [1, 1]} : vector<32x128xf32> to vector<32x32xf32>
    %133 = vector.extract_strided_slice %16 {offsets = [0, 96], sizes = [1, 32], strides = [1, 1]} : vector<1x128xf32> to vector<1x32xf32>
    %134 = vector.shape_cast %121 : vector<8x32xf32> to vector<1x8x32xf32>
    %135 = vector.extract_strided_slice %134 {offsets = [0, 0, 0], sizes = [1, 8, 8], strides = [1, 1, 1]} : vector<1x8x32xf32> to vector<1x8x8xf32>
    %136 = vector.extract_strided_slice %134 {offsets = [0, 0, 8], sizes = [1, 8, 8], strides = [1, 1, 1]} : vector<1x8x32xf32> to vector<1x8x8xf32>
    %137 = vector.extract_strided_slice %134 {offsets = [0, 0, 16], sizes = [1, 8, 8], strides = [1, 1, 1]} : vector<1x8x32xf32> to vector<1x8x8xf32>
    %138 = vector.extract_strided_slice %134 {offsets = [0, 0, 24], sizes = [1, 8, 8], strides = [1, 1, 1]} : vector<1x8x32xf32> to vector<1x8x8xf32>
    %139 = tpu.concatenate %135, %136, %137, %138 in 0 : vector<1x8x8xf32>, vector<1x8x8xf32>, vector<1x8x8xf32>, vector<1x8x8xf32> -> vector<4x8x8xf32>
    %140 = vector.shape_cast %126 : vector<16x32xf32> to vector<1x16x32xf32>
    %141 = vector.extract_strided_slice %140 {offsets = [0, 0, 0], sizes = [1, 16, 8], strides = [1, 1, 1]} : vector<1x16x32xf32> to vector<1x16x8xf32>
    %142 = vector.extract_strided_slice %140 {offsets = [0, 0, 8], sizes = [1, 16, 8], strides = [1, 1, 1]} : vector<1x16x32xf32> to vector<1x16x8xf32>
    %143 = vector.extract_strided_slice %140 {offsets = [0, 0, 16], sizes = [1, 16, 8], strides = [1, 1, 1]} : vector<1x16x32xf32> to vector<1x16x8xf32>
    %144 = vector.extract_strided_slice %140 {offsets = [0, 0, 24], sizes = [1, 16, 8], strides = [1, 1, 1]} : vector<1x16x32xf32> to vector<1x16x8xf32>
    %145 = tpu.concatenate %141, %142, %143, %144 in 0 : vector<1x16x8xf32>, vector<1x16x8xf32>, vector<1x16x8xf32>, vector<1x16x8xf32> -> vector<4x16x8xf32>
    %146 = vector.shape_cast %131 : vector<16x32xf32> to vector<1x16x32xf32>
    %147 = vector.extract_strided_slice %146 {offsets = [0, 0, 0], sizes = [1, 16, 8], strides = [1, 1, 1]} : vector<1x16x32xf32> to vector<1x16x8xf32>
    %148 = vector.extract_strided_slice %146 {offsets = [0, 0, 8], sizes = [1, 16, 8], strides = [1, 1, 1]} : vector<1x16x32xf32> to vector<1x16x8xf32>
    %149 = vector.extract_strided_slice %146 {offsets = [0, 0, 16], sizes = [1, 16, 8], strides = [1, 1, 1]} : vector<1x16x32xf32> to vector<1x16x8xf32>
    %150 = vector.extract_strided_slice %146 {offsets = [0, 0, 24], sizes = [1, 16, 8], strides = [1, 1, 1]} : vector<1x16x32xf32> to vector<1x16x8xf32>
    %151 = tpu.concatenate %147, %148, %149, %150 in 0 : vector<1x16x8xf32>, vector<1x16x8xf32>, vector<1x16x8xf32>, vector<1x16x8xf32> -> vector<4x16x8xf32>
    "tpu.trace_start"() <{level = 10 : i32, message = "bqd,bkd->bqk"}> : () -> ()
    %cst_54 = arith.constant dense<0.000000e+00> : vector<4x8x16xf32>
    %152 = tpu.matmul %139, %145, %cst_54 {dimension_numbers = #tpu.dot_dimension_numbers<[2], [2], [1], [1], [0, 0, 0, 1, 1, 1], [0], [0]>} : vector<4x8x8xf32>, vector<4x16x8xf32>, vector<4x8x16xf32> -> vector<4x8x16xf32>
    "tpu.trace_stop"() : () -> ()
    %cst_55 = arith.constant 0.353553385 : f32
    %153 = vector.broadcast %cst_55 : f32 to vector<4x8x16xf32>
    %154 = arith.mulf %152, %153 : vector<4x8x16xf32>
    %cst_56 = arith.constant dense<0xFF800000> : vector<4x8xf32>
    %155 = vector.multi_reduction <maximumf>, %154, %cst_56 [2] : vector<4x8x16xf32> to vector<4x8xf32>
    %156 = vector.shape_cast %155 : vector<4x8xf32> to vector<4x8x1xf32>
    %157 = vector.broadcast %156 : vector<4x8x1xf32> to vector<4x8x16xf32>
    %158 = arith.subf %154, %157 : vector<4x8x16xf32>
    %159 = math.exp %158 : vector<4x8x16xf32>
    %cst_57 = arith.constant dense<0.000000e+00> : vector<4x8xf32>
    %160 = vector.multi_reduction <add>, %159, %cst_57 [2] : vector<4x8x16xf32> to vector<4x8xf32>
    %161 = vector.shape_cast %160 : vector<4x8xf32> to vector<4x8x1xf32>
    %162 = tpu.reciprocal %161 {approx = true} : vector<4x8x1xf32> -> vector<4x8x1xf32>
    %163 = vector.broadcast %162 : vector<4x8x1xf32> to vector<4x8x16xf32>
    %164 = arith.mulf %159, %163 : vector<4x8x16xf32>
    "tpu.trace_start"() <{level = 10 : i32, message = "bqk,bkd->bqd"}> : () -> ()
    %cst_58 = arith.constant dense<0.000000e+00> : vector<4x8x8xf32>
    %165 = tpu.matmul %164, %151, %cst_58 {dimension_numbers = #tpu.dot_dimension_numbers<[2], [1], [1], [2], [0, 0, 0, 1, 1, 2], [0], [0]>} : vector<4x8x16xf32>, vector<4x16x8xf32>, vector<4x8x8xf32> -> vector<4x8x8xf32>
    "tpu.trace_stop"() : () -> ()
    %166 = vector.extract_strided_slice %165 {offsets = [0, 0, 0], sizes = [1, 8, 8], strides = [1, 1, 1]} : vector<4x8x8xf32> to vector<1x8x8xf32>
    %167 = vector.extract_strided_slice %165 {offsets = [1, 0, 0], sizes = [1, 8, 8], strides = [1, 1, 1]} : vector<4x8x8xf32> to vector<1x8x8xf32>
    %168 = vector.extract_strided_slice %165 {offsets = [2, 0, 0], sizes = [1, 8, 8], strides = [1, 1, 1]} : vector<4x8x8xf32> to vector<1x8x8xf32>
    %169 = vector.extract_strided_slice %165 {offsets = [3, 0, 0], sizes = [1, 8, 8], strides = [1, 1, 1]} : vector<4x8x8xf32> to vector<1x8x8xf32>
    %170 = tpu.concatenate %166, %167, %168, %169 in 2 : vector<1x8x8xf32>, vector<1x8x8xf32>, vector<1x8x8xf32>, vector<1x8x8xf32> -> vector<1x8x32xf32>
    %171 = vector.shape_cast %170 : vector<1x8x32xf32> to vector<8x32xf32>
    %cst_59 = arith.constant dense<0.000000e+00> : vector<8x32xf32>
    %172 = tpu.matmul %171, %132, %cst_59 {dimension_numbers = #tpu.dot_dimension_numbers<[1], [0], [0], [1], [0, 0, 1, 1], [], []>} : vector<8x32xf32>, vector<32x32xf32>, vector<8x32xf32> -> vector<8x32xf32>
    %173 = vector.broadcast %133 : vector<1x32xf32> to vector<8x32xf32>
    %174 = arith.addf %172, %173 : vector<8x32xf32>
    %175 = vector.shape_cast %174 : vector<8x32xf32> to vector<1x8x32xf32>
    %176 = arith.addf %112, %175 : vector<1x8x32xf32>
    %177 = vector.extract_strided_slice %28 {offsets = [2, 0], sizes = [1, 32], strides = [1, 1]} : vector<6x32xf32> to vector<1x32xf32>
    %178 = vector.extract_strided_slice %28 {offsets = [3, 0], sizes = [1, 32], strides = [1, 1]} : vector<6x32xf32> to vector<1x32xf32>
    %cst_60 = arith.constant dense<0.000000e+00> : vector<1x8xf32>
    %179 = vector.multi_reduction <add>, %176, %cst_60 [2] : vector<1x8x32xf32> to vector<1x8xf32>
    %180 = vector.shape_cast %179 : vector<1x8xf32> to vector<1x8x1xf32>
    %cst_61 = arith.constant 3.200000e+01 : f32
    %181 = vector.broadcast %cst_61 : f32 to vector<1x8x1xf32>
    %182 = arith.divf %180, %181 : vector<1x8x1xf32>
    %183 = vector.broadcast %182 : vector<1x8x1xf32> to vector<1x8x32xf32>
    %184 = arith.subf %176, %183 : vector<1x8x32xf32>
    %185 = arith.mulf %184, %184 : vector<1x8x32xf32>
    %cst_62 = arith.constant dense<0.000000e+00> : vector<1x8xf32>
    %186 = vector.multi_reduction <add>, %185, %cst_62 [2] : vector<1x8x32xf32> to vector<1x8xf32>
    %187 = vector.shape_cast %186 : vector<1x8xf32> to vector<1x8x1xf32>
    %cst_63 = arith.constant 3.200000e+01 : f32
    %188 = vector.broadcast %cst_63 : f32 to vector<1x8x1xf32>
    %189 = arith.divf %187, %188 : vector<1x8x1xf32>
    %cst_64 = arith.constant 9.99999974E-6 : f32
    %190 = vector.broadcast %cst_64 : f32 to vector<1x8x1xf32>
    %191 = arith.addf %189, %190 : vector<1x8x1xf32>
    %192 = math.rsqrt %191 : vector<1x8x1xf32>
    %193 = vector.broadcast %192 : vector<1x8x1xf32> to vector<1x8x32xf32>
    %194 = arith.mulf %184, %193 : vector<1x8x32xf32>
    %195 = vector.shape_cast %177 : vector<1x32xf32> to vector<1x1x32xf32>
    %196 = vector.broadcast %195 : vector<1x1x32xf32> to vector<1x8x32xf32>
    %197 = arith.mulf %194, %196 : vector<1x8x32xf32>
    %198 = vector.shape_cast %178 : vector<1x32xf32> to vector<1x1x32xf32>
    %199 = vector.broadcast %198 : vector<1x1x32xf32> to vector<1x8x32xf32>
    %200 = arith.addf %197, %199 : vector<1x8x32xf32>
    %201 = vector.shape_cast %200 : vector<1x8x32xf32> to vector<8x32xf32>
    %cst_65 = arith.constant dense<0.000000e+00> : vector<8x64xf32>
    %202 = tpu.matmul %201, %19, %cst_65 {dimension_numbers = #tpu.dot_dimension_numbers<[1], [0], [0], [1], [0, 0, 1, 1], [], []>} : vector<8x32xf32>, vector<32x64xf32>, vector<8x64xf32> -> vector<8x64xf32>
    %203 = vector.broadcast %24 : vector<1x64xf32> to vector<8x64xf32>
    %204 = arith.addf %202, %203 : vector<8x64xf32>
    %cst_66 = arith.constant 0.000000e+00 : f32
    %205 = vector.broadcast %cst_66 : f32 to vector<8x64xf32>
    %206 = arith.maximumf %204, %205 : vector<8x64xf32>
    %cst_67 = arith.constant dense<0.000000e+00> : vector<8x32xf32>
    %207 = tpu.matmul %206, %22, %cst_67 {dimension_numbers = #tpu.dot_dimension_numbers<[1], [0], [0], [1], [0, 0, 1, 1], [], []>} : vector<8x64xf32>, vector<64x32xf32>, vector<8x32xf32> -> vector<8x32xf32>
    %208 = vector.broadcast %26 : vector<1x32xf32> to vector<8x32xf32>
    %209 = arith.addf %207, %208 : vector<8x32xf32>
    %210 = vector.shape_cast %209 : vector<8x32xf32> to vector<1x8x32xf32>
    %211 = arith.addf %200, %210 : vector<1x8x32xf32>
    %212 = vector.extract_strided_slice %28 {offsets = [4, 0], sizes = [1, 32], strides = [1, 1]} : vector<6x32xf32> to vector<1x32xf32>
    %213 = vector.extract_strided_slice %28 {offsets = [5, 0], sizes = [1, 32], strides = [1, 1]} : vector<6x32xf32> to vector<1x32xf32>
    %cst_68 = arith.constant dense<0.000000e+00> : vector<1x8xf32>
    %214 = vector.multi_reduction <add>, %211, %cst_68 [2] : vector<1x8x32xf32> to vector<1x8xf32>
    %215 = vector.shape_cast %214 : vector<1x8xf32> to vector<1x8x1xf32>
    %cst_69 = arith.constant 3.200000e+01 : f32
    %216 = vector.broadcast %cst_69 : f32 to vector<1x8x1xf32>
    %217 = arith.divf %215, %216 : vector<1x8x1xf32>
    %218 = vector.broadcast %217 : vector<1x8x1xf32> to vector<1x8x32xf32>
    %219 = arith.subf %211, %218 : vector<1x8x32xf32>
    %220 = arith.mulf %219, %219 : vector<1x8x32xf32>
    %cst_70 = arith.constant dense<0.000000e+00> : vector<1x8xf32>
    %221 = vector.multi_reduction <add>, %220, %cst_70 [2] : vector<1x8x32xf32> to vector<1x8xf32>
    %222 = vector.shape_cast %221 : vector<1x8xf32> to vector<1x8x1xf32>
    %cst_71 = arith.constant 3.200000e+01 : f32
    %223 = vector.broadcast %cst_71 : f32 to vector<1x8x1xf32>
    %224 = arith.divf %222, %223 : vector<1x8x1xf32>
    %cst_72 = arith.constant 9.99999974E-6 : f32
    %225 = vector.broadcast %cst_72 : f32 to vector<1x8x1xf32>
    %226 = arith.addf %224, %225 : vector<1x8x1xf32>
    %227 = math.rsqrt %226 : vector<1x8x1xf32>
    %228 = vector.broadcast %227 : vector<1x8x1xf32> to vector<1x8x32xf32>
    %229 = arith.mulf %219, %228 : vector<1x8x32xf32>
    %230 = vector.shape_cast %212 : vector<1x32xf32> to vector<1x1x32xf32>
    %231 = vector.broadcast %230 : vector<1x1x32xf32> to vector<1x8x32xf32>
    %232 = arith.mulf %229, %231 : vector<1x8x32xf32>
    %233 = vector.shape_cast %213 : vector<1x32xf32> to vector<1x1x32xf32>
    %234 = vector.broadcast %233 : vector<1x1x32xf32> to vector<1x8x32xf32>
    %235 = arith.addf %232, %234 : vector<1x8x32xf32>
    %c0_73 = arith.constant 0 : index
    %c0_74 = arith.constant 0 : index
    %c0_75 = arith.constant 0 : index
    %236 = vector.load %arg16[%c0_73, %c0_74, %c0_75] : memref<1x8x32xf32, #tpu.memory_space<vmem>>, vector<1x8x32xf32>
    tpu.vector_store %arg16[%c0_73, %c0_74, %c0_75], %235 {strides = array<i32>} : memref<1x8x32xf32, #tpu.memory_space<vmem>>, vector<1x8x32xf32>,
    %c1_i32 = arith.constant 1 : i32
    %237 = arith.cmpi eq, %arg1, %c1_i32 : i32
    %238 = arith.extui %237 : i1 to i32
    %c0_i32_76 = arith.constant 0 : i32
    %239 = arith.cmpi ne, %238, %c0_i32_76 : i32
    scf.if %239 {
      %c0_77 = arith.constant 0 : index
      %c0_78 = arith.constant 0 : index
      %240 = vector.load %arg15[%c0_77, %c0_78] : memref<2x32xf32, #tpu.memory_space<vmem>>, vector<2x32xf32>
      %241 = vector.extract_strided_slice %240 {offsets = [0, 0], sizes = [1, 32], strides = [1, 1]} : vector<2x32xf32> to vector<1x32xf32>
      %242 = vector.extract_strided_slice %240 {offsets = [1, 0], sizes = [1, 32], strides = [1, 1]} : vector<2x32xf32> to vector<1x32xf32>
      %cst_79 = arith.constant dense<0.000000e+00> : vector<1x8xf32>
      %243 = vector.multi_reduction <add>, %235, %cst_79 [2] : vector<1x8x32xf32> to vector<1x8xf32>
      %244 = vector.shape_cast %243 : vector<1x8xf32> to vector<1x8x1xf32>
      %cst_80 = arith.constant 3.200000e+01 : f32
      %245 = vector.broadcast %cst_80 : f32 to vector<1x8x1xf32>
      %246 = arith.divf %244, %245 : vector<1x8x1xf32>
      %247 = vector.broadcast %246 : vector<1x8x1xf32> to vector<1x8x32xf32>
      %248 = arith.subf %235, %247 : vector<1x8x32xf32>
      %249 = arith.mulf %248, %248 : vector<1x8x32xf32>
      %cst_81 = arith.constant dense<0.000000e+00> : vector<1x8xf32>
      %250 = vector.multi_reduction <add>, %249, %cst_81 [2] : vector<1x8x32xf32> to vector<1x8xf32>
      %251 = vector.shape_cast %250 : vector<1x8xf32> to vector<1x8x1xf32>
      %cst_82 = arith.constant 3.200000e+01 : f32
      %252 = vector.broadcast %cst_82 : f32 to vector<1x8x1xf32>
      %253 = arith.divf %251, %252 : vector<1x8x1xf32>
      %cst_83 = arith.constant 9.99999974E-6 : f32
      %254 = vector.broadcast %cst_83 : f32 to vector<1x8x1xf32>
      %255 = arith.addf %253, %254 : vector<1x8x1xf32>
      %256 = math.rsqrt %255 : vector<1x8x1xf32>
      %257 = vector.broadcast %256 : vector<1x8x1xf32> to vector<1x8x32xf32>
      %258 = arith.mulf %248, %257 : vector<1x8x32xf32>
      %259 = vector.shape_cast %241 : vector<1x32xf32> to vector<1x1x32xf32>
      %260 = vector.broadcast %259 : vector<1x1x32xf32> to vector<1x8x32xf32>
      %261 = arith.mulf %258, %260 : vector<1x8x32xf32>
      %262 = vector.shape_cast %242 : vector<1x32xf32> to vector<1x1x32xf32>
      %263 = vector.broadcast %262 : vector<1x1x32xf32> to vector<1x8x32xf32>
      %264 = arith.addf %261, %263 : vector<1x8x32xf32>
      %c0_84 = arith.constant 0 : index
      %c0_85 = arith.constant 0 : index
      %c0_86 = arith.constant 0 : index
      %265 = vector.load %arg16[%c0_84, %c0_85, %c0_86] : memref<1x8x32xf32, #tpu.memory_space<vmem>>, vector<1x8x32xf32>
      tpu.vector_store %arg16[%c0_84, %c0_85, %c0_86], %264 {strides = array<i32>} : memref<1x8x32xf32, #tpu.memory_space<vmem>>, vector<1x8x32xf32>,
    } else {
    }
    return
  }
  func.func @transform_0(%arg0: i32, %arg1: i32) -> (i32, i32, i32) {
    %c0_i32 = arith.constant 0 : i32
    %c0_i32_0 = arith.constant 0 : i32
    %c0_i32_1 = arith.constant 0 : i32
    return %arg0, %c0_i32, %c0_i32_0 : i32, i32, i32
  }
  func.func @transform_1(%arg0: i32, %arg1: i32) -> (i32, i32, i32) {
    %c0_i32 = arith.constant 0 : i32
    %c0_i32_0 = arith.constant 0 : i32
    %c0_i32_1 = arith.constant 0 : i32
    return %arg0, %c0_i32, %c0_i32_0 : i32, i32, i32
  }
  func.func @transform_2(%arg0: i32, %arg1: i32) -> (i32, i32, i32) {
    %c0_i32 = arith.constant 0 : i32
    %c0_i32_0 = arith.constant 0 : i32
    %c0_i32_1 = arith.constant 0 : i32
    return %arg0, %c0_i32, %c0_i32_0 : i32, i32, i32
  }
  func.func @transform_3(%arg0: i32, %arg1: i32) -> (i32, i32, i32) {
    %c0_i32 = arith.constant 0 : i32
    %c0_i32_0 = arith.constant 0 : i32
    %c0_i32_1 = arith.constant 0 : i32
    return %arg0, %c0_i32, %c0_i32_0 : i32, i32, i32
  }
  func.func @transform_4(%arg0: i32, %arg1: i32) -> (i32, i32, i32) {
    %c0_i32 = arith.constant 0 : i32
    %c0_i32_0 = arith.constant 0 : i32
    %c0_i32_1 = arith.constant 0 : i32
    return %arg1, %c0_i32, %c0_i32_0 : i32, i32, i32
  }
  func.func @transform_5(%arg0: i32, %arg1: i32) -> (i32, i32, i32) {
    %c0_i32 = arith.constant 0 : i32
    %c0_i32_0 = arith.constant 0 : i32
    %c0_i32_1 = arith.constant 0 : i32
    return %arg1, %c0_i32, %c0_i32_0 : i32, i32, i32
  }
  func.func @transform_6(%arg0: i32, %arg1: i32) -> (i32, i32, i32) {
    %c0_i32 = arith.constant 0 : i32
    %c0_i32_0 = arith.constant 0 : i32
    %c0_i32_1 = arith.constant 0 : i32
    return %arg1, %c0_i32, %c0_i32_0 : i32, i32, i32
  }
  func.func @transform_7(%arg0: i32, %arg1: i32) -> (i32, i32, i32) {
    %c0_i32 = arith.constant 0 : i32
    %c0_i32_0 = arith.constant 0 : i32
    %c0_i32_1 = arith.constant 0 : i32
    return %arg1, %c0_i32, %c0_i32_0 : i32, i32, i32
  }
  func.func @transform_8(%arg0: i32, %arg1: i32) -> (i32, i32, i32) {
    %c0_i32 = arith.constant 0 : i32
    %c0_i32_0 = arith.constant 0 : i32
    %c0_i32_1 = arith.constant 0 : i32
    return %arg1, %c0_i32, %c0_i32_0 : i32, i32, i32
  }
  func.func @transform_9(%arg0: i32, %arg1: i32) -> (i32, i32, i32) {
    %c0_i32 = arith.constant 0 : i32
    %c0_i32_0 = arith.constant 0 : i32
    %c0_i32_1 = arith.constant 0 : i32
    return %arg1, %c0_i32, %c0_i32_0 : i32, i32, i32
  }
  func.func @transform_10(%arg0: i32, %arg1: i32) -> (i32, i32, i32) {
    %c0_i32 = arith.constant 0 : i32
    %c0_i32_0 = arith.constant 0 : i32
    %c0_i32_1 = arith.constant 0 : i32
    return %arg1, %c0_i32, %c0_i32_0 : i32, i32, i32
  }
  func.func @transform_11(%arg0: i32, %arg1: i32) -> (i32, i32, i32) {
    %c0_i32 = arith.constant 0 : i32
    %c0_i32_0 = arith.constant 0 : i32
    %c0_i32_1 = arith.constant 0 : i32
    return %arg1, %c0_i32, %c0_i32_0 : i32, i32, i32
  }
  func.func @transform_12(%arg0: i32, %arg1: i32) -> (i32, i32, i32) {
    %c0_i32 = arith.constant 0 : i32
    %c0_i32_0 = arith.constant 0 : i32
    %c0_i32_1 = arith.constant 0 : i32
    return %arg1, %c0_i32, %c0_i32_0 : i32, i32, i32
  }
  func.func @transform_13(%arg0: i32, %arg1: i32) -> (i32, i32) {
    %c0_i32 = arith.constant 0 : i32
    %c0_i32_0 = arith.constant 0 : i32
    %c0_i32_1 = arith.constant 0 : i32
    return %c0_i32, %c0_i32_0 : i32, i32
  }
  func.func @transform_14(%arg0: i32, %arg1: i32) -> (i32, i32, i32) {
    %c0_i32 = arith.constant 0 : i32
    %c0_i32_0 = arith.constant 0 : i32
    %c0_i32_1 = arith.constant 0 : i32
    return %arg0, %c0_i32, %c0_i32_0 : i32, i32, i32
  }
}

</mosaic_0001>

<llo_original>
// kernel: transformer_decoder_fwd.1
$region0: #{transformer_decoder_fwd.1}
  #allocation0 [shape = 'u32[]', space=smem, size = 0x4, offset = 0x4, fixed_abs, tag = 'smem constant byte address 0x4 - core index']
  #allocation1 [shape = 'u32[144,128]{1,0:T(1,128)}', space=vmem, size = 0x12000, scoped, tag = 'internal scratch']
  %s0 = inlined_call_operand.vmem [shape: f32[2,8,32], index: 0, kind: input, shape index: {}]
  %s1 = inlined_call_operand.vmem [shape: f32[2,16,32], index: 1, kind: input, shape index: {}]
  %s2 = inlined_call_operand.vmem [shape: f32[2,16,32], index: 2, kind: input, shape index: {}]
  %s3 = inlined_call_operand.vmem [shape: f32[2,8,32], index: 3, kind: input, shape index: {}]
  %s4 = inlined_call_operand.vmem [shape: bf16[2,32,128], index: 4, kind: input, shape index: {}]
  %s5 = inlined_call_operand.vmem [shape: f32[2,1,128], index: 5, kind: input, shape index: {}]
  %s6 = inlined_call_operand.vmem [shape: bf16[2,32,128], index: 6, kind: input, shape index: {}]
  %s7 = inlined_call_operand.vmem [shape: f32[2,1,128], index: 7, kind: input, shape index: {}]
  %s8 = inlined_call_operand.vmem [shape: bf16[2,32,64], index: 8, kind: input, shape index: {}]
  %s9 = inlined_call_operand.vmem [shape: f32[2,1,64], index: 9, kind: input, shape index: {}]
  %s10 = inlined_call_operand.vmem [shape: bf16[2,64,32], index: 10, kind: input, shape index: {}]
  %s11 = inlined_call_operand.vmem [shape: f32[2,1,32], index: 11, kind: input, shape index: {}]
  %s12 = inlined_call_operand.vmem [shape: f32[2,6,32], index: 12, kind: input, shape index: {}]
  %s13 = inlined_call_operand.vmem [shape: f32[2,32], index: 13, kind: input, shape index: {}]
  %s14 = inlined_call_operand.vmem [shape: f32[2,8,32], index: 14, kind: output, shape index: {}]
  %s15 = sld [smem:[#allocation0]]
  $region97: #{transformer_decoder_fwd.1} parent=0
    _
  %s17 = ssub.s32 1, %s15
  %s18 = scalar_select 0, %s17, %s15
  loop: start=0, step=1, limit=6
  $region2: #{transformer_decoder_fwd.1} parent=0 // loop_pre_header
    _
  $region3: #{transformer_decoder_fwd.1} parent=0 // loop_header
    %s20 = sphi 0, %s24
    %p21 = scmp.ge.s32.totalorder %s20, 6
    %s27 = sphi 0, %s39
    %s28 = sphi 0, %s35
    %s29 = sphi 0, %s27
    %s30 = sphi 0, %s28
    %s31 = sphi 0, %s29
    %s32 = sphi 0, %s30
    %s42 = sphi 0, %s44
    %s45 = sphi 0, %s42
    %s46 = sphi 0, %s45
    %s62 = sphi 0, %s46
    %s68 = sphi 0, %s70
    %s71 = sphi 0, %s68
    %s72 = sphi 0, %s71
    %s88 = sphi 0, %s72
    %s94 = sphi 0, %s96
    %s97 = sphi 0, %s94
    %s98 = sphi 0, %s97
    %s114 = sphi 0, %s98
    %s120 = sphi 0, %s122
    %s123 = sphi 0, %s120
    %s124 = sphi 0, %s123
    %s140 = sphi 0, %s124
    %s146 = sphi 0, %s148
    %s149 = sphi 0, %s146
    %s150 = sphi 0, %s149
    %s166 = sphi 0, %s150
    %s172 = sphi 0, %s174
    %s175 = sphi 0, %s172
    %s176 = sphi 0, %s175
    %s192 = sphi 0, %s176
    %s198 = sphi 0, %s200
    %s201 = sphi 0, %s198
    %s202 = sphi 0, %s201
    %s218 = sphi 0, %s202
    %s224 = sphi 0, %s226
    %s227 = sphi 0, %s224
    %s228 = sphi 0, %s227
    %s244 = sphi 0, %s228
    %s250 = sphi 0, %s252
    %s253 = sphi 0, %s250
    %s254 = sphi 0, %s253
    %s270 = sphi 0, %s254
    %s276 = sphi 0, %s278
    %s279 = sphi 0, %s276
    %s280 = sphi 0, %s279
    %s296 = sphi 0, %s280
    %s302 = sphi 0, %s304
    %s305 = sphi 0, %s302
    %s306 = sphi 0, %s305
    %s322 = sphi 0, %s306
    %s328 = sphi 0, %s330
    %s331 = sphi 0, %s328
    %s332 = sphi 0, %s331
    %s348 = sphi 0, %s332
    %s354 = sphi 0, %s356
    %s357 = sphi 0, %s354
    %s358 = sphi 0, %s357
    %s374 = sphi 0, %s358
    %s378 = sphi 0, %s378
    %s380 = sphi 0, %s378
    %s381 = sphi 0, %s380
    %s395 = sphi 0, %s381
    %s401 = sphi 0, %s403
    %s404 = sphi 0, %s401
    %s405 = sphi 0, %s404
    %s421 = sphi 0, %s405
  $region4: #{transformer_decoder_fwd.1} parent=0 // loop_header_branch
    %23 = sbr.rel (%p21) target = $region8
  $region5: #{transformer_decoder_fwd.1} parent=0 // loop_body
    %s25 = ssub.s32 %s20, 1
    %s26 = ssub.s32 %s20, 2
    %s33 = sadd.s32 1, %s28
    %p34 = scmp.ge.s32.totalorder %s33, 2
    %s35 = scalar_select %p34, 0, %s33
    %s36 = sadd.s32 1, %s27
    %s37 = scalar_select %p34, %s36, %s27
    %p38 = scmp.ge.s32.totalorder %s37, 2
    %s39 = scalar_select %p38, 0, %s37
    %s40 = ssub.s32 %s27, %s39
    %p41 = scmp.eq.s32.totalorder %s40, 0
    %s43 = sadd.s32 %s42, 1
    %s44 = scalar_select %p41, %s42, %s43
    %p47 = pneg %p41
    %p48 = scmp.eq.s32.totalorder %s20, 3
    %p49 = por %p47, %p48
    %p50 = scmp.ne.s32.totalorder %s42, %s45
    %p51 = scmp.eq.s32.totalorder %s20, 0
    %p52 = por %p50, %p51
    %p53 = scmp.ne.s32.totalorder %s42, %s45
    %p54 = scmp.eq.s32.totalorder %s25, 3
    %p55 = por %p53, %p54
    %p56 = scmp.ne.s32.totalorder %s45, %s46
    %p57 = scmp.eq.s32.totalorder %s25, 0
    %p58 = por %p56, %p57
    %p59 = scmp.ne.s32.totalorder %s45, %s46
    %p60 = scmp.eq.s32.totalorder %s26, 3
    %p61 = por %p59, %p60
    %p63 = scmp.ne.s32.totalorder %s46, %s62
    %p64 = scmp.eq.s32.totalorder %s26, 0
    %p65 = por %p63, %p64
    %s66 = ssub.s32 %s27, %s39
    %p67 = scmp.eq.s32.totalorder %s66, 0
    %s69 = sadd.s32 %s68, 1
    %s70 = scalar_select %p67, %s68, %s69
    %p73 = pneg %p67
    %p74 = scmp.eq.s32.totalorder %s20, 3
    %p75 = por %p73, %p74
    %p76 = scmp.ne.s32.totalorder %s68, %s71
    %p77 = scmp.eq.s32.totalorder %s20, 0
    %p78 = por %p76, %p77
    %p79 = scmp.ne.s32.totalorder %s68, %s71
    %p80 = scmp.eq.s32.totalorder %s25, 3
    %p81 = por %p79, %p80
    %p82 = scmp.ne.s32.totalorder %s71, %s72
    %p83 = scmp.eq.s32.totalorder %s25, 0
    %p84 = por %p82, %p83
    %p85 = scmp.ne.s32.totalorder %s71, %s72
    %p86 = scmp.eq.s32.totalorder %s26, 3
    %p87 = por %p85, %p86
    %p89 = scmp.ne.s32.totalorder %s72, %s88
    %p90 = scmp.eq.s32.totalorder %s26, 0
    %p91 = por %p89, %p90
    %s92 = ssub.s32 %s27, %s39
    %p93 = scmp.eq.s32.totalorder %s92, 0
    %s95 = sadd.s32 %s94, 1
    %s96 = scalar_select %p93, %s94, %s95
    %p99 = pneg %p93
    %p100 = scmp.eq.s32.totalorder %s20, 3
    %p101 = por %p99, %p100
    %p102 = scmp.ne.s32.totalorder %s94, %s97
    %p103 = scmp.eq.s32.totalorder %s20, 0
    %p104 = por %p102, %p103
    %p105 = scmp.ne.s32.totalorder %s94, %s97
    %p106 = scmp.eq.s32.totalorder %s25, 3
    %p107 = por %p105, %p106
    %p108 = scmp.ne.s32.totalorder %s97, %s98
    %p109 = scmp.eq.s32.totalorder %s25, 0
    %p110 = por %p108, %p109
    %p111 = scmp.ne.s32.totalorder %s97, %s98
    %p112 = scmp.eq.s32.totalorder %s26, 3
    %p113 = por %p111, %p112
    %p115 = scmp.ne.s32.totalorder %s98, %s114
    %p116 = scmp.eq.s32.totalorder %s26, 0
    %p117 = por %p115, %p116
    %s118 = ssub.s32 %s27, %s39
    %p119 = scmp.eq.s32.totalorder %s118, 0
    %s121 = sadd.s32 %s120, 1
    %s122 = scalar_select %p119, %s120, %s121
    %p125 = pneg %p119
    %p126 = scmp.eq.s32.totalorder %s20, 3
    %p127 = por %p125, %p126
    %p128 = scmp.ne.s32.totalorder %s120, %s123
    %p129 = scmp.eq.s32.totalorder %s20, 0
    %p130 = por %p128, %p129
    %p131 = scmp.ne.s32.totalorder %s120, %s123
    %p132 = scmp.eq.s32.totalorder %s25, 3
    %p133 = por %p131, %p132
    %p134 = scmp.ne.s32.totalorder %s123, %s124
    %p135 = scmp.eq.s32.totalorder %s25, 0
    %p136 = por %p134, %p135
    %p137 = scmp.ne.s32.totalorder %s123, %s124
    %p138 = scmp.eq.s32.totalorder %s26, 3
    %p139 = por %p137, %p138
    %p141 = scmp.ne.s32.totalorder %s124, %s140
    %p142 = scmp.eq.s32.totalorder %s26, 0
    %p143 = por %p141, %p142
    %s144 = ssub.s32 %s28, %s35
    %p145 = scmp.eq.s32.totalorder %s144, 0
    %s147 = sadd.s32 %s146, 1
    %s148 = scalar_select %p145, %s146, %s147
    %p151 = pneg %p145
    %p152 = scmp.eq.s32.totalorder %s20, 3
    %p153 = por %p151, %p152
    %p154 = scmp.ne.s32.totalorder %s146, %s149
    %p155 = scmp.eq.s32.totalorder %s20, 0
    %p156 = por %p154, %p155
    %p157 = scmp.ne.s32.totalorder %s146, %s149
    %p158 = scmp.eq.s32.totalorder %s25, 3
    %p159 = por %p157, %p158
    %p160 = scmp.ne.s32.totalorder %s149, %s150
    %p161 = scmp.eq.s32.totalorder %s25, 0
    %p162 = por %p160, %p161
    %p163 = scmp.ne.s32.totalorder %s149, %s150
    %p164 = scmp.eq.s32.totalorder %s26, 3
    %p165 = por %p163, %p164
    %p167 = scmp.ne.s32.totalorder %s150, %s166
    %p168 = scmp.eq.s32.totalorder %s26, 0
    %p169 = por %p167, %p168
    %s170 = ssub.s32 %s28, %s35
    %p171 = scmp.eq.s32.totalorder %s170, 0
    %s173 = sadd.s32 %s172, 1
    %s174 = scalar_select %p171, %s172, %s173
    %p177 = pneg %p171
    %p178 = scmp.eq.s32.totalorder %s20, 3
    %p179 = por %p177, %p178
    %p180 = scmp.ne.s32.totalorder %s172, %s175
    %p181 = scmp.eq.s32.totalorder %s20, 0
    %p182 = por %p180, %p181
    %p183 = scmp.ne.s32.totalorder %s172, %s175
    %p184 = scmp.eq.s32.totalorder %s25, 3
    %p185 = por %p183, %p184
    %p186 = scmp.ne.s32.totalorder %s175, %s176
    %p187 = scmp.eq.s32.totalorder %s25, 0
    %p188 = por %p186, %p187
    %p189 = scmp.ne.s32.totalorder %s175, %s176
    %p190 = scmp.eq.s32.totalorder %s26, 3
    %p191 = por %p189, %p190
    %p193 = scmp.ne.s32.totalorder %s176, %s192
    %p194 = scmp.eq.s32.totalorder %s26, 0
    %p195 = por %p193, %p194
    %s196 = ssub.s32 %s28, %s35
    %p197 = scmp.eq.s32.totalorder %s196, 0
    %s199 = sadd.s32 %s198, 1
    %s200 = scalar_select %p197, %s198, %s199
    %p203 = pneg %p197
    %p204 = scmp.eq.s32.totalorder %s20, 3
    %p205 = por %p203, %p204
    %p206 = scmp.ne.s32.totalorder %s198, %s201
    %p207 = scmp.eq.s32.totalorder %s20, 0
    %p208 = por %p206, %p207
    %p209 = scmp.ne.s32.totalorder %s198, %s201
    %p210 = scmp.eq.s32.totalorder %s25, 3
    %p211 = por %p209, %p210
    %p212 = scmp.ne.s32.totalorder %s201, %s202
    %p213 = scmp.eq.s32.totalorder %s25, 0
    %p214 = por %p212, %p213
    %p215 = scmp.ne.s32.totalorder %s201, %s202
    %p216 = scmp.eq.s32.totalorder %s26, 3
    %p217 = por %p215, %p216
    %p219 = scmp.ne.s32.totalorder %s202, %s218
    %p220 = scmp.eq.s32.totalorder %s26, 0
    %p221 = por %p219, %p220
    %s222 = ssub.s32 %s28, %s35
    %p223 = scmp.eq.s32.totalorder %s222, 0
    %s225 = sadd.s32 %s224, 1
    %s226 = scalar_select %p223, %s224, %s225
    %p229 = pneg %p223
    %p230 = scmp.eq.s32.totalorder %s20, 3
    %p231 = por %p229, %p230
    %p232 = scmp.ne.s32.totalorder %s224, %s227
    %p233 = scmp.eq.s32.totalorder %s20, 0
    %p234 = por %p232, %p233
    %p235 = scmp.ne.s32.totalorder %s224, %s227
    %p236 = scmp.eq.s32.totalorder %s25, 3
    %p237 = por %p235, %p236
    %p238 = scmp.ne.s32.totalorder %s227, %s228
    %p239 = scmp.eq.s32.totalorder %s25, 0
    %p240 = por %p238, %p239
    %p241 = scmp.ne.s32.totalorder %s227, %s228
    %p242 = scmp.eq.s32.totalorder %s26, 3
    %p243 = por %p241, %p242
    %p245 = scmp.ne.s32.totalorder %s228, %s244
    %p246 = scmp.eq.s32.totalorder %s26, 0
    %p247 = por %p245, %p246
    %s248 = ssub.s32 %s28, %s35
    %p249 = scmp.eq.s32.totalorder %s248, 0
    %s251 = sadd.s32 %s250, 1
    %s252 = scalar_select %p249, %s250, %s251
    %p255 = pneg %p249
    %p256 = scmp.eq.s32.totalorder %s20, 3
    %p257 = por %p255, %p256
    %p258 = scmp.ne.s32.totalorder %s250, %s253
    %p259 = scmp.eq.s32.totalorder %s20, 0
    %p260 = por %p258, %p259
    %p261 = scmp.ne.s32.totalorder %s250, %s253
    %p262 = scmp.eq.s32.totalorder %s25, 3
    %p263 = por %p261, %p262
    %p264 = scmp.ne.s32.totalorder %s253, %s254
    %p265 = scmp.eq.s32.totalorder %s25, 0
    %p266 = por %p264, %p265
    %p267 = scmp.ne.s32.totalorder %s253, %s254
    %p268 = scmp.eq.s32.totalorder %s26, 3
    %p269 = por %p267, %p268
    %p271 = scmp.ne.s32.totalorder %s254, %s270
    %p272 = scmp.eq.s32.totalorder %s26, 0
    %p273 = por %p271, %p272
    %s274 = ssub.s32 %s28, %s35
    %p275 = scmp.eq.s32.totalorder %s274, 0
    %s277 = sadd.s32 %s276, 1
    %s278 = scalar_select %p275, %s276, %s277
    %p281 = pneg %p275
    %p282 = scmp.eq.s32.totalorder %s20, 3
    %p283 = por %p281, %p282
    %p284 = scmp.ne.s32.totalorder %s276, %s279
    %p285 = scmp.eq.s32.totalorder %s20, 0
    %p286 = por %p284, %p285
    %p287 = scmp.ne.s32.totalorder %s276, %s279
    %p288 = scmp.eq.s32.totalorder %s25, 3
    %p289 = por %p287, %p288
    %p290 = scmp.ne.s32.totalorder %s279, %s280
    %p291 = scmp.eq.s32.totalorder %s25, 0
    %p292 = por %p290, %p291
    %p293 = scmp.ne.s32.totalorder %s279, %s280
    %p294 = scmp.eq.s32.totalorder %s26, 3
    %p295 = por %p293, %p294
    %p297 = scmp.ne.s32.totalorder %s280, %s296
    %p298 = scmp.eq.s32.totalorder %s26, 0
    %p299 = por %p297, %p298
    %s300 = ssub.s32 %s28, %s35
    %p301 = scmp.eq.s32.totalorder %s300, 0
    %s303 = sadd.s32 %s302, 1
    %s304 = scalar_select %p301, %s302, %s303
    %p307 = pneg %p301
    %p308 = scmp.eq.s32.totalorder %s20, 3
    %p309 = por %p307, %p308
    %p310 = scmp.ne.s32.totalorder %s302, %s305
    %p311 = scmp.eq.s32.totalorder %s20, 0
    %p312 = por %p310, %p311
    %p313 = scmp.ne.s32.totalorder %s302, %s305
    %p314 = scmp.eq.s32.totalorder %s25, 3
    %p315 = por %p313, %p314
    %p316 = scmp.ne.s32.totalorder %s305, %s306
    %p317 = scmp.eq.s32.totalorder %s25, 0
    %p318 = por %p316, %p317
    %p319 = scmp.ne.s32.totalorder %s305, %s306
    %p320 = scmp.eq.s32.totalorder %s26, 3
    %p321 = por %p319, %p320
    %p323 = scmp.ne.s32.totalorder %s306, %s322
    %p324 = scmp.eq.s32.totalorder %s26, 0
    %p325 = por %p323, %p324
    %s326 = ssub.s32 %s28, %s35
    %p327 = scmp.eq.s32.totalorder %s326, 0
    %s329 = sadd.s32 %s328, 1
    %s330 = scalar_select %p327, %s328, %s329
    %p333 = pneg %p327
    %p334 = scmp.eq.s32.totalorder %s20, 3
    %p335 = por %p333, %p334
    %p336 = scmp.ne.s32.totalorder %s328, %s331
    %p337 = scmp.eq.s32.totalorder %s20, 0
    %p338 = por %p336, %p337
    %p339 = scmp.ne.s32.totalorder %s328, %s331
    %p340 = scmp.eq.s32.totalorder %s25, 3
    %p341 = por %p339, %p340
    %p342 = scmp.ne.s32.totalorder %s331, %s332
    %p343 = scmp.eq.s32.totalorder %s25, 0
    %p344 = por %p342, %p343
    %p345 = scmp.ne.s32.totalorder %s331, %s332
    %p346 = scmp.eq.s32.totalorder %s26, 3
    %p347 = por %p345, %p346
    %p349 = scmp.ne.s32.totalorder %s332, %s348
    %p350 = scmp.eq.s32.totalorder %s26, 0
    %p351 = por %p349, %p350
    %s352 = ssub.s32 %s28, %s35
    %p353 = scmp.eq.s32.totalorder %s352, 0
    %s355 = sadd.s32 %s354, 1
    %s356 = scalar_select %p353, %s354, %s355
    %p359 = pneg %p353
    %p360 = scmp.eq.s32.totalorder %s20, 3
    %p361 = por %p359, %p360
    %p362 = scmp.ne.s32.totalorder %s354, %s357
    %p363 = scmp.eq.s32.totalorder %s20, 0
    %p364 = por %p362, %p363
    %p365 = scmp.ne.s32.totalorder %s354, %s357
    %p366 = scmp.eq.s32.totalorder %s25, 3
    %p367 = por %p365, %p366
    %p368 = scmp.ne.s32.totalorder %s357, %s358
    %p369 = scmp.eq.s32.totalorder %s25, 0
    %p370 = por %p368, %p369
    %p371 = scmp.ne.s32.totalorder %s357, %s358
    %p372 = scmp.eq.s32.totalorder %s26, 3
    %p373 = por %p371, %p372
    %p375 = scmp.ne.s32.totalorder %s358, %s374
    %p376 = scmp.eq.s32.totalorder %s26, 0
    %p377 = por %p375, %p376
    %s379 = sadd.s32 %s378, 1
    %p382 = scmp.eq.s32.totalorder %s20, 3
    %p383 = scmp.ne.s32.totalorder %s378, %s380
    %p384 = scmp.eq.s32.totalorder %s20, 0
    %p385 = por %p383, %p384
    %p386 = scmp.ne.s32.totalorder %s378, %s380
    %p387 = scmp.eq.s32.totalorder %s25, 3
    %p388 = por %p386, %p387
    %p389 = scmp.ne.s32.totalorder %s380, %s381
    %p390 = scmp.eq.s32.totalorder %s25, 0
    %p391 = por %p389, %p390
    %p392 = scmp.ne.s32.totalorder %s380, %s381
    %p393 = scmp.eq.s32.totalorder %s26, 3
    %p394 = por %p392, %p393
    %p396 = scmp.ne.s32.totalorder %s381, %s395
    %p397 = scmp.eq.s32.totalorder %s26, 0
    %p398 = por %p396, %p397
    %s399 = ssub.s32 %s27, %s39
    %p400 = scmp.eq.s32.totalorder %s399, 0
    %s402 = sadd.s32 %s401, 1
    %s403 = scalar_select %p400, %s401, %s402
    %p406 = pneg %p400
    %p407 = scmp.eq.s32.totalorder %s20, 3
    %p408 = por %p406, %p407
    %p409 = scmp.ne.s32.totalorder %s401, %s404
    %p410 = scmp.eq.s32.totalorder %s20, 0
    %p411 = por %p409, %p410
    %p412 = scmp.ne.s32.totalorder %s401, %s404
    %p413 = scmp.eq.s32.totalorder %s25, 3
    %p414 = por %p412, %p413
    %p415 = scmp.ne.s32.totalorder %s404, %s405
    %p416 = scmp.eq.s32.totalorder %s25, 0
    %p417 = por %p415, %p416
    %p418 = scmp.ne.s32.totalorder %s404, %s405
    %p419 = scmp.eq.s32.totalorder %s26, 3
    %p420 = por %p418, %p419
    %p422 = scmp.ne.s32.totalorder %s405, %s421
    %p423 = scmp.eq.s32.totalorder %s26, 0
    %p424 = por %p422, %p423
    %p425 = scmp.le.s32.totalorder 1, %s20
    %p426 = scmp.lt.s32.totalorder %s20, 5
    %p427 = pnand %p425, %p426
    %p428 = pneg %p427
    // Predicated region
    $region9: #{transformer_decoder_fwd.1} parent=5 // pred_check
      _
    $region10: #{transformer_decoder_fwd.1} parent=5 // pred_check_branch
      %430 = sbr.rel (%p427) target = $region12
    $region11: #{transformer_decoder_fwd.1} parent=5 // pred_region
      %s431 = ssub.s32 %s20, 1
      // Predicated region
      $region13: #{transformer_decoder_fwd.1} parent=11 // pred_check
        %p432 = pneg %p391
      $region14: #{transformer_decoder_fwd.1} parent=11 // pred_check_branch
        %434 = sbr.rel (%p432) target = $region16
      $region15: #{transformer_decoder_fwd.1} parent=11 // pred_region
        _
      $region16: #{transformer_decoder_fwd.1} parent=11 // pred_fallthru
        _
    $region12: #{transformer_decoder_fwd.1} parent=5 // pred_fallthru
      _
    %p435 = scmp.lt.s32.totalorder %s20, 4
    // Predicated region
    $region17: #{transformer_decoder_fwd.1} parent=5 // pred_check
      %p436 = pneg %p435
    $region18: #{transformer_decoder_fwd.1} parent=5 // pred_check_branch
      %438 = sbr.rel (%p436) target = $region20
    $region19: #{transformer_decoder_fwd.1} parent=5 // pred_region
      // Predicated region
      $region21: #{transformer_decoder_fwd.1} parent=19 // pred_check
        %p439 = pneg %p52
      $region22: #{transformer_decoder_fwd.1} parent=19 // pred_check_branch
        %441 = sbr.rel (%p439) target = $region24
      $region23: #{transformer_decoder_fwd.1} parent=19 // pred_region
        %p442 = scmp.lt.s32.totalorder %s27, 1
        %s443 = scalar_select %p442, %s27, 1
        %s444 = smul.addr %s443, 8
        %s445 = scalar_lea.vmem %s0, %s444
      $region24: #{transformer_decoder_fwd.1} parent=19 // pred_fallthru
        _
      // Predicated region
      $region25: #{transformer_decoder_fwd.1} parent=19 // pred_check
        %p446 = pneg %p78
      $region26: #{transformer_decoder_fwd.1} parent=19 // pred_check_branch
        %448 = sbr.rel (%p446) target = $region28
      $region27: #{transformer_decoder_fwd.1} parent=19 // pred_region
        %p449 = scmp.lt.s32.totalorder %s27, 1
        %s450 = scalar_select %p449, %s27, 1
        %s451 = smul.addr %s450, 2
        %s452 = smul.addr %s451, 8
        %s453 = scalar_lea.vmem %s1, %s452
      $region28: #{transformer_decoder_fwd.1} parent=19 // pred_fallthru
        _
      // Predicated region
      $region29: #{transformer_decoder_fwd.1} parent=19 // pred_check
        %p454 = pneg %p104
      $region30: #{transformer_decoder_fwd.1} parent=19 // pred_check_branch
        %456 = sbr.rel (%p454) target = $region32
      $region31: #{transformer_decoder_fwd.1} parent=19 // pred_region
        %p457 = scmp.lt.s32.totalorder %s27, 1
        %s458 = scalar_select %p457, %s27, 1
        %s459 = smul.addr %s458, 2
        %s460 = smul.addr %s459, 8
        %s461 = scalar_lea.vmem %s2, %s460
      $region32: #{transformer_decoder_fwd.1} parent=19 // pred_fallthru
        _
      // Predicated region
      $region33: #{transformer_decoder_fwd.1} parent=19 // pred_check
        %p462 = pneg %p130
      $region34: #{transformer_decoder_fwd.1} parent=19 // pred_check_branch
        %464 = sbr.rel (%p462) target = $region36
      $region35: #{transformer_decoder_fwd.1} parent=19 // pred_region
        %p465 = scmp.lt.s32.totalorder %s27, 1
        %s466 = scalar_select %p465, %s27, 1
        %s467 = smul.addr %s466, 8
        %s468 = scalar_lea.vmem %s3, %s467
      $region36: #{transformer_decoder_fwd.1} parent=19 // pred_fallthru
        _
      // Predicated region
      $region37: #{transformer_decoder_fwd.1} parent=19 // pred_check
        %p469 = pneg %p156
      $region38: #{transformer_decoder_fwd.1} parent=19 // pred_check_branch
        %471 = sbr.rel (%p469) target = $region40
      $region39: #{transformer_decoder_fwd.1} parent=19 // pred_region
        %p472 = scmp.lt.s32.totalorder %s28, 1
        %s473 = scalar_select %p472, %s28, 1
        %s474 = smul.addr %s473, 4
        %s475 = smul.addr %s474, 4
        %s476 = scalar_lea.vmem %s4, %s475
      $region40: #{transformer_decoder_fwd.1} parent=19 // pred_fallthru
        _
      // Predicated region
      $region41: #{transformer_decoder_fwd.1} parent=19 // pred_check
        %p477 = pneg %p182
      $region42: #{transformer_decoder_fwd.1} parent=19 // pred_check_branch
        %479 = sbr.rel (%p477) target = $region44
      $region43: #{transformer_decoder_fwd.1} parent=19 // pred_region
        %p480 = scmp.lt.s32.totalorder %s28, 1
        %s481 = scalar_select %p480, %s28, 1
        %s482 = scalar_lea.vmem %s5, %s481
      $region44: #{transformer_decoder_fwd.1} parent=19 // pred_fallthru
        _
      // Predicated region
      $region45: #{transformer_decoder_fwd.1} parent=19 // pred_check
        %p483 = pneg %p208
      $region46: #{transformer_decoder_fwd.1} parent=19 // pred_check_branch
        %485 = sbr.rel (%p483) target = $region48
      $region47: #{transformer_decoder_fwd.1} parent=19 // pred_region
        %p486 = scmp.lt.s32.totalorder %s28, 1
        %s487 = scalar_select %p486, %s28, 1
        %s488 = smul.addr %s487, 4
        %s489 = smul.addr %s488, 4
        %s490 = scalar_lea.vmem %s6, %s489
      $region48: #{transformer_decoder_fwd.1} parent=19 // pred_fallthru
        _
      // Predicated region
      $region49: #{transformer_decoder_fwd.1} parent=19 // pred_check
        %p491 = pneg %p234
      $region50: #{transformer_decoder_fwd.1} parent=19 // pred_check_branch
        %493 = sbr.rel (%p491) target = $region52
      $region51: #{transformer_decoder_fwd.1} parent=19 // pred_region
        %p494 = scmp.lt.s32.totalorder %s28, 1
        %s495 = scalar_select %p494, %s28, 1
        %s496 = scalar_lea.vmem %s7, %s495
      $region52: #{transformer_decoder_fwd.1} parent=19 // pred_fallthru
        _
      // Predicated region
      $region53: #{transformer_decoder_fwd.1} parent=19 // pred_check
        %p497 = pneg %p260
      $region54: #{transformer_decoder_fwd.1} parent=19 // pred_check_branch
        %499 = sbr.rel (%p497) target = $region56
      $region55: #{transformer_decoder_fwd.1} parent=19 // pred_region
        %p500 = scmp.lt.s32.totalorder %s28, 1
        %s501 = scalar_select %p500, %s28, 1
        %s502 = smul.addr %s501, 4
        %s503 = smul.addr %s502, 4
        %s504 = scalar_lea.vmem %s8, %s503
      $region56: #{transformer_decoder_fwd.1} parent=19 // pred_fallthru
        _
      // Predicated region
      $region57: #{transformer_decoder_fwd.1} parent=19 // pred_check
        %p505 = pneg %p286
      $region58: #{transformer_decoder_fwd.1} parent=19 // pred_check_branch
        %507 = sbr.rel (%p505) target = $region60
      $region59: #{transformer_decoder_fwd.1} parent=19 // pred_region
        %p508 = scmp.lt.s32.totalorder %s28, 1
        %s509 = scalar_select %p508, %s28, 1
        %s510 = scalar_lea.vmem %s9, %s509
      $region60: #{transformer_decoder_fwd.1} parent=19 // pred_fallthru
        _
      // Predicated region
      $region61: #{transformer_decoder_fwd.1} parent=19 // pred_check
        %p511 = pneg %p312
      $region62: #{transformer_decoder_fwd.1} parent=19 // pred_check_branch
        %513 = sbr.rel (%p511) target = $region64
      $region63: #{transformer_decoder_fwd.1} parent=19 // pred_region
        %p514 = scmp.lt.s32.totalorder %s28, 1
        %s515 = scalar_select %p514, %s28, 1
        %s516 = smul.addr %s515, 8
        %s517 = smul.addr %s516, 4
        %s518 = scalar_lea.vmem %s10, %s517
      $region64: #{transformer_decoder_fwd.1} parent=19 // pred_fallthru
        _
      // Predicated region
      $region65: #{transformer_decoder_fwd.1} parent=19 // pred_check
        %p519 = pneg %p338
      $region66: #{transformer_decoder_fwd.1} parent=19 // pred_check_branch
        %521 = sbr.rel (%p519) target = $region68
      $region67: #{transformer_decoder_fwd.1} parent=19 // pred_region
        %p522 = scmp.lt.s32.totalorder %s28, 1
        %s523 = scalar_select %p522, %s28, 1
        %s524 = scalar_lea.vmem %s11, %s523
      $region68: #{transformer_decoder_fwd.1} parent=19 // pred_fallthru
        _
      // Predicated region
      $region69: #{transformer_decoder_fwd.1} parent=19 // pred_check
        %p525 = pneg %p364
      $region70: #{transformer_decoder_fwd.1} parent=19 // pred_check_branch
        %527 = sbr.rel (%p525) target = $region72
      $region71: #{transformer_decoder_fwd.1} parent=19 // pred_region
        %p528 = scmp.lt.s32.totalorder %s28, 1
        %s529 = scalar_select %p528, %s28, 1
        %s530 = smul.addr %s529, 8
        %s531 = scalar_lea.vmem %s12, %s530
      $region72: #{transformer_decoder_fwd.1} parent=19 // pred_fallthru
        _
    $region20: #{transformer_decoder_fwd.1} parent=5 // pred_fallthru
      _
    %p532 = scmp.le.s32.totalorder 1, %s20
    %p533 = scmp.lt.s32.totalorder %s20, 5
    %p534 = pnand %p532, %p533
    %p535 = pneg %p534
    // Predicated region
    $region73: #{transformer_decoder_fwd.1} parent=5 // pred_check
      _
    $region74: #{transformer_decoder_fwd.1} parent=5 // pred_check_branch
      %537 = sbr.rel (%p534) target = $region76
    $region75: #{transformer_decoder_fwd.1} parent=5 // pred_region
      %s538 = ssub.s32 %s20, 1
      %p539 = scmp.lt.s32.totalorder %s29, 1
      %s540 = scalar_select %p539, %s29, 1
      %s541 = smul.addr %s540, 8
      %s542 = scalar_lea.vmem %s0, %s541
      %p543 = pneg %p58
      %p544 = pneg %p55
      %p545 = scmp.lt.s32.totalorder %s29, 1
      %s546 = scalar_select %p545, %s29, 1
      %s547 = smul.addr %s546, 2
      %s548 = smul.addr %s547, 8
      %s549 = scalar_lea.vmem %s1, %s548
      %p550 = pneg %p84
      %p551 = pneg %p81
      %p552 = scmp.lt.s32.totalorder %s29, 1
      %s553 = scalar_select %p552, %s29, 1
      %s554 = smul.addr %s553, 2
      %s555 = smul.addr %s554, 8
      %s556 = scalar_lea.vmem %s2, %s555
      %p557 = pneg %p110
      %p558 = pneg %p107
      %p559 = scmp.lt.s32.totalorder %s29, 1
      %s560 = scalar_select %p559, %s29, 1
      %s561 = smul.addr %s560, 8
      %s562 = scalar_lea.vmem %s3, %s561
      %p563 = pneg %p136
      %p564 = pneg %p133
      %p565 = scmp.lt.s32.totalorder %s30, 1
      %s566 = scalar_select %p565, %s30, 1
      %s567 = smul.addr %s566, 4
      %s568 = smul.addr %s567, 4
      %s569 = scalar_lea.vmem %s4, %s568
      %p570 = pneg %p162
      %p571 = pneg %p159
      %p572 = scmp.lt.s32.totalorder %s30, 1
      %s573 = scalar_select %p572, %s30, 1
      %s574 = scalar_lea.vmem %s5, %s573
      %p575 = pneg %p188
      %p576 = pneg %p185
      %p577 = scmp.lt.s32.totalorder %s30, 1
      %s578 = scalar_select %p577, %s30, 1
      %s579 = smul.addr %s578, 4
      %s580 = smul.addr %s579, 4
      %s581 = scalar_lea.vmem %s6, %s580
      %p582 = pneg %p214
      %p583 = pneg %p211
      %p584 = scmp.lt.s32.totalorder %s30, 1
      %s585 = scalar_select %p584, %s30, 1
      %s586 = scalar_lea.vmem %s7, %s585
      %p587 = pneg %p240
      %p588 = pneg %p237
      %p589 = scmp.lt.s32.totalorder %s30, 1
      %s590 = scalar_select %p589, %s30, 1
      %s591 = smul.addr %s590, 4
      %s592 = smul.addr %s591, 4
      %s593 = scalar_lea.vmem %s8, %s592
      %p594 = pneg %p266
      %p595 = pneg %p263
      %p596 = scmp.lt.s32.totalorder %s30, 1
      %s597 = scalar_select %p596, %s30, 1
      %s598 = scalar_lea.vmem %s9, %s597
      %p599 = pneg %p292
      %p600 = pneg %p289
      %p601 = scmp.lt.s32.totalorder %s30, 1
      %s602 = scalar_select %p601, %s30, 1
      %s603 = smul.addr %s602, 8
      %s604 = smul.addr %s603, 4
      %s605 = scalar_lea.vmem %s10, %s604
      %p606 = pneg %p318
      %p607 = pneg %p315
      %p608 = scmp.lt.s32.totalorder %s30, 1
      %s609 = scalar_select %p608, %s30, 1
      %s610 = scalar_lea.vmem %s11, %s609
      %p611 = pneg %p344
      %p612 = pneg %p341
      %p613 = scmp.lt.s32.totalorder %s30, 1
      %s614 = scalar_select %p613, %s30, 1
      %s615 = smul.addr %s614, 8
      %s616 = scalar_lea.vmem %s12, %s615
      %p617 = pneg %p370
      %p618 = pneg %p367
      %p619 = pneg %p391
      %p620 = pneg %p388
      %p621 = pneg %p417
      %p622 = pneg %p414
      %p623 = scmp.lt.s32.totalorder %s29, 1
      %s624 = scalar_select %p623, %s29, 1
      %s625 = smul.addr %s624, 8
      %s626 = scalar_lea.vmem %s14, %s625
      %p627 = scmp.lt.s32.totalorder %s29, 1
      %s628 = scalar_select %p627, %s29, 1
      %s629 = smul.addr %s628, 8
      %s630 = scalar_lea.vmem %s0, %s629
      %p631 = scmp.lt.s32.totalorder %s29, 1
      %s632 = scalar_select %p631, %s29, 1
      %s633 = smul.addr %s632, 2
      %s634 = smul.addr %s633, 8
      %s635 = scalar_lea.vmem %s1, %s634
      %p636 = scmp.lt.s32.totalorder %s29, 1
      %s637 = scalar_select %p636, %s29, 1
      %s638 = smul.addr %s637, 2
      %s639 = smul.addr %s638, 8
      %s640 = scalar_lea.vmem %s2, %s639
      %p641 = scmp.lt.s32.totalorder %s29, 1
      %s642 = scalar_select %p641, %s29, 1
      %s643 = smul.addr %s642, 8
      %s644 = scalar_lea.vmem %s3, %s643
      %p645 = scmp.lt.s32.totalorder %s30, 1
      %s646 = scalar_select %p645, %s30, 1
      %s647 = smul.addr %s646, 4
      %s648 = smul.addr %s647, 4
      %s649 = scalar_lea.vmem %s4, %s648
      %p650 = scmp.lt.s32.totalorder %s30, 1
      %s651 = scalar_select %p650, %s30, 1
      %s652 = scalar_lea.vmem %s5, %s651
      %p653 = scmp.lt.s32.totalorder %s30, 1
      %s654 = scalar_select %p653, %s30, 1
      %s655 = smul.addr %s654, 4
      %s656 = smul.addr %s655, 4
      %s657 = scalar_lea.vmem %s6, %s656
      %p658 = scmp.lt.s32.totalorder %s30, 1
      %s659 = scalar_select %p658, %s30, 1
      %s660 = scalar_lea.vmem %s7, %s659
      %p661 = scmp.lt.s32.totalorder %s30, 1
      %s662 = scalar_select %p661, %s30, 1
      %s663 = smul.addr %s662, 4
      %s664 = smul.addr %s663, 4
      %s665 = scalar_lea.vmem %s8, %s664
      %p666 = scmp.lt.s32.totalorder %s30, 1
      %s667 = scalar_select %p666, %s30, 1
      %s668 = scalar_lea.vmem %s9, %s667
      %p669 = scmp.lt.s32.totalorder %s30, 1
      %s670 = scalar_select %p669, %s30, 1
      %s671 = smul.addr %s670, 8
      %s672 = smul.addr %s671, 4
      %s673 = scalar_lea.vmem %s10, %s672
      %p674 = scmp.lt.s32.totalorder %s30, 1
      %s675 = scalar_select %p674, %s30, 1
      %s676 = scalar_lea.vmem %s11, %s675
      %p677 = scmp.lt.s32.totalorder %s30, 1
      %s678 = scalar_select %p677, %s30, 1
      %s679 = smul.addr %s678, 8
      %s680 = scalar_lea.vmem %s12, %s679
      %p681 = scmp.lt.s32.totalorder %s29, 1
      %s682 = scalar_select %p681, %s29, 1
      %s683 = smul.addr %s682, 8
      %s684 = scalar_lea.vmem %s14, %s683
      %p685 = scmp.eq.s32.totalorder %s30, 0
      // Predicated region
      $region77: #{transformer_decoder_fwd.1} parent=75 // pred_check
        %p686 = pneg %p685
      $region78: #{transformer_decoder_fwd.1} parent=75 // pred_check_branch
        %688 = sbr.rel (%p686) target = $region80
      $region79: #{transformer_decoder_fwd.1} parent=75 // pred_region
        %v689 = vld [vmem:[%s630] sm:$0xff]
        %vm690 = vcmask 261120
        %691 = vst.msk [vmem:[%s684] sm:$0xff] %vm690, %v689
      $region80: #{transformer_decoder_fwd.1} parent=75 // pred_fallthru
        _
      %v692 = vld [vmem:[%s684] sm:$0xff]
      %v693 = vld [vmem:[%s635] sm:$0xff]
      %v694 = vld [vmem:[%s635 + $0x8] sm:$0xff]
      %v695 = vld [vmem:[%s640] sm:$0xff]
      %v696 = vld [vmem:[%s640 + $0x8] sm:$0xff]
      %v697 = vld [vmem:[%s644] sm:$0xff]
      %v698 = vld [vmem:[%s649] sm:$0xf]
      %v699 = vld [vmem:[%s649 + $0x4] sm:$0xf]
      %v700 = vld [vmem:[%s649 + $0x8] sm:$0xf]
      %v701 = vld [vmem:[%s649 + $0xc] sm:$0xf]
      %v702 = vunpack.c.l.bf16 %v698
      %v703 = vunpack.c.l.bf16 %v699
      %v704 = vunpack.c.l.bf16 %v700
      %v705 = vunpack.c.l.bf16 %v701
      %v706 = vld [vmem:[%s657] sm:$0xf]
      %v707 = vld [vmem:[%s657 + $0x4] sm:$0xf]
      %v708 = vld [vmem:[%s657 + $0x8] sm:$0xf]
      %v709 = vld [vmem:[%s657 + $0xc] sm:$0xf]
      %v710 = vunpack.c.l.bf16 %v706
      %v711 = vunpack.c.l.bf16 %v707
      %v712 = vunpack.c.l.bf16 %v708
      %v713 = vunpack.c.l.bf16 %v709
      %v714 = vld [vmem:[%s652] sm:$0x1]
      %v715 = vld [vmem:[%s660] sm:$0x1]
      %v716 = vld [vmem:[%s665] sm:$0xf]
      %v717 = vld [vmem:[%s665 + $0x4] sm:$0xf]
      %v718 = vld [vmem:[%s665 + $0x8] sm:$0xf]
      %v719 = vld [vmem:[%s665 + $0xc] sm:$0xf]
      %v720 = vunpack.c.l.bf16 %v716
      %v721 = vunpack.c.l.bf16 %v717
      %v722 = vunpack.c.l.bf16 %v718
      %v723 = vunpack.c.l.bf16 %v719
      %v724 = vld [vmem:[%s673] sm:$0xf]
      %v725 = vld [vmem:[%s673 + $0x4] sm:$0xf]
      %v726 = vld [vmem:[%s673 + $0x8] sm:$0xf]
      %v727 = vld [vmem:[%s673 + $0xc] sm:$0xf]
      %v728 = vld [vmem:[%s673 + $0x10] sm:$0xf]
      %v729 = vld [vmem:[%s673 + $0x14] sm:$0xf]
      %v730 = vld [vmem:[%s673 + $0x18] sm:$0xf]
      %v731 = vld [vmem:[%s673 + $0x1c] sm:$0xf]
      %v732 = vunpack.c.l.bf16 %v724
      %v733 = vunpack.c.l.bf16 %v725
      %v734 = vunpack.c.l.bf16 %v726
      %v735 = vunpack.c.l.bf16 %v727
      %v736 = vunpack.c.l.bf16 %v728
      %v737 = vunpack.c.l.bf16 %v729
      %v738 = vunpack.c.l.bf16 %v730
      %v739 = vunpack.c.l.bf16 %v731
      %v740 = vld [vmem:[%s668] sm:$0x1]
      %v741 = vld [vmem:[%s676] sm:$0x1]
      %v742 = vld [vmem:[%s680] sm:$0x3f]
      %v743 = vadd.f32 %v692, %v697
      %v745 = vlaneseq
      %v746 = vshrl.u32 %v745, 7
      %v747 = vsub.s32 0, %v746
      %v748 = vrot.slane %v714, %v747
      %vm750 = vcmask 261120
      %v752 = vsel %vm750, %v743, 0
      %754 = vmatprep.subr.mxu0 0.0
      %755 = vmatpush1.msra.mxu0 0.0
      %756 = vmatprep.subr.mxu0 0.0
      %757 = vmatpush1.msra.mxu0 0.0
      %758 = vmatprep.subr.mxu0 0.0
      %759 = vmatpush1.msra.mxu0 0.0
      %760 = vmatprep.subr.mxu0 0.0
      %761 = vmatpush1.msra.mxu0 0.0
      %762 = vmatprep.subr.mxu0 0.0
      %763 = vmatpush1.msra.mxu0 0.0
      %764 = vmatprep.subr.mxu0 0.0
      %765 = vmatpush1.msra.mxu0 0.0
      %766 = vmatprep.subr.mxu0 0.0
      %767 = vmatpush1.msra.mxu0 0.0
      %768 = vmatprep.subr.mxu0 0.0
      %769 = vmatpush1.msra.mxu0 0.0
      %770 = vmatprep.subr.mxu0 0.0
      %771 = vmatpush1.msra.mxu0 0.0
      %772 = vmatprep.subr.mxu0 0.0
      %773 = vmatpush1.msra.mxu0 0.0
      %774 = vmatprep.subr.mxu0 0.0
      %775 = vmatpush1.msra.mxu0 0.0
      %776 = vmatprep.subr.mxu0 0.0
      %777 = vmatpush1.msra.mxu0 0.0
      %778 = vmatprep.subr.mxu0 0.0
      %779 = vmatpush1.msra.mxu0 %v705
      %780 = vmatprep.subr.mxu0 0.0
      %781 = vmatpush1.msra.mxu0 %v704
      %782 = vmatprep.subr.mxu0 0.0
      %783 = vmatpush1.msra.mxu0 %v703
      %784 = vmatprep.subr.mxu0 0.0
      %785 = vmatpush1.msra.mxu0 %v702
      %786 = vmatprep.subr.mxu0 0.0
      %787 = vmatpush2.msra.mxu0 0.0
      %788 = vmatprep.subr.mxu0 0.0
      %789 = vmatpush2.msra.mxu0 0.0
      %790 = vmatprep.subr.mxu0 0.0
      %791 = vmatpush2.msra.mxu0 0.0
      %792 = vmatprep.subr.mxu0 0.0
      %793 = vmatpush2.msra.mxu0 0.0
      %794 = vmatprep.subr.mxu0 0.0
      %795 = vmatpush2.msra.mxu0 0.0
      %796 = vmatprep.subr.mxu0 0.0
      %797 = vmatpush2.msra.mxu0 0.0
      %798 = vmatprep.subr.mxu0 0.0
      %799 = vmatpush2.msra.mxu0 0.0
      %800 = vmatprep.subr.mxu0 0.0
      %801 = vmatpush2.msra.mxu0 0.0
      %802 = vmatprep.subr.mxu0 0.0
      %803 = vmatpush2.msra.mxu0 0.0
      %804 = vmatprep.subr.mxu0 0.0
      %805 = vmatpush2.msra.mxu0 0.0
      %806 = vmatprep.subr.mxu0 0.0
      %807 = vmatpush2.msra.mxu0 0.0
      %808 = vmatprep.subr.mxu0 0.0
      %809 = vmatpush2.msra.mxu0 0.0
      %810 = vmatprep.subr.mxu0 0.0
      %811 = vmatpush2.msra.mxu0 0.0
      %812 = vmatprep.subr.mxu0 0.0
      %813 = vmatpush2.msra.mxu0 0.0
      %814 = vmatprep.subr.mxu0 0.0
      %815 = vmatpush2.msra.mxu0 0.0
      %816 = vmatprep.subr.mxu0 0.0
      %817 = vmatpush2.msra.mxu0 0.0
      %818 = vmatprep.mubr.f32.mxu0 0.0
      %819 = vmatmul.mubr.f32.gmra.mxu0 %v752
      %v820 = vpop.f32.mrf.mxu0
      %v821 = vadd.f32 %v748, %v820
      %v822 = vpop.f32.mrf.mxu0
      %823 = vdwg.mxu0
      %828 = vrot.lane.b32.xlu0 %v702, 64
      %v829 = vpop.permute.xlu0 %828
      %830 = vrot.lane.b32.xlu0 %v703, 64
      %v831 = vpop.permute.xlu0 %830
      %832 = vrot.lane.b32.xlu0 %v704, 64
      %v833 = vpop.permute.xlu0 %832
      %834 = vrot.lane.b32.xlu0 %v705, 64
      %v835 = vpop.permute.xlu0 %834
      %840 = vrot.lane.b32.xlu0 %v748, 64
      %v841 = vpop.permute.xlu0 %840
      %v844 = vsel %vm750, %v692, 0
      %846 = vmatprep.subr.mxu0 0.0
      %847 = vmatpush1.msra.mxu0 0.0
      %848 = vmatprep.subr.mxu0 0.0
      %849 = vmatpush1.msra.mxu0 0.0
      %850 = vmatprep.subr.mxu0 0.0
      %851 = vmatpush1.msra.mxu0 0.0
      %852 = vmatprep.subr.mxu0 0.0
      %853 = vmatpush1.msra.mxu0 0.0
      %854 = vmatprep.subr.mxu0 0.0
      %855 = vmatpush1.msra.mxu0 0.0
      %856 = vmatprep.subr.mxu0 0.0
      %857 = vmatpush1.msra.mxu0 0.0
      %858 = vmatprep.subr.mxu0 0.0
      %859 = vmatpush1.msra.mxu0 0.0
      %860 = vmatprep.subr.mxu0 0.0
      %861 = vmatpush1.msra.mxu0 0.0
      %862 = vmatprep.subr.mxu0 0.0
      %863 = vmatpush1.msra.mxu0 0.0
      %864 = vmatprep.subr.mxu0 0.0
      %865 = vmatpush1.msra.mxu0 0.0
      %866 = vmatprep.subr.mxu0 0.0
      %867 = vmatpush1.msra.mxu0 0.0
      %868 = vmatprep.subr.mxu0 0.0
      %869 = vmatpush1.msra.mxu0 0.0
      %870 = vmatprep.subr.mxu0 0.0
      %871 = vmatpush1.msra.mxu0 %v835
      %872 = vmatprep.subr.mxu0 0.0
      %873 = vmatpush1.msra.mxu0 %v833
      %874 = vmatprep.subr.mxu0 0.0
      %875 = vmatpush1.msra.mxu0 %v831
      %876 = vmatprep.subr.mxu0 0.0
      %877 = vmatpush1.msra.mxu0 %v829
      %878 = vmatprep.subr.mxu0 0.0
      %879 = vmatpush2.msra.mxu0 0.0
      %880 = vmatprep.subr.mxu0 0.0
      %881 = vmatpush2.msra.mxu0 0.0
      %882 = vmatprep.subr.mxu0 0.0
      %883 = vmatpush2.msra.mxu0 0.0
      %884 = vmatprep.subr.mxu0 0.0
      %885 = vmatpush2.msra.mxu0 0.0
      %886 = vmatprep.subr.mxu0 0.0
      %887 = vmatpush2.msra.mxu0 0.0
      %888 = vmatprep.subr.mxu0 0.0
      %889 = vmatpush2.msra.mxu0 0.0
      %890 = vmatprep.subr.mxu0 0.0
      %891 = vmatpush2.msra.mxu0 0.0
      %892 = vmatprep.subr.mxu0 0.0
      %893 = vmatpush2.msra.mxu0 0.0
      %894 = vmatprep.subr.mxu0 0.0
      %895 = vmatpush2.msra.mxu0 0.0
      %896 = vmatprep.subr.mxu0 0.0
      %897 = vmatpush2.msra.mxu0 0.0
      %898 = vmatprep.subr.mxu0 0.0
      %899 = vmatpush2.msra.mxu0 0.0
      %900 = vmatprep.subr.mxu0 0.0
      %901 = vmatpush2.msra.mxu0 0.0
      %902 = vmatprep.subr.mxu0 0.0
      %903 = vmatpush2.msra.mxu0 0.0
      %904 = vmatprep.subr.mxu0 0.0
      %905 = vmatpush2.msra.mxu0 0.0
      %906 = vmatprep.subr.mxu0 0.0
      %907 = vmatpush2.msra.mxu0 0.0
      %908 = vmatprep.subr.mxu0 0.0
      %909 = vmatpush2.msra.mxu0 0.0
      %910 = vmatprep.mubr.f32.mxu0 0.0
      %911 = vmatmul.mubr.f32.gmra.mxu0 %v844
      %v912 = vpop.f32.mrf.mxu0
      %v913 = vadd.f32 %v841, %v912
      %v914 = vpop.f32.mrf.mxu0
      %915 = vdwg.mxu0
      %917 = vrot.lane.b32.xlu0 %v821, 120
      %v918 = vpop.permute.xlu0 %917
      %919 = vrot.lane.b32.xlu0 %v821, 112
      %v920 = vpop.permute.xlu0 %919
      %921 = vrot.lane.b32.xlu0 %v821, 104
      %v922 = vpop.permute.xlu0 %921
      %924 = vrot.lane.b32.xlu0 %v913, 120
      %v925 = vpop.permute.xlu0 %924
      %927 = vrot.lane.b32.xlu0 %v913, 112
      %v928 = vpop.permute.xlu0 %927
      %930 = vrot.lane.b32.xlu0 %v913, 104
      %v931 = vpop.permute.xlu0 %930
      %933 = vrot.lane.b32.xlu0 %v821, 96
      %v934 = vpop.permute.xlu0 %933
      %vm935 = vcmask 64512
      %v936 = vsel %vm935, %v821, 0
      %v938 = vsel %vm935, %v934, 0
      %940 = vmatprep.subr.mxu0 0.0
      %941 = vmatpush1.xpose.msra.mxu0 0.0
      %942 = vmatprep.subr.mxu0 0.0
      %943 = vmatpush1.xpose.msra.mxu0 0.0
      %944 = vmatprep.subr.mxu0 0.0
      %945 = vmatpush1.xpose.msra.mxu0 0.0
      %946 = vmatprep.subr.mxu0 0.0
      %947 = vmatpush1.xpose.msra.mxu0 0.0
      %948 = vmatprep.subr.mxu0 0.0
      %949 = vmatpush1.xpose.msra.mxu0 0.0
      %950 = vmatprep.subr.mxu0 0.0
      %951 = vmatpush1.xpose.msra.mxu0 0.0
      %952 = vmatprep.subr.mxu0 0.0
      %953 = vmatpush1.xpose.msra.mxu0 0.0
      %954 = vmatprep.subr.mxu0 0.0
      %955 = vmatpush1.xpose.msra.mxu0 0.0
      %956 = vmatprep.subr.mxu0 0.0
      %957 = vmatpush1.xpose.msra.mxu0 0.0
      %958 = vmatprep.subr.mxu0 0.0
      %959 = vmatpush1.xpose.msra.mxu0 0.0
      %960 = vmatprep.subr.mxu0 0.0
      %961 = vmatpush1.xpose.msra.mxu0 0.0
      %962 = vmatprep.subr.mxu0 0.0
      %963 = vmatpush1.xpose.msra.mxu0 0.0
      %964 = vmatprep.subr.mxu0 0.0
      %965 = vmatpush1.xpose.msra.mxu0 0.0
      %966 = vmatprep.subr.mxu0 0.0
      %967 = vmatpush1.xpose.msra.mxu0 0.0
      %968 = vmatprep.subr.mxu0 0.0
      %969 = vmatpush1.xpose.msra.mxu0 0.0
      %970 = vmatprep.subr.mxu0 0.0
      %971 = vmatpush1.xpose.msra.mxu0 %v938
      %972 = vmatprep.subr.mxu0 0.0
      %973 = vmatpush2.xpose.msra.mxu0 0.0
      %974 = vmatprep.subr.mxu0 0.0
      %975 = vmatpush2.xpose.msra.mxu0 0.0
      %976 = vmatprep.subr.mxu0 0.0
      %977 = vmatpush2.xpose.msra.mxu0 0.0
      %978 = vmatprep.subr.mxu0 0.0
      %979 = vmatpush2.xpose.msra.mxu0 0.0
      %980 = vmatprep.subr.mxu0 0.0
      %981 = vmatpush2.xpose.msra.mxu0 0.0
      %982 = vmatprep.subr.mxu0 0.0
      %983 = vmatpush2.xpose.msra.mxu0 0.0
      %984 = vmatprep.subr.mxu0 0.0
      %985 = vmatpush2.xpose.msra.mxu0 0.0
      %986 = vmatprep.subr.mxu0 0.0
      %987 = vmatpush2.xpose.msra.mxu0 0.0
      %988 = vmatprep.subr.mxu0 0.0
      %989 = vmatpush2.xpose.msra.mxu0 0.0
      %990 = vmatprep.subr.mxu0 0.0
      %991 = vmatpush2.xpose.msra.mxu0 0.0
      %992 = vmatprep.subr.mxu0 0.0
      %993 = vmatpush2.xpose.msra.mxu0 0.0
      %994 = vmatprep.subr.mxu0 0.0
      %995 = vmatpush2.xpose.msra.mxu0 0.0
      %996 = vmatprep.subr.mxu0 0.0
      %997 = vmatpush2.xpose.msra.mxu0 0.0
      %998 = vmatprep.subr.mxu0 0.0
      %999 = vmatpush2.xpose.msra.mxu0 0.0
      %1000 = vmatprep.subr.mxu0 0.0
      %1001 = vmatpush2.xpose.msra.mxu0 0.0
      %1002 = vmatprep.subr.mxu0 0.0
      %1003 = vmatpush2.xpose.msra.mxu0 0.0
      %1004 = vmatprep.mubr.f32.mxu0 0.0
      %1005 = vmatmul.mubr.f32.gmra.mxu0 %v936
      %v1006 = vpop.f32.mrf.mxu0
      %v1007 = vadd.f32 0.0, %v1006
      %v1008 = vpop.f32.mrf.mxu0
      %1009 = vdwg.mxu0
      %1010 = vrot.lane.b32.xlu0 %v918, 96
      %v1011 = vpop.permute.xlu0 %1010
      %v1012 = vsel %vm935, %v918, 0
      %v1014 = vsel %vm935, %v1011, 0
      %1016 = vmatprep.subr.mxu0 0.0
      %1017 = vmatpush1.xpose.msra.mxu0 0.0
      %1018 = vmatprep.subr.mxu0 0.0
      %1019 = vmatpush1.xpose.msra.mxu0 0.0
      %1020 = vmatprep.subr.mxu0 0.0
      %1021 = vmatpush1.xpose.msra.mxu0 0.0
      %1022 = vmatprep.subr.mxu0 0.0
      %1023 = vmatpush1.xpose.msra.mxu0 0.0
      %1024 = vmatprep.subr.mxu0 0.0
      %1025 = vmatpush1.xpose.msra.mxu0 0.0
      %1026 = vmatprep.subr.mxu0 0.0
      %1027 = vmatpush1.xpose.msra.mxu0 0.0
      %1028 = vmatprep.subr.mxu0 0.0
      %1029 = vmatpush1.xpose.msra.mxu0 0.0
      %1030 = vmatprep.subr.mxu0 0.0
      %1031 = vmatpush1.xpose.msra.mxu0 0.0
      %1032 = vmatprep.subr.mxu0 0.0
      %1033 = vmatpush1.xpose.msra.mxu0 0.0
      %1034 = vmatprep.subr.mxu0 0.0
      %1035 = vmatpush1.xpose.msra.mxu0 0.0
      %1036 = vmatprep.subr.mxu0 0.0
      %1037 = vmatpush1.xpose.msra.mxu0 0.0
      %1038 = vmatprep.subr.mxu0 0.0
      %1039 = vmatpush1.xpose.msra.mxu0 0.0
      %1040 = vmatprep.subr.mxu0 0.0
      %1041 = vmatpush1.xpose.msra.mxu0 0.0
      %1042 = vmatprep.subr.mxu0 0.0
      %1043 = vmatpush1.xpose.msra.mxu0 0.0
      %1044 = vmatprep.subr.mxu0 0.0
      %1045 = vmatpush1.xpose.msra.mxu0 0.0
      %1046 = vmatprep.subr.mxu0 0.0
      %1047 = vmatpush1.xpose.msra.mxu0 %v1014
      %1048 = vmatprep.subr.mxu0 0.0
      %1049 = vmatpush2.xpose.msra.mxu0 0.0
      %1050 = vmatprep.subr.mxu0 0.0
      %1051 = vmatpush2.xpose.msra.mxu0 0.0
      %1052 = vmatprep.subr.mxu0 0.0
      %1053 = vmatpush2.xpose.msra.mxu0 0.0
      %1054 = vmatprep.subr.mxu0 0.0
      %1055 = vmatpush2.xpose.msra.mxu0 0.0
      %1056 = vmatprep.subr.mxu0 0.0
      %1057 = vmatpush2.xpose.msra.mxu0 0.0
      %1058 = vmatprep.subr.mxu0 0.0
      %1059 = vmatpush2.xpose.msra.mxu0 0.0
      %1060 = vmatprep.subr.mxu0 0.0
      %1061 = vmatpush2.xpose.msra.mxu0 0.0
      %1062 = vmatprep.subr.mxu0 0.0
      %1063 = vmatpush2.xpose.msra.mxu0 0.0
      %1064 = vmatprep.subr.mxu0 0.0
      %1065 = vmatpush2.xpose.msra.mxu0 0.0
      %1066 = vmatprep.subr.mxu0 0.0
      %1067 = vmatpush2.xpose.msra.mxu0 0.0
      %1068 = vmatprep.subr.mxu0 0.0
      %1069 = vmatpush2.xpose.msra.mxu0 0.0
      %1070 = vmatprep.subr.mxu0 0.0
      %1071 = vmatpush2.xpose.msra.mxu0 0.0
      %1072 = vmatprep.subr.mxu0 0.0
      %1073 = vmatpush2.xpose.msra.mxu0 0.0
      %1074 = vmatprep.subr.mxu0 0.0
      %1075 = vmatpush2.xpose.msra.mxu0 0.0
      %1076 = vmatprep.subr.mxu0 0.0
      %1077 = vmatpush2.xpose.msra.mxu0 0.0
      %1078 = vmatprep.subr.mxu0 0.0
      %1079 = vmatpush2.xpose.msra.mxu0 0.0
      %1080 = vmatprep.mubr.f32.mxu0 0.0
      %1081 = vmatmul.mubr.f32.gmra.mxu0 %v1012
      %v1082 = vpop.f32.mrf.mxu0
      %v1083 = vadd.f32 0.0, %v1082
      %v1084 = vpop.f32.mrf.mxu0
      %1085 = vdwg.mxu0
      %1086 = vrot.lane.b32.xlu0 %v920, 96
      %v1087 = vpop.permute.xlu0 %1086
      %v1088 = vsel %vm935, %v920, 0
      %v1090 = vsel %vm935, %v1087, 0
      %1092 = vmatprep.subr.mxu0 0.0
      %1093 = vmatpush1.xpose.msra.mxu0 0.0
      %1094 = vmatprep.subr.mxu0 0.0
      %1095 = vmatpush1.xpose.msra.mxu0 0.0
      %1096 = vmatprep.subr.mxu0 0.0
      %1097 = vmatpush1.xpose.msra.mxu0 0.0
      %1098 = vmatprep.subr.mxu0 0.0
      %1099 = vmatpush1.xpose.msra.mxu0 0.0
      %1100 = vmatprep.subr.mxu0 0.0
      %1101 = vmatpush1.xpose.msra.mxu0 0.0
      %1102 = vmatprep.subr.mxu0 0.0
      %1103 = vmatpush1.xpose.msra.mxu0 0.0
      %1104 = vmatprep.subr.mxu0 0.0
      %1105 = vmatpush1.xpose.msra.mxu0 0.0
      %1106 = vmatprep.subr.mxu0 0.0
      %1107 = vmatpush1.xpose.msra.mxu0 0.0
      %1108 = vmatprep.subr.mxu0 0.0
      %1109 = vmatpush1.xpose.msra.mxu0 0.0
      %1110 = vmatprep.subr.mxu0 0.0
      %1111 = vmatpush1.xpose.msra.mxu0 0.0
      %1112 = vmatprep.subr.mxu0 0.0
      %1113 = vmatpush1.xpose.msra.mxu0 0.0
      %1114 = vmatprep.subr.mxu0 0.0
      %1115 = vmatpush1.xpose.msra.mxu0 0.0
      %1116 = vmatprep.subr.mxu0 0.0
      %1117 = vmatpush1.xpose.msra.mxu0 0.0
      %1118 = vmatprep.subr.mxu0 0.0
      %1119 = vmatpush1.xpose.msra.mxu0 0.0
      %1120 = vmatprep.subr.mxu0 0.0
      %1121 = vmatpush1.xpose.msra.mxu0 0.0
      %1122 = vmatprep.subr.mxu0 0.0
      %1123 = vmatpush1.xpose.msra.mxu0 %v1090
      %1124 = vmatprep.subr.mxu0 0.0
      %1125 = vmatpush2.xpose.msra.mxu0 0.0
      %1126 = vmatprep.subr.mxu0 0.0
      %1127 = vmatpush2.xpose.msra.mxu0 0.0
      %1128 = vmatprep.subr.mxu0 0.0
      %1129 = vmatpush2.xpose.msra.mxu0 0.0
      %1130 = vmatprep.subr.mxu0 0.0
      %1131 = vmatpush2.xpose.msra.mxu0 0.0
      %1132 = vmatprep.subr.mxu0 0.0
      %1133 = vmatpush2.xpose.msra.mxu0 0.0
      %1134 = vmatprep.subr.mxu0 0.0
      %1135 = vmatpush2.xpose.msra.mxu0 0.0
      %1136 = vmatprep.subr.mxu0 0.0
      %1137 = vmatpush2.xpose.msra.mxu0 0.0
      %1138 = vmatprep.subr.mxu0 0.0
      %1139 = vmatpush2.xpose.msra.mxu0 0.0
      %1140 = vmatprep.subr.mxu0 0.0
      %1141 = vmatpush2.xpose.msra.mxu0 0.0
      %1142 = vmatprep.subr.mxu0 0.0
      %1143 = vmatpush2.xpose.msra.mxu0 0.0
      %1144 = vmatprep.subr.mxu0 0.0
      %1145 = vmatpush2.xpose.msra.mxu0 0.0
      %1146 = vmatprep.subr.mxu0 0.0
      %1147 = vmatpush2.xpose.msra.mxu0 0.0
      %1148 = vmatprep.subr.mxu0 0.0
      %1149 = vmatpush2.xpose.msra.mxu0 0.0
      %1150 = vmatprep.subr.mxu0 0.0
      %1151 = vmatpush2.xpose.msra.mxu0 0.0
      %1152 = vmatprep.subr.mxu0 0.0
      %1153 = vmatpush2.xpose.msra.mxu0 0.0
      %1154 = vmatprep.subr.mxu0 0.0
      %1155 = vmatpush2.xpose.msra.mxu0 0.0
      %1156 = vmatprep.mubr.f32.mxu0 0.0
      %1157 = vmatmul.mubr.f32.gmra.mxu0 %v1088
      %v1158 = vpop.f32.mrf.mxu0
      %v1159 = vadd.f32 0.0, %v1158
      %v1160 = vpop.f32.mrf.mxu0
      %1161 = vdwg.mxu0
      %1162 = vrot.lane.b32.xlu0 %v922, 96
      %v1163 = vpop.permute.xlu0 %1162
      %v1164 = vsel %vm935, %v922, 0
      %v1166 = vsel %vm935, %v1163, 0
      %1168 = vmatprep.subr.mxu0 0.0
      %1169 = vmatpush1.xpose.msra.mxu0 0.0
      %1170 = vmatprep.subr.mxu0 0.0
      %1171 = vmatpush1.xpose.msra.mxu0 0.0
      %1172 = vmatprep.subr.mxu0 0.0
      %1173 = vmatpush1.xpose.msra.mxu0 0.0
      %1174 = vmatprep.subr.mxu0 0.0
      %1175 = vmatpush1.xpose.msra.mxu0 0.0
      %1176 = vmatprep.subr.mxu0 0.0
      %1177 = vmatpush1.xpose.msra.mxu0 0.0
      %1178 = vmatprep.subr.mxu0 0.0
      %1179 = vmatpush1.xpose.msra.mxu0 0.0
      %1180 = vmatprep.subr.mxu0 0.0
      %1181 = vmatpush1.xpose.msra.mxu0 0.0
      %1182 = vmatprep.subr.mxu0 0.0
      %1183 = vmatpush1.xpose.msra.mxu0 0.0
      %1184 = vmatprep.subr.mxu0 0.0
      %1185 = vmatpush1.xpose.msra.mxu0 0.0
      %1186 = vmatprep.subr.mxu0 0.0
      %1187 = vmatpush1.xpose.msra.mxu0 0.0
      %1188 = vmatprep.subr.mxu0 0.0
      %1189 = vmatpush1.xpose.msra.mxu0 0.0
      %1190 = vmatprep.subr.mxu0 0.0
      %1191 = vmatpush1.xpose.msra.mxu0 0.0
      %1192 = vmatprep.subr.mxu0 0.0
      %1193 = vmatpush1.xpose.msra.mxu0 0.0
      %1194 = vmatprep.subr.mxu0 0.0
      %1195 = vmatpush1.xpose.msra.mxu0 0.0
      %1196 = vmatprep.subr.mxu0 0.0
      %1197 = vmatpush1.xpose.msra.mxu0 0.0
      %1198 = vmatprep.subr.mxu0 0.0
      %1199 = vmatpush1.xpose.msra.mxu0 %v1166
      %1200 = vmatprep.subr.mxu0 0.0
      %1201 = vmatpush2.xpose.msra.mxu0 0.0
      %1202 = vmatprep.subr.mxu0 0.0
      %1203 = vmatpush2.xpose.msra.mxu0 0.0
      %1204 = vmatprep.subr.mxu0 0.0
      %1205 = vmatpush2.xpose.msra.mxu0 0.0
      %1206 = vmatprep.subr.mxu0 0.0
      %1207 = vmatpush2.xpose.msra.mxu0 0.0
      %1208 = vmatprep.subr.mxu0 0.0
      %1209 = vmatpush2.xpose.msra.mxu0 0.0
      %1210 = vmatprep.subr.mxu0 0.0
      %1211 = vmatpush2.xpose.msra.mxu0 0.0
      %1212 = vmatprep.subr.mxu0 0.0
      %1213 = vmatpush2.xpose.msra.mxu0 0.0
      %1214 = vmatprep.subr.mxu0 0.0
      %1215 = vmatpush2.xpose.msra.mxu0 0.0
      %1216 = vmatprep.subr.mxu0 0.0
      %1217 = vmatpush2.xpose.msra.mxu0 0.0
      %1218 = vmatprep.subr.mxu0 0.0
      %1219 = vmatpush2.xpose.msra.mxu0 0.0
      %1220 = vmatprep.subr.mxu0 0.0
      %1221 = vmatpush2.xpose.msra.mxu0 0.0
      %1222 = vmatprep.subr.mxu0 0.0
      %1223 = vmatpush2.xpose.msra.mxu0 0.0
      %1224 = vmatprep.subr.mxu0 0.0
      %1225 = vmatpush2.xpose.msra.mxu0 0.0
      %1226 = vmatprep.subr.mxu0 0.0
      %1227 = vmatpush2.xpose.msra.mxu0 0.0
      %1228 = vmatprep.subr.mxu0 0.0
      %1229 = vmatpush2.xpose.msra.mxu0 0.0
      %1230 = vmatprep.subr.mxu0 0.0
      %1231 = vmatpush2.xpose.msra.mxu0 0.0
      %1232 = vmatprep.mubr.f32.mxu0 0.0
      %1233 = vmatmul.mubr.f32.gmra.mxu0 %v1164
      %v1234 = vpop.f32.mrf.mxu0
      %v1235 = vadd.f32 0.0, %v1234
      %v1236 = vpop.f32.mrf.mxu0
      %1237 = vdwg.mxu0
      %v1238 = vmul.f32 %v1007, 0.35355338
      %v1239 = vmul.f32 %v1083, 0.35355338
      %v1240 = vmul.f32 %v1159, 0.35355338
      %v1241 = vmul.f32 %v1235, 0.35355338
      %v1242 = vsel %vm935, %v1238, -inf
      %1243 = vmax.xlane.f32.xlu0 %v1242
      %v1244 = vpop.xlane.xlu0 %1243
      %v1245 = vsel %vm935, %v1239, -inf
      %1246 = vmax.xlane.f32.xlu0 %v1245
      %v1247 = vpop.xlane.xlu0 %1246
      %v1248 = vsel %vm935, %v1240, -inf
      %1249 = vmax.xlane.f32.xlu0 %v1248
      %v1250 = vpop.xlane.xlu0 %1249
      %v1251 = vsel %vm935, %v1241, -inf
      %1252 = vmax.xlane.f32.xlu0 %v1251
      %v1253 = vpop.xlane.xlu0 %1252
      %v1254 = vsub.f32 %v1238, %v1244
      %v1255 = vsub.f32 %v1239, %v1247
      %v1256 = vsub.f32 %v1240, %v1250
      %v1257 = vsub.f32 %v1241, %v1253
      %v1258 = vmul.f32 %v1254, 1.442695
      %v1259 = vpow.pop %v1258
      %v1260 = vmul.f32 %v1255, 1.442695
      %v1261 = vpow.pop %v1260
      %v1262 = vmul.f32 %v1256, 1.442695
      %v1263 = vpow.pop %v1262
      %v1264 = vmul.f32 %v1257, 1.442695
      %v1265 = vpow.pop %v1264
      %v1266 = vsel %vm935, %v1259, 0.0
      %1267 = vadd.xlane.f32.xlu0 %v1266
      %v1268 = vpop.xlane.xlu0 %1267
      %v1269 = vsel %vm935, %v1261, 0.0
      %1270 = vadd.xlane.f32.xlu0 %v1269
      %v1271 = vpop.xlane.xlu0 %1270
      %v1272 = vsel %vm935, %v1263, 0.0
      %1273 = vadd.xlane.f32.xlu0 %v1272
      %v1274 = vpop.xlane.xlu0 %1273
      %v1275 = vsel %vm935, %v1265, 0.0
      %1276 = vadd.xlane.f32.xlu0 %v1275
      %v1277 = vpop.xlane.xlu0 %1276
      %v1278 = vrcp.pop %v1268
      %v1279 = vrcp.pop %v1271
      %v1280 = vrcp.pop %v1274
      %v1281 = vrcp.pop %v1277
      %v1282 = vmul.f32 %v1259, %v1278
      %v1283 = vmul.f32 %v1261, %v1279
      %v1284 = vmul.f32 %v1263, %v1280
      %v1285 = vmul.f32 %v1265, %v1281
      %v1287 = vsel %vm935, %v1282, 0
      %1289 = vmatprep.subr.mxu0 0.0
      %1290 = vmatpush1.msra.mxu0 0.0
      %1291 = vmatprep.subr.mxu0 0.0
      %1292 = vmatpush1.msra.mxu0 0.0
      %1293 = vmatprep.subr.mxu0 0.0
      %1294 = vmatpush1.msra.mxu0 0.0
      %1295 = vmatprep.subr.mxu0 0.0
      %1296 = vmatpush1.msra.mxu0 0.0
      %1297 = vmatprep.subr.mxu0 0.0
      %1298 = vmatpush1.msra.mxu0 0.0
      %1299 = vmatprep.subr.mxu0 0.0
      %1300 = vmatpush1.msra.mxu0 0.0
      %1301 = vmatprep.subr.mxu0 0.0
      %1302 = vmatpush1.msra.mxu0 0.0
      %1303 = vmatprep.subr.mxu0 0.0
      %1304 = vmatpush1.msra.mxu0 0.0
      %1305 = vmatprep.subr.mxu0 0.0
      %1306 = vmatpush1.msra.mxu0 0.0
      %1307 = vmatprep.subr.mxu0 0.0
      %1308 = vmatpush1.msra.mxu0 0.0
      %1309 = vmatprep.subr.mxu0 0.0
      %1310 = vmatpush1.msra.mxu0 0.0
      %1311 = vmatprep.subr.mxu0 0.0
      %1312 = vmatpush1.msra.mxu0 0.0
      %1313 = vmatprep.subr.mxu0 0.0
      %1314 = vmatpush1.msra.mxu0 0.0
      %1315 = vmatprep.subr.mxu0 0.0
      %1316 = vmatpush1.msra.mxu0 0.0
      %1317 = vmatprep.subr.mxu0 0.0
      %1318 = vmatpush1.msra.mxu0 0.0
      %1319 = vmatprep.subr.mxu0 0.0
      %1320 = vmatpush1.msra.mxu0 %v913
      %1321 = vmatprep.subr.mxu0 0.0
      %1322 = vmatpush2.msra.mxu0 0.0
      %1323 = vmatprep.subr.mxu0 0.0
      %1324 = vmatpush2.msra.mxu0 0.0
      %1325 = vmatprep.subr.mxu0 0.0
      %1326 = vmatpush2.msra.mxu0 0.0
      %1327 = vmatprep.subr.mxu0 0.0
      %1328 = vmatpush2.msra.mxu0 0.0
      %1329 = vmatprep.subr.mxu0 0.0
      %1330 = vmatpush2.msra.mxu0 0.0
      %1331 = vmatprep.subr.mxu0 0.0
      %1332 = vmatpush2.msra.mxu0 0.0
      %1333 = vmatprep.subr.mxu0 0.0
      %1334 = vmatpush2.msra.mxu0 0.0
      %1335 = vmatprep.subr.mxu0 0.0
      %1336 = vmatpush2.msra.mxu0 0.0
      %1337 = vmatprep.subr.mxu0 0.0
      %1338 = vmatpush2.msra.mxu0 0.0
      %1339 = vmatprep.subr.mxu0 0.0
      %1340 = vmatpush2.msra.mxu0 0.0
      %1341 = vmatprep.subr.mxu0 0.0
      %1342 = vmatpush2.msra.mxu0 0.0
      %1343 = vmatprep.subr.mxu0 0.0
      %1344 = vmatpush2.msra.mxu0 0.0
      %1345 = vmatprep.subr.mxu0 0.0
      %1346 = vmatpush2.msra.mxu0 0.0
      %1347 = vmatprep.subr.mxu0 0.0
      %1348 = vmatpush2.msra.mxu0 0.0
      %1349 = vmatprep.subr.mxu0 0.0
      %1350 = vmatpush2.msra.mxu0 0.0
      %1351 = vmatprep.subr.mxu0 0.0
      %1352 = vmatpush2.msra.mxu0 0.0
      %1353 = vmatprep.mubr.f32.mxu0 0.0
      %1354 = vmatmul.mubr.f32.gmra.mxu0 %v1287
      %v1355 = vpop.f32.mrf.mxu0
      %v1356 = vadd.f32 0.0, %v1355
      %v1357 = vpop.f32.mrf.mxu0
      %1358 = vdwg.mxu0
      %v1360 = vsel %vm935, %v1283, 0
      %1362 = vmatprep.subr.mxu0 0.0
      %1363 = vmatpush1.msra.mxu0 0.0
      %1364 = vmatprep.subr.mxu0 0.0
      %1365 = vmatpush1.msra.mxu0 0.0
      %1366 = vmatprep.subr.mxu0 0.0
      %1367 = vmatpush1.msra.mxu0 0.0
      %1368 = vmatprep.subr.mxu0 0.0
      %1369 = vmatpush1.msra.mxu0 0.0
      %1370 = vmatprep.subr.mxu0 0.0
      %1371 = vmatpush1.msra.mxu0 0.0
      %1372 = vmatprep.subr.mxu0 0.0
      %1373 = vmatpush1.msra.mxu0 0.0
      %1374 = vmatprep.subr.mxu0 0.0
      %1375 = vmatpush1.msra.mxu0 0.0
      %1376 = vmatprep.subr.mxu0 0.0
      %1377 = vmatpush1.msra.mxu0 0.0
      %1378 = vmatprep.subr.mxu0 0.0
      %1379 = vmatpush1.msra.mxu0 0.0
      %1380 = vmatprep.subr.mxu0 0.0
      %1381 = vmatpush1.msra.mxu0 0.0
      %1382 = vmatprep.subr.mxu0 0.0
      %1383 = vmatpush1.msra.mxu0 0.0
      %1384 = vmatprep.subr.mxu0 0.0
      %1385 = vmatpush1.msra.mxu0 0.0
      %1386 = vmatprep.subr.mxu0 0.0
      %1387 = vmatpush1.msra.mxu0 0.0
      %1388 = vmatprep.subr.mxu0 0.0
      %1389 = vmatpush1.msra.mxu0 0.0
      %1390 = vmatprep.subr.mxu0 0.0
      %1391 = vmatpush1.msra.mxu0 0.0
      %1392 = vmatprep.subr.mxu0 0.0
      %1393 = vmatpush1.msra.mxu0 %v925
      %1394 = vmatprep.subr.mxu0 0.0
      %1395 = vmatpush2.msra.mxu0 0.0
      %1396 = vmatprep.subr.mxu0 0.0
      %1397 = vmatpush2.msra.mxu0 0.0
      %1398 = vmatprep.subr.mxu0 0.0
      %1399 = vmatpush2.msra.mxu0 0.0
      %1400 = vmatprep.subr.mxu0 0.0
      %1401 = vmatpush2.msra.mxu0 0.0
      %1402 = vmatprep.subr.mxu0 0.0
      %1403 = vmatpush2.msra.mxu0 0.0
      %1404 = vmatprep.subr.mxu0 0.0
      %1405 = vmatpush2.msra.mxu0 0.0
      %1406 = vmatprep.subr.mxu0 0.0
      %1407 = vmatpush2.msra.mxu0 0.0
      %1408 = vmatprep.subr.mxu0 0.0
      %1409 = vmatpush2.msra.mxu0 0.0
      %1410 = vmatprep.subr.mxu0 0.0
      %1411 = vmatpush2.msra.mxu0 0.0
      %1412 = vmatprep.subr.mxu0 0.0
      %1413 = vmatpush2.msra.mxu0 0.0
      %1414 = vmatprep.subr.mxu0 0.0
      %1415 = vmatpush2.msra.mxu0 0.0
      %1416 = vmatprep.subr.mxu0 0.0
      %1417 = vmatpush2.msra.mxu0 0.0
      %1418 = vmatprep.subr.mxu0 0.0
      %1419 = vmatpush2.msra.mxu0 0.0
      %1420 = vmatprep.subr.mxu0 0.0
      %1421 = vmatpush2.msra.mxu0 0.0
      %1422 = vmatprep.subr.mxu0 0.0
      %1423 = vmatpush2.msra.mxu0 0.0
      %1424 = vmatprep.subr.mxu0 0.0
      %1425 = vmatpush2.msra.mxu0 0.0
      %1426 = vmatprep.mubr.f32.mxu0 0.0
      %1427 = vmatmul.mubr.f32.gmra.mxu0 %v1360
      %v1428 = vpop.f32.mrf.mxu0
      %v1429 = vadd.f32 0.0, %v1428
      %v1430 = vpop.f32.mrf.mxu0
      %1431 = vdwg.mxu0
      %v1433 = vsel %vm935, %v1284, 0
      %1435 = vmatprep.subr.mxu0 0.0
      %1436 = vmatpush1.msra.mxu0 0.0
      %1437 = vmatprep.subr.mxu0 0.0
      %1438 = vmatpush1.msra.mxu0 0.0
      %1439 = vmatprep.subr.mxu0 0.0
      %1440 = vmatpush1.msra.mxu0 0.0
      %1441 = vmatprep.subr.mxu0 0.0
      %1442 = vmatpush1.msra.mxu0 0.0
      %1443 = vmatprep.subr.mxu0 0.0
      %1444 = vmatpush1.msra.mxu0 0.0
      %1445 = vmatprep.subr.mxu0 0.0
      %1446 = vmatpush1.msra.mxu0 0.0
      %1447 = vmatprep.subr.mxu0 0.0
      %1448 = vmatpush1.msra.mxu0 0.0
      %1449 = vmatprep.subr.mxu0 0.0
      %1450 = vmatpush1.msra.mxu0 0.0
      %1451 = vmatprep.subr.mxu0 0.0
      %1452 = vmatpush1.msra.mxu0 0.0
      %1453 = vmatprep.subr.mxu0 0.0
      %1454 = vmatpush1.msra.mxu0 0.0
      %1455 = vmatprep.subr.mxu0 0.0
      %1456 = vmatpush1.msra.mxu0 0.0
      %1457 = vmatprep.subr.mxu0 0.0
      %1458 = vmatpush1.msra.mxu0 0.0
      %1459 = vmatprep.subr.mxu0 0.0
      %1460 = vmatpush1.msra.mxu0 0.0
      %1461 = vmatprep.subr.mxu0 0.0
      %1462 = vmatpush1.msra.mxu0 0.0
      %1463 = vmatprep.subr.mxu0 0.0
      %1464 = vmatpush1.msra.mxu0 0.0
      %1465 = vmatprep.subr.mxu0 0.0
      %1466 = vmatpush1.msra.mxu0 %v928
      %1467 = vmatprep.subr.mxu0 0.0
      %1468 = vmatpush2.msra.mxu0 0.0
      %1469 = vmatprep.subr.mxu0 0.0
      %1470 = vmatpush2.msra.mxu0 0.0
      %1471 = vmatprep.subr.mxu0 0.0
      %1472 = vmatpush2.msra.mxu0 0.0
      %1473 = vmatprep.subr.mxu0 0.0
      %1474 = vmatpush2.msra.mxu0 0.0
      %1475 = vmatprep.subr.mxu0 0.0
      %1476 = vmatpush2.msra.mxu0 0.0
      %1477 = vmatprep.subr.mxu0 0.0
      %1478 = vmatpush2.msra.mxu0 0.0
      %1479 = vmatprep.subr.mxu0 0.0
      %1480 = vmatpush2.msra.mxu0 0.0
      %1481 = vmatprep.subr.mxu0 0.0
      %1482 = vmatpush2.msra.mxu0 0.0
      %1483 = vmatprep.subr.mxu0 0.0
      %1484 = vmatpush2.msra.mxu0 0.0
      %1485 = vmatprep.subr.mxu0 0.0
      %1486 = vmatpush2.msra.mxu0 0.0
      %1487 = vmatprep.subr.mxu0 0.0
      %1488 = vmatpush2.msra.mxu0 0.0
      %1489 = vmatprep.subr.mxu0 0.0
      %1490 = vmatpush2.msra.mxu0 0.0
      %1491 = vmatprep.subr.mxu0 0.0
      %1492 = vmatpush2.msra.mxu0 0.0
      %1493 = vmatprep.subr.mxu0 0.0
      %1494 = vmatpush2.msra.mxu0 0.0
      %1495 = vmatprep.subr.mxu0 0.0
      %1496 = vmatpush2.msra.mxu0 0.0
      %1497 = vmatprep.subr.mxu0 0.0
      %1498 = vmatpush2.msra.mxu0 0.0
      %1499 = vmatprep.mubr.f32.mxu0 0.0
      %1500 = vmatmul.mubr.f32.gmra.mxu0 %v1433
      %v1501 = vpop.f32.mrf.mxu0
      %v1502 = vadd.f32 0.0, %v1501
      %v1503 = vpop.f32.mrf.mxu0
      %1504 = vdwg.mxu0
      %v1506 = vsel %vm935, %v1285, 0
      %1508 = vmatprep.subr.mxu0 0.0
      %1509 = vmatpush1.msra.mxu0 0.0
      %1510 = vmatprep.subr.mxu0 0.0
      %1511 = vmatpush1.msra.mxu0 0.0
      %1512 = vmatprep.subr.mxu0 0.0
      %1513 = vmatpush1.msra.mxu0 0.0
      %1514 = vmatprep.subr.mxu0 0.0
      %1515 = vmatpush1.msra.mxu0 0.0
      %1516 = vmatprep.subr.mxu0 0.0
      %1517 = vmatpush1.msra.mxu0 0.0
      %1518 = vmatprep.subr.mxu0 0.0
      %1519 = vmatpush1.msra.mxu0 0.0
      %1520 = vmatprep.subr.mxu0 0.0
      %1521 = vmatpush1.msra.mxu0 0.0
      %1522 = vmatprep.subr.mxu0 0.0
      %1523 = vmatpush1.msra.mxu0 0.0
      %1524 = vmatprep.subr.mxu0 0.0
      %1525 = vmatpush1.msra.mxu0 0.0
      %1526 = vmatprep.subr.mxu0 0.0
      %1527 = vmatpush1.msra.mxu0 0.0
      %1528 = vmatprep.subr.mxu0 0.0
      %1529 = vmatpush1.msra.mxu0 0.0
      %1530 = vmatprep.subr.mxu0 0.0
      %1531 = vmatpush1.msra.mxu0 0.0
      %1532 = vmatprep.subr.mxu0 0.0
      %1533 = vmatpush1.msra.mxu0 0.0
      %1534 = vmatprep.subr.mxu0 0.0
      %1535 = vmatpush1.msra.mxu0 0.0
      %1536 = vmatprep.subr.mxu0 0.0
      %1537 = vmatpush1.msra.mxu0 0.0
      %1538 = vmatprep.subr.mxu0 0.0
      %1539 = vmatpush1.msra.mxu0 %v931
      %1540 = vmatprep.subr.mxu0 0.0
      %1541 = vmatpush2.msra.mxu0 0.0
      %1542 = vmatprep.subr.mxu0 0.0
      %1543 = vmatpush2.msra.mxu0 0.0
      %1544 = vmatprep.subr.mxu0 0.0
      %1545 = vmatpush2.msra.mxu0 0.0
      %1546 = vmatprep.subr.mxu0 0.0
      %1547 = vmatpush2.msra.mxu0 0.0
      %1548 = vmatprep.subr.mxu0 0.0
      %1549 = vmatpush2.msra.mxu0 0.0
      %1550 = vmatprep.subr.mxu0 0.0
      %1551 = vmatpush2.msra.mxu0 0.0
      %1552 = vmatprep.subr.mxu0 0.0
      %1553 = vmatpush2.msra.mxu0 0.0
      %1554 = vmatprep.subr.mxu0 0.0
      %1555 = vmatpush2.msra.mxu0 0.0
      %1556 = vmatprep.subr.mxu0 0.0
      %1557 = vmatpush2.msra.mxu0 0.0
      %1558 = vmatprep.subr.mxu0 0.0
      %1559 = vmatpush2.msra.mxu0 0.0
      %1560 = vmatprep.subr.mxu0 0.0
      %1561 = vmatpush2.msra.mxu0 0.0
      %1562 = vmatprep.subr.mxu0 0.0
      %1563 = vmatpush2.msra.mxu0 0.0
      %1564 = vmatprep.subr.mxu0 0.0
      %1565 = vmatpush2.msra.mxu0 0.0
      %1566 = vmatprep.subr.mxu0 0.0
      %1567 = vmatpush2.msra.mxu0 0.0
      %1568 = vmatprep.subr.mxu0 0.0
      %1569 = vmatpush2.msra.mxu0 0.0
      %1570 = vmatprep.subr.mxu0 0.0
      %1571 = vmatpush2.msra.mxu0 0.0
      %1572 = vmatprep.mubr.f32.mxu0 0.0
      %1573 = vmatmul.mubr.f32.gmra.mxu0 %v1506
      %v1574 = vpop.f32.mrf.mxu0
      %v1575 = vadd.f32 0.0, %v1574
      %v1576 = vpop.f32.mrf.mxu0
      %1577 = vdwg.mxu0
      %1579 = vrot.lane.b32.xlu0 %v1429, 8
      %v1580 = vpop.permute.xlu0 %1579
      %1583 = vrot.lane.b32.xlu0 %v1502, 16
      %v1584 = vpop.permute.xlu0 %1583
      %1587 = vrot.lane.b32.xlu0 %v1575, 24
      %v1588 = vpop.permute.xlu0 %1587
      %v1590 = vsel %vm935, %v1356, %v1580
      %vm1591 = vcmask 130048
      %v1592 = vsel %vm1591, %v1590, %v1584
      %vm1593 = vcmask 195584
      %v1594 = vsel %vm1593, %v1592, %v1588
      %1595 = vrot.lane.b32.xlu0 %v702, 32
      %v1596 = vpop.permute.xlu0 %1595
      %1597 = vrot.lane.b32.xlu0 %v703, 32
      %v1598 = vpop.permute.xlu0 %1597
      %1599 = vrot.lane.b32.xlu0 %v704, 32
      %v1600 = vpop.permute.xlu0 %1599
      %1601 = vrot.lane.b32.xlu0 %v705, 32
      %v1602 = vpop.permute.xlu0 %1601
      %1607 = vrot.lane.b32.xlu0 %v748, 32
      %v1608 = vpop.permute.xlu0 %1607
      %v1611 = vsel %vm750, %v1594, 0
      %1613 = vmatprep.subr.mxu0 0.0
      %1614 = vmatpush1.msra.mxu0 0.0
      %1615 = vmatprep.subr.mxu0 0.0
      %1616 = vmatpush1.msra.mxu0 0.0
      %1617 = vmatprep.subr.mxu0 0.0
      %1618 = vmatpush1.msra.mxu0 0.0
      %1619 = vmatprep.subr.mxu0 0.0
      %1620 = vmatpush1.msra.mxu0 0.0
      %1621 = vmatprep.subr.mxu0 0.0
      %1622 = vmatpush1.msra.mxu0 0.0
      %1623 = vmatprep.subr.mxu0 0.0
      %1624 = vmatpush1.msra.mxu0 0.0
      %1625 = vmatprep.subr.mxu0 0.0
      %1626 = vmatpush1.msra.mxu0 0.0
      %1627 = vmatprep.subr.mxu0 0.0
      %1628 = vmatpush1.msra.mxu0 0.0
      %1629 = vmatprep.subr.mxu0 0.0
      %1630 = vmatpush1.msra.mxu0 0.0
      %1631 = vmatprep.subr.mxu0 0.0
      %1632 = vmatpush1.msra.mxu0 0.0
      %1633 = vmatprep.subr.mxu0 0.0
      %1634 = vmatpush1.msra.mxu0 0.0
      %1635 = vmatprep.subr.mxu0 0.0
      %1636 = vmatpush1.msra.mxu0 0.0
      %1637 = vmatprep.subr.mxu0 0.0
      %1638 = vmatpush1.msra.mxu0 %v1602
      %1639 = vmatprep.subr.mxu0 0.0
      %1640 = vmatpush1.msra.mxu0 %v1600
      %1641 = vmatprep.subr.mxu0 0.0
      %1642 = vmatpush1.msra.mxu0 %v1598
      %1643 = vmatprep.subr.mxu0 0.0
      %1644 = vmatpush1.msra.mxu0 %v1596
      %1645 = vmatprep.subr.mxu0 0.0
      %1646 = vmatpush2.msra.mxu0 0.0
      %1647 = vmatprep.subr.mxu0 0.0
      %1648 = vmatpush2.msra.mxu0 0.0
      %1649 = vmatprep.subr.mxu0 0.0
      %1650 = vmatpush2.msra.mxu0 0.0
      %1651 = vmatprep.subr.mxu0 0.0
      %1652 = vmatpush2.msra.mxu0 0.0
      %1653 = vmatprep.subr.mxu0 0.0
      %1654 = vmatpush2.msra.mxu0 0.0
      %1655 = vmatprep.subr.mxu0 0.0
      %1656 = vmatpush2.msra.mxu0 0.0
      %1657 = vmatprep.subr.mxu0 0.0
      %1658 = vmatpush2.msra.mxu0 0.0
      %1659 = vmatprep.subr.mxu0 0.0
      %1660 = vmatpush2.msra.mxu0 0.0
      %1661 = vmatprep.subr.mxu0 0.0
      %1662 = vmatpush2.msra.mxu0 0.0
      %1663 = vmatprep.subr.mxu0 0.0
      %1664 = vmatpush2.msra.mxu0 0.0
      %1665 = vmatprep.subr.mxu0 0.0
      %1666 = vmatpush2.msra.mxu0 0.0
      %1667 = vmatprep.subr.mxu0 0.0
      %1668 = vmatpush2.msra.mxu0 0.0
      %1669 = vmatprep.subr.mxu0 0.0
      %1670 = vmatpush2.msra.mxu0 0.0
      %1671 = vmatprep.subr.mxu0 0.0
      %1672 = vmatpush2.msra.mxu0 0.0
      %1673 = vmatprep.subr.mxu0 0.0
      %1674 = vmatpush2.msra.mxu0 0.0
      %1675 = vmatprep.subr.mxu0 0.0
      %1676 = vmatpush2.msra.mxu0 0.0
      %1677 = vmatprep.mubr.f32.mxu0 0.0
      %1678 = vmatmul.mubr.f32.gmra.mxu0 %v1611
      %v1679 = vpop.f32.mrf.mxu0
      %v1680 = vadd.f32 %v1608, %v1679
      %v1681 = vpop.f32.mrf.mxu0
      %1682 = vdwg.mxu0
      %v1683 = vadd.f32 %v692, %v1680
      %v1684 = vsel %vm750, %v1683, 0.0
      %1685 = vadd.xlane.f32.xlu0 %v1684
      %v1686 = vpop.xlane.xlu0 %1685
      %v1687 = vrcp.pop 32.0
      %v1688 = vmul.f32 %v1686, %v1687
      %v1689 = vsub.f32 %v1683, %v1688
      %v1690 = vmul.f32 %v1689, %v1689
      %v1691 = vsel %vm750, %v1690, 0.0
      %1692 = vadd.xlane.f32.xlu0 %v1691
      %v1693 = vpop.xlane.xlu0 %1692
      %v1694 = vmul.f32 %v1693, %v1687
      %v1695 = vadd.f32 %v1694, 1e-05
      %v1696 = vrsqrt.pop %v1695
      %v1697 = vmul.f32 %v1689, %v1696
      %v1698 = vlaneseq
      %v1699 = vshrl.u32 %v1698, 7
      %v1700 = vsub.s32 0, %v1699
      %v1701 = vrot.slane %v742, %v1700
      %v1702 = vmul.f32 %v1697, %v1701
      %v1703 = vlaneseq
      %v1704 = vshrl.u32 %v1703, 7
      %v1705 = vsub.s32 1, %v1704
      %v1706 = vrot.slane %v742, %v1705
      %v1707 = vadd.f32 %v1702, %v1706
      %v1708 = vadd.f32 %v1707, %v697
      %v1710 = vlaneseq
      %v1711 = vshrl.u32 %v1710, 7
      %v1712 = vsub.s32 0, %v1711
      %v1713 = vrot.slane %v715, %v1712
      %v1716 = vsel %vm750, %v1708, 0
      %1718 = vmatprep.subr.mxu0 0.0
      %1719 = vmatpush1.msra.mxu0 0.0
      %1720 = vmatprep.subr.mxu0 0.0
      %1721 = vmatpush1.msra.mxu0 0.0
      %1722 = vmatprep.subr.mxu0 0.0
      %1723 = vmatpush1.msra.mxu0 0.0
      %1724 = vmatprep.subr.mxu0 0.0
      %1725 = vmatpush1.msra.mxu0 0.0
      %1726 = vmatprep.subr.mxu0 0.0
      %1727 = vmatpush1.msra.mxu0 0.0
      %1728 = vmatprep.subr.mxu0 0.0
      %1729 = vmatpush1.msra.mxu0 0.0
      %1730 = vmatprep.subr.mxu0 0.0
      %1731 = vmatpush1.msra.mxu0 0.0
      %1732 = vmatprep.subr.mxu0 0.0
      %1733 = vmatpush1.msra.mxu0 0.0
      %1734 = vmatprep.subr.mxu0 0.0
      %1735 = vmatpush1.msra.mxu0 0.0
      %1736 = vmatprep.subr.mxu0 0.0
      %1737 = vmatpush1.msra.mxu0 0.0
      %1738 = vmatprep.subr.mxu0 0.0
      %1739 = vmatpush1.msra.mxu0 0.0
      %1740 = vmatprep.subr.mxu0 0.0
      %1741 = vmatpush1.msra.mxu0 0.0
      %1742 = vmatprep.subr.mxu0 0.0
      %1743 = vmatpush1.msra.mxu0 %v713
      %1744 = vmatprep.subr.mxu0 0.0
      %1745 = vmatpush1.msra.mxu0 %v712
      %1746 = vmatprep.subr.mxu0 0.0
      %1747 = vmatpush1.msra.mxu0 %v711
      %1748 = vmatprep.subr.mxu0 0.0
      %1749 = vmatpush1.msra.mxu0 %v710
      %1750 = vmatprep.subr.mxu0 0.0
      %1751 = vmatpush2.msra.mxu0 0.0
      %1752 = vmatprep.subr.mxu0 0.0
      %1753 = vmatpush2.msra.mxu0 0.0
      %1754 = vmatprep.subr.mxu0 0.0
      %1755 = vmatpush2.msra.mxu0 0.0
      %1756 = vmatprep.subr.mxu0 0.0
      %1757 = vmatpush2.msra.mxu0 0.0
      %1758 = vmatprep.subr.mxu0 0.0
      %1759 = vmatpush2.msra.mxu0 0.0
      %1760 = vmatprep.subr.mxu0 0.0
      %1761 = vmatpush2.msra.mxu0 0.0
      %1762 = vmatprep.subr.mxu0 0.0
      %1763 = vmatpush2.msra.mxu0 0.0
      %1764 = vmatprep.subr.mxu0 0.0
      %1765 = vmatpush2.msra.mxu0 0.0
      %1766 = vmatprep.subr.mxu0 0.0
      %1767 = vmatpush2.msra.mxu0 0.0
      %1768 = vmatprep.subr.mxu0 0.0
      %1769 = vmatpush2.msra.mxu0 0.0
      %1770 = vmatprep.subr.mxu0 0.0
      %1771 = vmatpush2.msra.mxu0 0.0
      %1772 = vmatprep.subr.mxu0 0.0
      %1773 = vmatpush2.msra.mxu0 0.0
      %1774 = vmatprep.subr.mxu0 0.0
      %1775 = vmatpush2.msra.mxu0 0.0
      %1776 = vmatprep.subr.mxu0 0.0
      %1777 = vmatpush2.msra.mxu0 0.0
      %1778 = vmatprep.subr.mxu0 0.0
      %1779 = vmatpush2.msra.mxu0 0.0
      %1780 = vmatprep.subr.mxu0 0.0
      %1781 = vmatpush2.msra.mxu0 0.0
      %1782 = vmatprep.mubr.f32.mxu0 0.0
      %1783 = vmatmul.mubr.f32.gmra.mxu0 %v1716
      %v1784 = vpop.f32.mrf.mxu0
      %v1785 = vadd.f32 %v1713, %v1784
      %v1786 = vpop.f32.mrf.mxu0
      %1787 = vdwg.mxu0
      %1792 = vrot.lane.b32.xlu0 %v710, 96
      %v1793 = vpop.permute.xlu0 %1792
      %1794 = vrot.lane.b32.xlu0 %v711, 96
      %v1795 = vpop.permute.xlu0 %1794
      %1796 = vrot.lane.b32.xlu0 %v712, 96
      %v1797 = vpop.permute.xlu0 %1796
      %1798 = vrot.lane.b32.xlu0 %v713, 96
      %v1799 = vpop.permute.xlu0 %1798
      %1804 = vrot.lane.b32.xlu0 %v1713, 96
      %v1805 = vpop.permute.xlu0 %1804
      %v1808 = vsel %vm750, %v695, 0
      %v1811 = vsel %vm750, %v696, 0
      %1813 = vmatprep.subr.mxu0 0.0
      %1814 = vmatpush1.msra.mxu0 0.0
      %1815 = vmatprep.subr.mxu0 0.0
      %1816 = vmatpush1.msra.mxu0 0.0
      %1817 = vmatprep.subr.mxu0 0.0
      %1818 = vmatpush1.msra.mxu0 0.0
      %1819 = vmatprep.subr.mxu0 0.0
      %1820 = vmatpush1.msra.mxu0 0.0
      %1821 = vmatprep.subr.mxu0 0.0
      %1822 = vmatpush1.msra.mxu0 0.0
      %1823 = vmatprep.subr.mxu0 0.0
      %1824 = vmatpush1.msra.mxu0 0.0
      %1825 = vmatprep.subr.mxu0 0.0
      %1826 = vmatpush1.msra.mxu0 0.0
      %1827 = vmatprep.subr.mxu0 0.0
      %1828 = vmatpush1.msra.mxu0 0.0
      %1829 = vmatprep.subr.mxu0 0.0
      %1830 = vmatpush1.msra.mxu0 0.0
      %1831 = vmatprep.subr.mxu0 0.0
      %1832 = vmatpush1.msra.mxu0 0.0
      %1833 = vmatprep.subr.mxu0 0.0
      %1834 = vmatpush1.msra.mxu0 0.0
      %1835 = vmatprep.subr.mxu0 0.0
      %1836 = vmatpush1.msra.mxu0 0.0
      %1837 = vmatprep.subr.mxu0 0.0
      %1838 = vmatpush1.msra.mxu0 %v1799
      %1839 = vmatprep.subr.mxu0 0.0
      %1840 = vmatpush1.msra.mxu0 %v1797
      %1841 = vmatprep.subr.mxu0 0.0
      %1842 = vmatpush1.msra.mxu0 %v1795
      %1843 = vmatprep.subr.mxu0 0.0
      %1844 = vmatpush1.msra.mxu0 %v1793
      %1845 = vmatprep.subr.mxu0 0.0
      %1846 = vmatpush2.msra.mxu0 0.0
      %1847 = vmatprep.subr.mxu0 0.0
      %1848 = vmatpush2.msra.mxu0 0.0
      %1849 = vmatprep.subr.mxu0 0.0
      %1850 = vmatpush2.msra.mxu0 0.0
      %1851 = vmatprep.subr.mxu0 0.0
      %1852 = vmatpush2.msra.mxu0 0.0
      %1853 = vmatprep.subr.mxu0 0.0
      %1854 = vmatpush2.msra.mxu0 0.0
      %1855 = vmatprep.subr.mxu0 0.0
      %1856 = vmatpush2.msra.mxu0 0.0
      %1857 = vmatprep.subr.mxu0 0.0
      %1858 = vmatpush2.msra.mxu0 0.0
      %1859 = vmatprep.subr.mxu0 0.0
      %1860 = vmatpush2.msra.mxu0 0.0
      %1861 = vmatprep.subr.mxu0 0.0
      %1862 = vmatpush2.msra.mxu0 0.0
      %1863 = vmatprep.subr.mxu0 0.0
      %1864 = vmatpush2.msra.mxu0 0.0
      %1865 = vmatprep.subr.mxu0 0.0
      %1866 = vmatpush2.msra.mxu0 0.0
      %1867 = vmatprep.subr.mxu0 0.0
      %1868 = vmatpush2.msra.mxu0 0.0
      %1869 = vmatprep.subr.mxu0 0.0
      %1870 = vmatpush2.msra.mxu0 0.0
      %1871 = vmatprep.subr.mxu0 0.0
      %1872 = vmatpush2.msra.mxu0 0.0
      %1873 = vmatprep.subr.mxu0 0.0
      %1874 = vmatpush2.msra.mxu0 0.0
      %1875 = vmatprep.subr.mxu0 0.0
      %1876 = vmatpush2.msra.mxu0 0.0
      %1877 = vmatprep.mubr.f32.mxu0 0.0
      %1878 = vmatmul.mubr.f32.gmra.mxu0 %v1808
      %v1879 = vpop.f32.mrf.mxu0
      %v1880 = vadd.f32 %v1805, %v1879
      %v1881 = vpop.f32.mrf.mxu0
      %1882 = vmatprep.mubr.f32.mxu0 0.0
      %1883 = vmatmul.mubr.f32.gmra.mxu0 %v1811
      %v1884 = vpop.f32.mrf.mxu0
      %v1885 = vadd.f32 %v1805, %v1884
      %v1886 = vpop.f32.mrf.mxu0
      %1887 = vdwg.mxu0
      %1888 = vrot.lane.b32.xlu0 %v710, 64
      %v1889 = vpop.permute.xlu0 %1888
      %1890 = vrot.lane.b32.xlu0 %v711, 64
      %v1891 = vpop.permute.xlu0 %1890
      %1892 = vrot.lane.b32.xlu0 %v712, 64
      %v1893 = vpop.permute.xlu0 %1892
      %1894 = vrot.lane.b32.xlu0 %v713, 64
      %v1895 = vpop.permute.xlu0 %1894
      %1900 = vrot.lane.b32.xlu0 %v1713, 64
      %v1901 = vpop.permute.xlu0 %1900
      %v1904 = vsel %vm750, %v693, 0
      %v1907 = vsel %vm750, %v694, 0
      %1909 = vmatprep.subr.mxu0 0.0
      %1910 = vmatpush1.msra.mxu0 0.0
      %1911 = vmatprep.subr.mxu0 0.0
      %1912 = vmatpush1.msra.mxu0 0.0
      %1913 = vmatprep.subr.mxu0 0.0
      %1914 = vmatpush1.msra.mxu0 0.0
      %1915 = vmatprep.subr.mxu0 0.0
      %1916 = vmatpush1.msra.mxu0 0.0
      %1917 = vmatprep.subr.mxu0 0.0
      %1918 = vmatpush1.msra.mxu0 0.0
      %1919 = vmatprep.subr.mxu0 0.0
      %1920 = vmatpush1.msra.mxu0 0.0
      %1921 = vmatprep.subr.mxu0 0.0
      %1922 = vmatpush1.msra.mxu0 0.0
      %1923 = vmatprep.subr.mxu0 0.0
      %1924 = vmatpush1.msra.mxu0 0.0
      %1925 = vmatprep.subr.mxu0 0.0
      %1926 = vmatpush1.msra.mxu0 0.0
      %1927 = vmatprep.subr.mxu0 0.0
      %1928 = vmatpush1.msra.mxu0 0.0
      %1929 = vmatprep.subr.mxu0 0.0
      %1930 = vmatpush1.msra.mxu0 0.0
      %1931 = vmatprep.subr.mxu0 0.0
      %1932 = vmatpush1.msra.mxu0 0.0
      %1933 = vmatprep.subr.mxu0 0.0
      %1934 = vmatpush1.msra.mxu0 %v1895
      %1935 = vmatprep.subr.mxu0 0.0
      %1936 = vmatpush1.msra.mxu0 %v1893
      %1937 = vmatprep.subr.mxu0 0.0
      %1938 = vmatpush1.msra.mxu0 %v1891
      %1939 = vmatprep.subr.mxu0 0.0
      %1940 = vmatpush1.msra.mxu0 %v1889
      %1941 = vmatprep.subr.mxu0 0.0
      %1942 = vmatpush2.msra.mxu0 0.0
      %1943 = vmatprep.subr.mxu0 0.0
      %1944 = vmatpush2.msra.mxu0 0.0
      %1945 = vmatprep.subr.mxu0 0.0
      %1946 = vmatpush2.msra.mxu0 0.0
      %1947 = vmatprep.subr.mxu0 0.0
      %1948 = vmatpush2.msra.mxu0 0.0
      %1949 = vmatprep.subr.mxu0 0.0
      %1950 = vmatpush2.msra.mxu0 0.0
      %1951 = vmatprep.subr.mxu0 0.0
      %1952 = vmatpush2.msra.mxu0 0.0
      %1953 = vmatprep.subr.mxu0 0.0
      %1954 = vmatpush2.msra.mxu0 0.0
      %1955 = vmatprep.subr.mxu0 0.0
      %1956 = vmatpush2.msra.mxu0 0.0
      %1957 = vmatprep.subr.mxu0 0.0
      %1958 = vmatpush2.msra.mxu0 0.0
      %1959 = vmatprep.subr.mxu0 0.0
      %1960 = vmatpush2.msra.mxu0 0.0
      %1961 = vmatprep.subr.mxu0 0.0
      %1962 = vmatpush2.msra.mxu0 0.0
      %1963 = vmatprep.subr.mxu0 0.0
      %1964 = vmatpush2.msra.mxu0 0.0
      %1965 = vmatprep.subr.mxu0 0.0
      %1966 = vmatpush2.msra.mxu0 0.0
      %1967 = vmatprep.subr.mxu0 0.0
      %1968 = vmatpush2.msra.mxu0 0.0
      %1969 = vmatprep.subr.mxu0 0.0
      %1970 = vmatpush2.msra.mxu0 0.0
      %1971 = vmatprep.subr.mxu0 0.0
      %1972 = vmatpush2.msra.mxu0 0.0
      %1973 = vmatprep.mubr.f32.mxu0 0.0
      %1974 = vmatmul.mubr.f32.gmra.mxu0 %v1904
      %v1975 = vpop.f32.mrf.mxu0
      %v1976 = vadd.f32 %v1901, %v1975
      %v1977 = vpop.f32.mrf.mxu0
      %1978 = vmatprep.mubr.f32.mxu0 0.0
      %1979 = vmatmul.mubr.f32.gmra.mxu0 %v1907
      %v1980 = vpop.f32.mrf.mxu0
      %v1981 = vadd.f32 %v1901, %v1980
      %v1982 = vpop.f32.mrf.mxu0
      %1983 = vdwg.mxu0
      %1985 = vrot.lane.b32.xlu0 %v1785, 120
      %v1986 = vpop.permute.xlu0 %1985
      %1987 = vrot.lane.b32.xlu0 %v1785, 112
      %v1988 = vpop.permute.xlu0 %1987
      %1989 = vrot.lane.b32.xlu0 %v1785, 104
      %v1990 = vpop.permute.xlu0 %1989
      %1993 = vrot.lane.b32.xlu0 %v1880, 120
      %v1994 = vpop.permute.xlu0 %1993
      %1995 = vrot.lane.b32.xlu0 %v1885, 120
      %v1996 = vpop.permute.xlu0 %1995
      %1997 = vrot.lane.b32.xlu0 %v1880, 112
      %v1998 = vpop.permute.xlu0 %1997
      %1999 = vrot.lane.b32.xlu0 %v1885, 112
      %v2000 = vpop.permute.xlu0 %1999
      %2001 = vrot.lane.b32.xlu0 %v1880, 104
      %v2002 = vpop.permute.xlu0 %2001
      %2003 = vrot.lane.b32.xlu0 %v1885, 104
      %v2004 = vpop.permute.xlu0 %2003
      %2007 = vrot.lane.b32.xlu0 %v1976, 120
      %v2008 = vpop.permute.xlu0 %2007
      %2009 = vrot.lane.b32.xlu0 %v1981, 120
      %v2010 = vpop.permute.xlu0 %2009
      %2013 = vrot.lane.b32.xlu0 %v1976, 112
      %v2014 = vpop.permute.xlu0 %2013
      %2015 = vrot.lane.b32.xlu0 %v1981, 112
      %v2016 = vpop.permute.xlu0 %2015
      %2019 = vrot.lane.b32.xlu0 %v1976, 104
      %v2020 = vpop.permute.xlu0 %2019
      %2021 = vrot.lane.b32.xlu0 %v1981, 104
      %v2022 = vpop.permute.xlu0 %2021
      %v2025 = vsel %vm935, %v1785, 0
      %v2027 = vsel %vm935, %v1880, 0
      %v2029 = vsel %vm935, %v1885, 0
      %2031 = vmatprep.subr.mxu0 0.0
      %2032 = vmatpush1.xpose.msra.mxu0 0.0
      %2033 = vmatprep.subr.mxu0 0.0
      %2034 = vmatpush1.xpose.msra.mxu0 0.0
      %2035 = vmatprep.subr.mxu0 0.0
      %2036 = vmatpush1.xpose.msra.mxu0 0.0
      %2037 = vmatprep.subr.mxu0 0.0
      %2038 = vmatpush1.xpose.msra.mxu0 0.0
      %2039 = vmatprep.subr.mxu0 0.0
      %2040 = vmatpush1.xpose.msra.mxu0 0.0
      %2041 = vmatprep.subr.mxu0 0.0
      %2042 = vmatpush1.xpose.msra.mxu0 0.0
      %2043 = vmatprep.subr.mxu0 0.0
      %2044 = vmatpush1.xpose.msra.mxu0 0.0
      %2045 = vmatprep.subr.mxu0 0.0
      %2046 = vmatpush1.xpose.msra.mxu0 0.0
      %2047 = vmatprep.subr.mxu0 0.0
      %2048 = vmatpush1.xpose.msra.mxu0 0.0
      %2049 = vmatprep.subr.mxu0 0.0
      %2050 = vmatpush1.xpose.msra.mxu0 0.0
      %2051 = vmatprep.subr.mxu0 0.0
      %2052 = vmatpush1.xpose.msra.mxu0 0.0
      %2053 = vmatprep.subr.mxu0 0.0
      %2054 = vmatpush1.xpose.msra.mxu0 0.0
      %2055 = vmatprep.subr.mxu0 0.0
      %2056 = vmatpush1.xpose.msra.mxu0 0.0
      %2057 = vmatprep.subr.mxu0 0.0
      %2058 = vmatpush1.xpose.msra.mxu0 0.0
      %2059 = vmatprep.subr.mxu0 0.0
      %2060 = vmatpush1.xpose.msra.mxu0 %v2029
      %2061 = vmatprep.subr.mxu0 0.0
      %2062 = vmatpush1.xpose.msra.mxu0 %v2027
      %2063 = vmatprep.subr.mxu0 0.0
      %2064 = vmatpush2.xpose.msra.mxu0 0.0
      %2065 = vmatprep.subr.mxu0 0.0
      %2066 = vmatpush2.xpose.msra.mxu0 0.0
      %2067 = vmatprep.subr.mxu0 0.0
      %2068 = vmatpush2.xpose.msra.mxu0 0.0
      %2069 = vmatprep.subr.mxu0 0.0
      %2070 = vmatpush2.xpose.msra.mxu0 0.0
      %2071 = vmatprep.subr.mxu0 0.0
      %2072 = vmatpush2.xpose.msra.mxu0 0.0
      %2073 = vmatprep.subr.mxu0 0.0
      %2074 = vmatpush2.xpose.msra.mxu0 0.0
      %2075 = vmatprep.subr.mxu0 0.0
      %2076 = vmatpush2.xpose.msra.mxu0 0.0
      %2077 = vmatprep.subr.mxu0 0.0
      %2078 = vmatpush2.xpose.msra.mxu0 0.0
      %2079 = vmatprep.subr.mxu0 0.0
      %2080 = vmatpush2.xpose.msra.mxu0 0.0
      %2081 = vmatprep.subr.mxu0 0.0
      %2082 = vmatpush2.xpose.msra.mxu0 0.0
      %2083 = vmatprep.subr.mxu0 0.0
      %2084 = vmatpush2.xpose.msra.mxu0 0.0
      %2085 = vmatprep.subr.mxu0 0.0
      %2086 = vmatpush2.xpose.msra.mxu0 0.0
      %2087 = vmatprep.subr.mxu0 0.0
      %2088 = vmatpush2.xpose.msra.mxu0 0.0
      %2089 = vmatprep.subr.mxu0 0.0
      %2090 = vmatpush2.xpose.msra.mxu0 0.0
      %2091 = vmatprep.subr.mxu0 0.0
      %2092 = vmatpush2.xpose.msra.mxu0 0.0
      %2093 = vmatprep.subr.mxu0 0.0
      %2094 = vmatpush2.xpose.msra.mxu0 0.0
      %2095 = vmatprep.mubr.f32.mxu0 0.0
      %2096 = vmatmul.mubr.f32.gmra.mxu0 %v2025
      %v2097 = vpop.f32.mrf.mxu0
      %v2098 = vadd.f32 0.0, %v2097
      %v2099 = vpop.f32.mrf.mxu0
      %2100 = vdwg.mxu0
      %v2101 = vsel %vm935, %v1986, 0
      %v2103 = vsel %vm935, %v1994, 0
      %v2105 = vsel %vm935, %v1996, 0
      %2107 = vmatprep.subr.mxu0 0.0
      %2108 = vmatpush1.xpose.msra.mxu0 0.0
      %2109 = vmatprep.subr.mxu0 0.0
      %2110 = vmatpush1.xpose.msra.mxu0 0.0
      %2111 = vmatprep.subr.mxu0 0.0
      %2112 = vmatpush1.xpose.msra.mxu0 0.0
      %2113 = vmatprep.subr.mxu0 0.0
      %2114 = vmatpush1.xpose.msra.mxu0 0.0
      %2115 = vmatprep.subr.mxu0 0.0
      %2116 = vmatpush1.xpose.msra.mxu0 0.0
      %2117 = vmatprep.subr.mxu0 0.0
      %2118 = vmatpush1.xpose.msra.mxu0 0.0
      %2119 = vmatprep.subr.mxu0 0.0
      %2120 = vmatpush1.xpose.msra.mxu0 0.0
      %2121 = vmatprep.subr.mxu0 0.0
      %2122 = vmatpush1.xpose.msra.mxu0 0.0
      %2123 = vmatprep.subr.mxu0 0.0
      %2124 = vmatpush1.xpose.msra.mxu0 0.0
      %2125 = vmatprep.subr.mxu0 0.0
      %2126 = vmatpush1.xpose.msra.mxu0 0.0
      %2127 = vmatprep.subr.mxu0 0.0
      %2128 = vmatpush1.xpose.msra.mxu0 0.0
      %2129 = vmatprep.subr.mxu0 0.0
      %2130 = vmatpush1.xpose.msra.mxu0 0.0
      %2131 = vmatprep.subr.mxu0 0.0
      %2132 = vmatpush1.xpose.msra.mxu0 0.0
      %2133 = vmatprep.subr.mxu0 0.0
      %2134 = vmatpush1.xpose.msra.mxu0 0.0
      %2135 = vmatprep.subr.mxu0 0.0
      %2136 = vmatpush1.xpose.msra.mxu0 %v2105
      %2137 = vmatprep.subr.mxu0 0.0
      %2138 = vmatpush1.xpose.msra.mxu0 %v2103
      %2139 = vmatprep.subr.mxu0 0.0
      %2140 = vmatpush2.xpose.msra.mxu0 0.0
      %2141 = vmatprep.subr.mxu0 0.0
      %2142 = vmatpush2.xpose.msra.mxu0 0.0
      %2143 = vmatprep.subr.mxu0 0.0
      %2144 = vmatpush2.xpose.msra.mxu0 0.0
      %2145 = vmatprep.subr.mxu0 0.0
      %2146 = vmatpush2.xpose.msra.mxu0 0.0
      %2147 = vmatprep.subr.mxu0 0.0
      %2148 = vmatpush2.xpose.msra.mxu0 0.0
      %2149 = vmatprep.subr.mxu0 0.0
      %2150 = vmatpush2.xpose.msra.mxu0 0.0
      %2151 = vmatprep.subr.mxu0 0.0
      %2152 = vmatpush2.xpose.msra.mxu0 0.0
      %2153 = vmatprep.subr.mxu0 0.0
      %2154 = vmatpush2.xpose.msra.mxu0 0.0
      %2155 = vmatprep.subr.mxu0 0.0
      %2156 = vmatpush2.xpose.msra.mxu0 0.0
      %2157 = vmatprep.subr.mxu0 0.0
      %2158 = vmatpush2.xpose.msra.mxu0 0.0
      %2159 = vmatprep.subr.mxu0 0.0
      %2160 = vmatpush2.xpose.msra.mxu0 0.0
      %2161 = vmatprep.subr.mxu0 0.0
      %2162 = vmatpush2.xpose.msra.mxu0 0.0
      %2163 = vmatprep.subr.mxu0 0.0
      %2164 = vmatpush2.xpose.msra.mxu0 0.0
      %2165 = vmatprep.subr.mxu0 0.0
      %2166 = vmatpush2.xpose.msra.mxu0 0.0
      %2167 = vmatprep.subr.mxu0 0.0
      %2168 = vmatpush2.xpose.msra.mxu0 0.0
      %2169 = vmatprep.subr.mxu0 0.0
      %2170 = vmatpush2.xpose.msra.mxu0 0.0
      %2171 = vmatprep.mubr.f32.mxu0 0.0
      %2172 = vmatmul.mubr.f32.gmra.mxu0 %v2101
      %v2173 = vpop.f32.mrf.mxu0
      %v2174 = vadd.f32 0.0, %v2173
      %v2175 = vpop.f32.mrf.mxu0
      %2176 = vdwg.mxu0
      %v2177 = vsel %vm935, %v1988, 0
      %v2179 = vsel %vm935, %v1998, 0
      %v2181 = vsel %vm935, %v2000, 0
      %2183 = vmatprep.subr.mxu0 0.0
      %2184 = vmatpush1.xpose.msra.mxu0 0.0
      %2185 = vmatprep.subr.mxu0 0.0
      %2186 = vmatpush1.xpose.msra.mxu0 0.0
      %2187 = vmatprep.subr.mxu0 0.0
      %2188 = vmatpush1.xpose.msra.mxu0 0.0
      %2189 = vmatprep.subr.mxu0 0.0
      %2190 = vmatpush1.xpose.msra.mxu0 0.0
      %2191 = vmatprep.subr.mxu0 0.0
      %2192 = vmatpush1.xpose.msra.mxu0 0.0
      %2193 = vmatprep.subr.mxu0 0.0
      %2194 = vmatpush1.xpose.msra.mxu0 0.0
      %2195 = vmatprep.subr.mxu0 0.0
      %2196 = vmatpush1.xpose.msra.mxu0 0.0
      %2197 = vmatprep.subr.mxu0 0.0
      %2198 = vmatpush1.xpose.msra.mxu0 0.0
      %2199 = vmatprep.subr.mxu0 0.0
      %2200 = vmatpush1.xpose.msra.mxu0 0.0
      %2201 = vmatprep.subr.mxu0 0.0
      %2202 = vmatpush1.xpose.msra.mxu0 0.0
      %2203 = vmatprep.subr.mxu0 0.0
      %2204 = vmatpush1.xpose.msra.mxu0 0.0
      %2205 = vmatprep.subr.mxu0 0.0
      %2206 = vmatpush1.xpose.msra.mxu0 0.0
      %2207 = vmatprep.subr.mxu0 0.0
      %2208 = vmatpush1.xpose.msra.mxu0 0.0
      %2209 = vmatprep.subr.mxu0 0.0
      %2210 = vmatpush1.xpose.msra.mxu0 0.0
      %2211 = vmatprep.subr.mxu0 0.0
      %2212 = vmatpush1.xpose.msra.mxu0 %v2181
      %2213 = vmatprep.subr.mxu0 0.0
      %2214 = vmatpush1.xpose.msra.mxu0 %v2179
      %2215 = vmatprep.subr.mxu0 0.0
      %2216 = vmatpush2.xpose.msra.mxu0 0.0
      %2217 = vmatprep.subr.mxu0 0.0
      %2218 = vmatpush2.xpose.msra.mxu0 0.0
      %2219 = vmatprep.subr.mxu0 0.0
      %2220 = vmatpush2.xpose.msra.mxu0 0.0
      %2221 = vmatprep.subr.mxu0 0.0
      %2222 = vmatpush2.xpose.msra.mxu0 0.0
      %2223 = vmatprep.subr.mxu0 0.0
      %2224 = vmatpush2.xpose.msra.mxu0 0.0
      %2225 = vmatprep.subr.mxu0 0.0
      %2226 = vmatpush2.xpose.msra.mxu0 0.0
      %2227 = vmatprep.subr.mxu0 0.0
      %2228 = vmatpush2.xpose.msra.mxu0 0.0
      %2229 = vmatprep.subr.mxu0 0.0
      %2230 = vmatpush2.xpose.msra.mxu0 0.0
      %2231 = vmatprep.subr.mxu0 0.0
      %2232 = vmatpush2.xpose.msra.mxu0 0.0
      %2233 = vmatprep.subr.mxu0 0.0
      %2234 = vmatpush2.xpose.msra.mxu0 0.0
      %2235 = vmatprep.subr.mxu0 0.0
      %2236 = vmatpush2.xpose.msra.mxu0 0.0
      %2237 = vmatprep.subr.mxu0 0.0
      %2238 = vmatpush2.xpose.msra.mxu0 0.0
      %2239 = vmatprep.subr.mxu0 0.0
      %2240 = vmatpush2.xpose.msra.mxu0 0.0
      %2241 = vmatprep.subr.mxu0 0.0
      %2242 = vmatpush2.xpose.msra.mxu0 0.0
      %2243 = vmatprep.subr.mxu0 0.0
      %2244 = vmatpush2.xpose.msra.mxu0 0.0
      %2245 = vmatprep.subr.mxu0 0.0
      %2246 = vmatpush2.xpose.msra.mxu0 0.0
      %2247 = vmatprep.mubr.f32.mxu0 0.0
      %2248 = vmatmul.mubr.f32.gmra.mxu0 %v2177
      %v2249 = vpop.f32.mrf.mxu0
      %v2250 = vadd.f32 0.0, %v2249
      %v2251 = vpop.f32.mrf.mxu0
      %2252 = vdwg.mxu0
      %v2253 = vsel %vm935, %v1990, 0
      %v2255 = vsel %vm935, %v2002, 0
      %v2257 = vsel %vm935, %v2004, 0
      %2259 = vmatprep.subr.mxu0 0.0
      %2260 = vmatpush1.xpose.msra.mxu0 0.0
      %2261 = vmatprep.subr.mxu0 0.0
      %2262 = vmatpush1.xpose.msra.mxu0 0.0
      %2263 = vmatprep.subr.mxu0 0.0
      %2264 = vmatpush1.xpose.msra.mxu0 0.0
      %2265 = vmatprep.subr.mxu0 0.0
      %2266 = vmatpush1.xpose.msra.mxu0 0.0
      %2267 = vmatprep.subr.mxu0 0.0
      %2268 = vmatpush1.xpose.msra.mxu0 0.0
      %2269 = vmatprep.subr.mxu0 0.0
      %2270 = vmatpush1.xpose.msra.mxu0 0.0
      %2271 = vmatprep.subr.mxu0 0.0
      %2272 = vmatpush1.xpose.msra.mxu0 0.0
      %2273 = vmatprep.subr.mxu0 0.0
      %2274 = vmatpush1.xpose.msra.mxu0 0.0
      %2275 = vmatprep.subr.mxu0 0.0
      %2276 = vmatpush1.xpose.msra.mxu0 0.0
      %2277 = vmatprep.subr.mxu0 0.0
      %2278 = vmatpush1.xpose.msra.mxu0 0.0
      %2279 = vmatprep.subr.mxu0 0.0
      %2280 = vmatpush1.xpose.msra.mxu0 0.0
      %2281 = vmatprep.subr.mxu0 0.0
      %2282 = vmatpush1.xpose.msra.mxu0 0.0
      %2283 = vmatprep.subr.mxu0 0.0
      %2284 = vmatpush1.xpose.msra.mxu0 0.0
      %2285 = vmatprep.subr.mxu0 0.0
      %2286 = vmatpush1.xpose.msra.mxu0 0.0
      %2287 = vmatprep.subr.mxu0 0.0
      %2288 = vmatpush1.xpose.msra.mxu0 %v2257
      %2289 = vmatprep.subr.mxu0 0.0
      %2290 = vmatpush1.xpose.msra.mxu0 %v2255
      %2291 = vmatprep.subr.mxu0 0.0
      %2292 = vmatpush2.xpose.msra.mxu0 0.0
      %2293 = vmatprep.subr.mxu0 0.0
      %2294 = vmatpush2.xpose.msra.mxu0 0.0
      %2295 = vmatprep.subr.mxu0 0.0
      %2296 = vmatpush2.xpose.msra.mxu0 0.0
      %2297 = vmatprep.subr.mxu0 0.0
      %2298 = vmatpush2.xpose.msra.mxu0 0.0
      %2299 = vmatprep.subr.mxu0 0.0
      %2300 = vmatpush2.xpose.msra.mxu0 0.0
      %2301 = vmatprep.subr.mxu0 0.0
      %2302 = vmatpush2.xpose.msra.mxu0 0.0
      %2303 = vmatprep.subr.mxu0 0.0
      %2304 = vmatpush2.xpose.msra.mxu0 0.0
      %2305 = vmatprep.subr.mxu0 0.0
      %2306 = vmatpush2.xpose.msra.mxu0 0.0
      %2307 = vmatprep.subr.mxu0 0.0
      %2308 = vmatpush2.xpose.msra.mxu0 0.0
      %2309 = vmatprep.subr.mxu0 0.0
      %2310 = vmatpush2.xpose.msra.mxu0 0.0
      %2311 = vmatprep.subr.mxu0 0.0
      %2312 = vmatpush2.xpose.msra.mxu0 0.0
      %2313 = vmatprep.subr.mxu0 0.0
      %2314 = vmatpush2.xpose.msra.mxu0 0.0
      %2315 = vmatprep.subr.mxu0 0.0
      %2316 = vmatpush2.xpose.msra.mxu0 0.0
      %2317 = vmatprep.subr.mxu0 0.0
      %2318 = vmatpush2.xpose.msra.mxu0 0.0
      %2319 = vmatprep.subr.mxu0 0.0
      %2320 = vmatpush2.xpose.msra.mxu0 0.0
      %2321 = vmatprep.subr.mxu0 0.0
      %2322 = vmatpush2.xpose.msra.mxu0 0.0
      %2323 = vmatprep.mubr.f32.mxu0 0.0
      %2324 = vmatmul.mubr.f32.gmra.mxu0 %v2253
      %v2325 = vpop.f32.mrf.mxu0
      %v2326 = vadd.f32 0.0, %v2325
      %v2327 = vpop.f32.mrf.mxu0
      %2328 = vdwg.mxu0
      %v2329 = vmul.f32 %v2098, 0.35355338
      %v2330 = vmul.f32 %v2174, 0.35355338
      %v2331 = vmul.f32 %v2250, 0.35355338
      %v2332 = vmul.f32 %v2326, 0.35355338
      %v2333 = vsel %vm1591, %v2329, -inf
      %2334 = vmax.xlane.f32.xlu0 %v2333
      %v2335 = vpop.xlane.xlu0 %2334
      %v2336 = vsel %vm1591, %v2330, -inf
      %2337 = vmax.xlane.f32.xlu0 %v2336
      %v2338 = vpop.xlane.xlu0 %2337
      %v2339 = vsel %vm1591, %v2331, -inf
      %2340 = vmax.xlane.f32.xlu0 %v2339
      %v2341 = vpop.xlane.xlu0 %2340
      %v2342 = vsel %vm1591, %v2332, -inf
      %2343 = vmax.xlane.f32.xlu0 %v2342
      %v2344 = vpop.xlane.xlu0 %2343
      %v2345 = vsub.f32 %v2329, %v2335
      %v2346 = vsub.f32 %v2330, %v2338
      %v2347 = vsub.f32 %v2331, %v2341
      %v2348 = vsub.f32 %v2332, %v2344
      %v2349 = vmul.f32 %v2345, 1.442695
      %v2350 = vpow.pop %v2349
      %v2351 = vmul.f32 %v2346, 1.442695
      %v2352 = vpow.pop %v2351
      %v2353 = vmul.f32 %v2347, 1.442695
      %v2354 = vpow.pop %v2353
      %v2355 = vmul.f32 %v2348, 1.442695
      %v2356 = vpow.pop %v2355
      %v2357 = vsel %vm1591, %v2350, 0.0
      %2358 = vadd.xlane.f32.xlu0 %v2357
      %v2359 = vpop.xlane.xlu0 %2358
      %v2360 = vsel %vm1591, %v2352, 0.0
      %2361 = vadd.xlane.f32.xlu0 %v2360
      %v2362 = vpop.xlane.xlu0 %2361
      %v2363 = vsel %vm1591, %v2354, 0.0
      %2364 = vadd.xlane.f32.xlu0 %v2363
      %v2365 = vpop.xlane.xlu0 %2364
      %v2366 = vsel %vm1591, %v2356, 0.0
      %2367 = vadd.xlane.f32.xlu0 %v2366
      %v2368 = vpop.xlane.xlu0 %2367
      %v2369 = vrcp.pop %v2359
      %v2370 = vrcp.pop %v2362
      %v2371 = vrcp.pop %v2365
      %v2372 = vrcp.pop %v2368
      %v2373 = vmul.f32 %v2350, %v2369
      %v2374 = vmul.f32 %v2352, %v2370
      %v2375 = vmul.f32 %v2354, %v2371
      %v2376 = vmul.f32 %v2356, %v2372
      %v2378 = vsel %vm1591, %v2373, 0
      %2380 = vmatprep.subr.mxu0 0.0
      %2381 = vmatpush1.msra.mxu0 0.0
      %2382 = vmatprep.subr.mxu0 0.0
      %2383 = vmatpush1.msra.mxu0 0.0
      %2384 = vmatprep.subr.mxu0 0.0
      %2385 = vmatpush1.msra.mxu0 0.0
      %2386 = vmatprep.subr.mxu0 0.0
      %2387 = vmatpush1.msra.mxu0 0.0
      %2388 = vmatprep.subr.mxu0 0.0
      %2389 = vmatpush1.msra.mxu0 0.0
      %2390 = vmatprep.subr.mxu0 0.0
      %2391 = vmatpush1.msra.mxu0 0.0
      %2392 = vmatprep.subr.mxu0 0.0
      %2393 = vmatpush1.msra.mxu0 0.0
      %2394 = vmatprep.subr.mxu0 0.0
      %2395 = vmatpush1.msra.mxu0 0.0
      %2396 = vmatprep.subr.mxu0 0.0
      %2397 = vmatpush1.msra.mxu0 0.0
      %2398 = vmatprep.subr.mxu0 0.0
      %2399 = vmatpush1.msra.mxu0 0.0
      %2400 = vmatprep.subr.mxu0 0.0
      %2401 = vmatpush1.msra.mxu0 0.0
      %2402 = vmatprep.subr.mxu0 0.0
      %2403 = vmatpush1.msra.mxu0 0.0
      %2404 = vmatprep.subr.mxu0 0.0
      %2405 = vmatpush1.msra.mxu0 0.0
      %2406 = vmatprep.subr.mxu0 0.0
      %2407 = vmatpush1.msra.mxu0 0.0
      %2408 = vmatprep.subr.mxu0 0.0
      %2409 = vmatpush1.msra.mxu0 %v1981
      %2410 = vmatprep.subr.mxu0 0.0
      %2411 = vmatpush1.msra.mxu0 %v1976
      %2412 = vmatprep.subr.mxu0 0.0
      %2413 = vmatpush2.msra.mxu0 0.0
      %2414 = vmatprep.subr.mxu0 0.0
      %2415 = vmatpush2.msra.mxu0 0.0
      %2416 = vmatprep.subr.mxu0 0.0
      %2417 = vmatpush2.msra.mxu0 0.0
      %2418 = vmatprep.subr.mxu0 0.0
      %2419 = vmatpush2.msra.mxu0 0.0
      %2420 = vmatprep.subr.mxu0 0.0
      %2421 = vmatpush2.msra.mxu0 0.0
      %2422 = vmatprep.subr.mxu0 0.0
      %2423 = vmatpush2.msra.mxu0 0.0
      %2424 = vmatprep.subr.mxu0 0.0
      %2425 = vmatpush2.msra.mxu0 0.0
      %2426 = vmatprep.subr.mxu0 0.0
      %2427 = vmatpush2.msra.mxu0 0.0
      %2428 = vmatprep.subr.mxu0 0.0
      %2429 = vmatpush2.msra.mxu0 0.0
      %2430 = vmatprep.subr.mxu0 0.0
      %2431 = vmatpush2.msra.mxu0 0.0
      %2432 = vmatprep.subr.mxu0 0.0
      %2433 = vmatpush2.msra.mxu0 0.0
      %2434 = vmatprep.subr.mxu0 0.0
      %2435 = vmatpush2.msra.mxu0 0.0
      %2436 = vmatprep.subr.mxu0 0.0
      %2437 = vmatpush2.msra.mxu0 0.0
      %2438 = vmatprep.subr.mxu0 0.0
      %2439 = vmatpush2.msra.mxu0 0.0
      %2440 = vmatprep.subr.mxu0 0.0
      %2441 = vmatpush2.msra.mxu0 0.0
      %2442 = vmatprep.subr.mxu0 0.0
      %2443 = vmatpush2.msra.mxu0 0.0
      %2444 = vmatprep.mubr.f32.mxu0 0.0
      %2445 = vmatmul.mubr.f32.gmra.mxu0 %v2378
      %v2446 = vpop.f32.mrf.mxu0
      %v2447 = vadd.f32 0.0, %v2446
      %v2448 = vpop.f32.mrf.mxu0
      %2449 = vdwg.mxu0
      %v2451 = vsel %vm1591, %v2374, 0
      %2453 = vmatprep.subr.mxu0 0.0
      %2454 = vmatpush1.msra.mxu0 0.0
      %2455 = vmatprep.subr.mxu0 0.0
      %2456 = vmatpush1.msra.mxu0 0.0
      %2457 = vmatprep.subr.mxu0 0.0
      %2458 = vmatpush1.msra.mxu0 0.0
      %2459 = vmatprep.subr.mxu0 0.0
      %2460 = vmatpush1.msra.mxu0 0.0
      %2461 = vmatprep.subr.mxu0 0.0
      %2462 = vmatpush1.msra.mxu0 0.0
      %2463 = vmatprep.subr.mxu0 0.0
      %2464 = vmatpush1.msra.mxu0 0.0
      %2465 = vmatprep.subr.mxu0 0.0
      %2466 = vmatpush1.msra.mxu0 0.0
      %2467 = vmatprep.subr.mxu0 0.0
      %2468 = vmatpush1.msra.mxu0 0.0
      %2469 = vmatprep.subr.mxu0 0.0
      %2470 = vmatpush1.msra.mxu0 0.0
      %2471 = vmatprep.subr.mxu0 0.0
      %2472 = vmatpush1.msra.mxu0 0.0
      %2473 = vmatprep.subr.mxu0 0.0
      %2474 = vmatpush1.msra.mxu0 0.0
      %2475 = vmatprep.subr.mxu0 0.0
      %2476 = vmatpush1.msra.mxu0 0.0
      %2477 = vmatprep.subr.mxu0 0.0
      %2478 = vmatpush1.msra.mxu0 0.0
      %2479 = vmatprep.subr.mxu0 0.0
      %2480 = vmatpush1.msra.mxu0 0.0
      %2481 = vmatprep.subr.mxu0 0.0
      %2482 = vmatpush1.msra.mxu0 %v2010
      %2483 = vmatprep.subr.mxu0 0.0
      %2484 = vmatpush1.msra.mxu0 %v2008
      %2485 = vmatprep.subr.mxu0 0.0
      %2486 = vmatpush2.msra.mxu0 0.0
      %2487 = vmatprep.subr.mxu0 0.0
      %2488 = vmatpush2.msra.mxu0 0.0
      %2489 = vmatprep.subr.mxu0 0.0
      %2490 = vmatpush2.msra.mxu0 0.0
      %2491 = vmatprep.subr.mxu0 0.0
      %2492 = vmatpush2.msra.mxu0 0.0
      %2493 = vmatprep.subr.mxu0 0.0
      %2494 = vmatpush2.msra.mxu0 0.0
      %2495 = vmatprep.subr.mxu0 0.0
      %2496 = vmatpush2.msra.mxu0 0.0
      %2497 = vmatprep.subr.mxu0 0.0
      %2498 = vmatpush2.msra.mxu0 0.0
      %2499 = vmatprep.subr.mxu0 0.0
      %2500 = vmatpush2.msra.mxu0 0.0
      %2501 = vmatprep.subr.mxu0 0.0
      %2502 = vmatpush2.msra.mxu0 0.0
      %2503 = vmatprep.subr.mxu0 0.0
      %2504 = vmatpush2.msra.mxu0 0.0
      %2505 = vmatprep.subr.mxu0 0.0
      %2506 = vmatpush2.msra.mxu0 0.0
      %2507 = vmatprep.subr.mxu0 0.0
      %2508 = vmatpush2.msra.mxu0 0.0
      %2509 = vmatprep.subr.mxu0 0.0
      %2510 = vmatpush2.msra.mxu0 0.0
      %2511 = vmatprep.subr.mxu0 0.0
      %2512 = vmatpush2.msra.mxu0 0.0
      %2513 = vmatprep.subr.mxu0 0.0
      %2514 = vmatpush2.msra.mxu0 0.0
      %2515 = vmatprep.subr.mxu0 0.0
      %2516 = vmatpush2.msra.mxu0 0.0
      %2517 = vmatprep.mubr.f32.mxu0 0.0
      %2518 = vmatmul.mubr.f32.gmra.mxu0 %v2451
      %v2519 = vpop.f32.mrf.mxu0
      %v2520 = vadd.f32 0.0, %v2519
      %v2521 = vpop.f32.mrf.mxu0
      %2522 = vdwg.mxu0
      %v2524 = vsel %vm1591, %v2375, 0
      %2526 = vmatprep.subr.mxu0 0.0
      %2527 = vmatpush1.msra.mxu0 0.0
      %2528 = vmatprep.subr.mxu0 0.0
      %2529 = vmatpush1.msra.mxu0 0.0
      %2530 = vmatprep.subr.mxu0 0.0
      %2531 = vmatpush1.msra.mxu0 0.0
      %2532 = vmatprep.subr.mxu0 0.0
      %2533 = vmatpush1.msra.mxu0 0.0
      %2534 = vmatprep.subr.mxu0 0.0
      %2535 = vmatpush1.msra.mxu0 0.0
      %2536 = vmatprep.subr.mxu0 0.0
      %2537 = vmatpush1.msra.mxu0 0.0
      %2538 = vmatprep.subr.mxu0 0.0
      %2539 = vmatpush1.msra.mxu0 0.0
      %2540 = vmatprep.subr.mxu0 0.0
      %2541 = vmatpush1.msra.mxu0 0.0
      %2542 = vmatprep.subr.mxu0 0.0
      %2543 = vmatpush1.msra.mxu0 0.0
      %2544 = vmatprep.subr.mxu0 0.0
      %2545 = vmatpush1.msra.mxu0 0.0
      %2546 = vmatprep.subr.mxu0 0.0
      %2547 = vmatpush1.msra.mxu0 0.0
      %2548 = vmatprep.subr.mxu0 0.0
      %2549 = vmatpush1.msra.mxu0 0.0
      %2550 = vmatprep.subr.mxu0 0.0
      %2551 = vmatpush1.msra.mxu0 0.0
      %2552 = vmatprep.subr.mxu0 0.0
      %2553 = vmatpush1.msra.mxu0 0.0
      %2554 = vmatprep.subr.mxu0 0.0
      %2555 = vmatpush1.msra.mxu0 %v2016
      %2556 = vmatprep.subr.mxu0 0.0
      %2557 = vmatpush1.msra.mxu0 %v2014
      %2558 = vmatprep.subr.mxu0 0.0
      %2559 = vmatpush2.msra.mxu0 0.0
      %2560 = vmatprep.subr.mxu0 0.0
      %2561 = vmatpush2.msra.mxu0 0.0
      %2562 = vmatprep.subr.mxu0 0.0
      %2563 = vmatpush2.msra.mxu0 0.0
      %2564 = vmatprep.subr.mxu0 0.0
      %2565 = vmatpush2.msra.mxu0 0.0
      %2566 = vmatprep.subr.mxu0 0.0
      %2567 = vmatpush2.msra.mxu0 0.0
      %2568 = vmatprep.subr.mxu0 0.0
      %2569 = vmatpush2.msra.mxu0 0.0
      %2570 = vmatprep.subr.mxu0 0.0
      %2571 = vmatpush2.msra.mxu0 0.0
      %2572 = vmatprep.subr.mxu0 0.0
      %2573 = vmatpush2.msra.mxu0 0.0
      %2574 = vmatprep.subr.mxu0 0.0
      %2575 = vmatpush2.msra.mxu0 0.0
      %2576 = vmatprep.subr.mxu0 0.0
      %2577 = vmatpush2.msra.mxu0 0.0
      %2578 = vmatprep.subr.mxu0 0.0
      %2579 = vmatpush2.msra.mxu0 0.0
      %2580 = vmatprep.subr.mxu0 0.0
      %2581 = vmatpush2.msra.mxu0 0.0
      %2582 = vmatprep.subr.mxu0 0.0
      %2583 = vmatpush2.msra.mxu0 0.0
      %2584 = vmatprep.subr.mxu0 0.0
      %2585 = vmatpush2.msra.mxu0 0.0
      %2586 = vmatprep.subr.mxu0 0.0
      %2587 = vmatpush2.msra.mxu0 0.0
      %2588 = vmatprep.subr.mxu0 0.0
      %2589 = vmatpush2.msra.mxu0 0.0
      %2590 = vmatprep.mubr.f32.mxu0 0.0
      %2591 = vmatmul.mubr.f32.gmra.mxu0 %v2524
      %v2592 = vpop.f32.mrf.mxu0
      %v2593 = vadd.f32 0.0, %v2592
      %v2594 = vpop.f32.mrf.mxu0
      %2595 = vdwg.mxu0
      %v2597 = vsel %vm1591, %v2376, 0
      %2599 = vmatprep.subr.mxu0 0.0
      %2600 = vmatpush1.msra.mxu0 0.0
      %2601 = vmatprep.subr.mxu0 0.0
      %2602 = vmatpush1.msra.mxu0 0.0
      %2603 = vmatprep.subr.mxu0 0.0
      %2604 = vmatpush1.msra.mxu0 0.0
      %2605 = vmatprep.subr.mxu0 0.0
      %2606 = vmatpush1.msra.mxu0 0.0
      %2607 = vmatprep.subr.mxu0 0.0
      %2608 = vmatpush1.msra.mxu0 0.0
      %2609 = vmatprep.subr.mxu0 0.0
      %2610 = vmatpush1.msra.mxu0 0.0
      %2611 = vmatprep.subr.mxu0 0.0
      %2612 = vmatpush1.msra.mxu0 0.0
      %2613 = vmatprep.subr.mxu0 0.0
      %2614 = vmatpush1.msra.mxu0 0.0
      %2615 = vmatprep.subr.mxu0 0.0
      %2616 = vmatpush1.msra.mxu0 0.0
      %2617 = vmatprep.subr.mxu0 0.0
      %2618 = vmatpush1.msra.mxu0 0.0
      %2619 = vmatprep.subr.mxu0 0.0
      %2620 = vmatpush1.msra.mxu0 0.0
      %2621 = vmatprep.subr.mxu0 0.0
      %2622 = vmatpush1.msra.mxu0 0.0
      %2623 = vmatprep.subr.mxu0 0.0
      %2624 = vmatpush1.msra.mxu0 0.0
      %2625 = vmatprep.subr.mxu0 0.0
      %2626 = vmatpush1.msra.mxu0 0.0
      %2627 = vmatprep.subr.mxu0 0.0
      %2628 = vmatpush1.msra.mxu0 %v2022
      %2629 = vmatprep.subr.mxu0 0.0
      %2630 = vmatpush1.msra.mxu0 %v2020
      %2631 = vmatprep.subr.mxu0 0.0
      %2632 = vmatpush2.msra.mxu0 0.0
      %2633 = vmatprep.subr.mxu0 0.0
      %2634 = vmatpush2.msra.mxu0 0.0
      %2635 = vmatprep.subr.mxu0 0.0
      %2636 = vmatpush2.msra.mxu0 0.0
      %2637 = vmatprep.subr.mxu0 0.0
      %2638 = vmatpush2.msra.mxu0 0.0
      %2639 = vmatprep.subr.mxu0 0.0
      %2640 = vmatpush2.msra.mxu0 0.0
      %2641 = vmatprep.subr.mxu0 0.0
      %2642 = vmatpush2.msra.mxu0 0.0
      %2643 = vmatprep.subr.mxu0 0.0
      %2644 = vmatpush2.msra.mxu0 0.0
      %2645 = vmatprep.subr.mxu0 0.0
      %2646 = vmatpush2.msra.mxu0 0.0
      %2647 = vmatprep.subr.mxu0 0.0
      %2648 = vmatpush2.msra.mxu0 0.0
      %2649 = vmatprep.subr.mxu0 0.0
      %2650 = vmatpush2.msra.mxu0 0.0
      %2651 = vmatprep.subr.mxu0 0.0
      %2652 = vmatpush2.msra.mxu0 0.0
      %2653 = vmatprep.subr.mxu0 0.0
      %2654 = vmatpush2.msra.mxu0 0.0
      %2655 = vmatprep.subr.mxu0 0.0
      %2656 = vmatpush2.msra.mxu0 0.0
      %2657 = vmatprep.subr.mxu0 0.0
      %2658 = vmatpush2.msra.mxu0 0.0
      %2659 = vmatprep.subr.mxu0 0.0
      %2660 = vmatpush2.msra.mxu0 0.0
      %2661 = vmatprep.subr.mxu0 0.0
      %2662 = vmatpush2.msra.mxu0 0.0
      %2663 = vmatprep.mubr.f32.mxu0 0.0
      %2664 = vmatmul.mubr.f32.gmra.mxu0 %v2597
      %v2665 = vpop.f32.mrf.mxu0
      %v2666 = vadd.f32 0.0, %v2665
      %v2667 = vpop.f32.mrf.mxu0
      %2668 = vdwg.mxu0
      %2670 = vrot.lane.b32.xlu0 %v2520, 8
      %v2671 = vpop.permute.xlu0 %2670
      %2674 = vrot.lane.b32.xlu0 %v2593, 16
      %v2675 = vpop.permute.xlu0 %2674
      %2678 = vrot.lane.b32.xlu0 %v2666, 24
      %v2679 = vpop.permute.xlu0 %2678
      %v2681 = vsel %vm935, %v2447, %v2671
      %v2682 = vsel %vm1591, %v2681, %v2675
      %v2683 = vsel %vm1593, %v2682, %v2679
      %2684 = vrot.lane.b32.xlu0 %v710, 32
      %v2685 = vpop.permute.xlu0 %2684
      %2686 = vrot.lane.b32.xlu0 %v711, 32
      %v2687 = vpop.permute.xlu0 %2686
      %2688 = vrot.lane.b32.xlu0 %v712, 32
      %v2689 = vpop.permute.xlu0 %2688
      %2690 = vrot.lane.b32.xlu0 %v713, 32
      %v2691 = vpop.permute.xlu0 %2690
      %2696 = vrot.lane.b32.xlu0 %v1713, 32
      %v2697 = vpop.permute.xlu0 %2696
      %v2700 = vsel %vm750, %v2683, 0
      %2702 = vmatprep.subr.mxu0 0.0
      %2703 = vmatpush1.msra.mxu0 0.0
      %2704 = vmatprep.subr.mxu0 0.0
      %2705 = vmatpush1.msra.mxu0 0.0
      %2706 = vmatprep.subr.mxu0 0.0
      %2707 = vmatpush1.msra.mxu0 0.0
      %2708 = vmatprep.subr.mxu0 0.0
      %2709 = vmatpush1.msra.mxu0 0.0
      %2710 = vmatprep.subr.mxu0 0.0
      %2711 = vmatpush1.msra.mxu0 0.0
      %2712 = vmatprep.subr.mxu0 0.0
      %2713 = vmatpush1.msra.mxu0 0.0
      %2714 = vmatprep.subr.mxu0 0.0
      %2715 = vmatpush1.msra.mxu0 0.0
      %2716 = vmatprep.subr.mxu0 0.0
      %2717 = vmatpush1.msra.mxu0 0.0
      %2718 = vmatprep.subr.mxu0 0.0
      %2719 = vmatpush1.msra.mxu0 0.0
      %2720 = vmatprep.subr.mxu0 0.0
      %2721 = vmatpush1.msra.mxu0 0.0
      %2722 = vmatprep.subr.mxu0 0.0
      %2723 = vmatpush1.msra.mxu0 0.0
      %2724 = vmatprep.subr.mxu0 0.0
      %2725 = vmatpush1.msra.mxu0 0.0
      %2726 = vmatprep.subr.mxu0 0.0
      %2727 = vmatpush1.msra.mxu0 %v2691
      %2728 = vmatprep.subr.mxu0 0.0
      %2729 = vmatpush1.msra.mxu0 %v2689
      %2730 = vmatprep.subr.mxu0 0.0
      %2731 = vmatpush1.msra.mxu0 %v2687
      %2732 = vmatprep.subr.mxu0 0.0
      %2733 = vmatpush1.msra.mxu0 %v2685
      %2734 = vmatprep.subr.mxu0 0.0
      %2735 = vmatpush2.msra.mxu0 0.0
      %2736 = vmatprep.subr.mxu0 0.0
      %2737 = vmatpush2.msra.mxu0 0.0
      %2738 = vmatprep.subr.mxu0 0.0
      %2739 = vmatpush2.msra.mxu0 0.0
      %2740 = vmatprep.subr.mxu0 0.0
      %2741 = vmatpush2.msra.mxu0 0.0
      %2742 = vmatprep.subr.mxu0 0.0
      %2743 = vmatpush2.msra.mxu0 0.0
      %2744 = vmatprep.subr.mxu0 0.0
      %2745 = vmatpush2.msra.mxu0 0.0
      %2746 = vmatprep.subr.mxu0 0.0
      %2747 = vmatpush2.msra.mxu0 0.0
      %2748 = vmatprep.subr.mxu0 0.0
      %2749 = vmatpush2.msra.mxu0 0.0
      %2750 = vmatprep.subr.mxu0 0.0
      %2751 = vmatpush2.msra.mxu0 0.0
      %2752 = vmatprep.subr.mxu0 0.0
      %2753 = vmatpush2.msra.mxu0 0.0
      %2754 = vmatprep.subr.mxu0 0.0
      %2755 = vmatpush2.msra.mxu0 0.0
      %2756 = vmatprep.subr.mxu0 0.0
      %2757 = vmatpush2.msra.mxu0 0.0
      %2758 = vmatprep.subr.mxu0 0.0
      %2759 = vmatpush2.msra.mxu0 0.0
      %2760 = vmatprep.subr.mxu0 0.0
      %2761 = vmatpush2.msra.mxu0 0.0
      %2762 = vmatprep.subr.mxu0 0.0
      %2763 = vmatpush2.msra.mxu0 0.0
      %2764 = vmatprep.subr.mxu0 0.0
      %2765 = vmatpush2.msra.mxu0 0.0
      %2766 = vmatprep.mubr.f32.mxu0 0.0
      %2767 = vmatmul.mubr.f32.gmra.mxu0 %v2700
      %v2768 = vpop.f32.mrf.mxu0
      %v2769 = vadd.f32 %v2697, %v2768
      %v2770 = vpop.f32.mrf.mxu0
      %2771 = vdwg.mxu0
      %v2772 = vadd.f32 %v1707, %v2769
      %v2773 = vsel %vm750, %v2772, 0.0
      %2774 = vadd.xlane.f32.xlu0 %v2773
      %v2775 = vpop.xlane.xlu0 %2774
      %v2776 = vmul.f32 %v2775, %v1687
      %v2777 = vsub.f32 %v2772, %v2776
      %v2778 = vmul.f32 %v2777, %v2777
      %v2779 = vsel %vm750, %v2778, 0.0
      %2780 = vadd.xlane.f32.xlu0 %v2779
      %v2781 = vpop.xlane.xlu0 %2780
      %v2782 = vmul.f32 %v2781, %v1687
      %v2783 = vadd.f32 %v2782, 1e-05
      %v2784 = vrsqrt.pop %v2783
      %v2785 = vmul.f32 %v2777, %v2784
      %v2786 = vlaneseq
      %v2787 = vshrl.u32 %v2786, 7
      %v2788 = vsub.s32 2, %v2787
      %v2789 = vrot.slane %v742, %v2788
      %v2790 = vmul.f32 %v2785, %v2789
      %v2791 = vlaneseq
      %v2792 = vshrl.u32 %v2791, 7
      %v2793 = vsub.s32 3, %v2792
      %v2794 = vrot.slane %v742, %v2793
      %v2795 = vadd.f32 %v2790, %v2794
      %v2797 = vlaneseq
      %v2798 = vshrl.u32 %v2797, 7
      %v2799 = vsub.s32 0, %v2798
      %v2800 = vrot.slane %v740, %v2799
      %v2803 = vsel %vm750, %v2795, 0
      %2805 = vmatprep.subr.mxu0 0.0
      %2806 = vmatpush1.msra.mxu0 0.0
      %2807 = vmatprep.subr.mxu0 0.0
      %2808 = vmatpush1.msra.mxu0 0.0
      %2809 = vmatprep.subr.mxu0 0.0
      %2810 = vmatpush1.msra.mxu0 0.0
      %2811 = vmatprep.subr.mxu0 0.0
      %2812 = vmatpush1.msra.mxu0 0.0
      %2813 = vmatprep.subr.mxu0 0.0
      %2814 = vmatpush1.msra.mxu0 0.0
      %2815 = vmatprep.subr.mxu0 0.0
      %2816 = vmatpush1.msra.mxu0 0.0
      %2817 = vmatprep.subr.mxu0 0.0
      %2818 = vmatpush1.msra.mxu0 0.0
      %2819 = vmatprep.subr.mxu0 0.0
      %2820 = vmatpush1.msra.mxu0 0.0
      %2821 = vmatprep.subr.mxu0 0.0
      %2822 = vmatpush1.msra.mxu0 0.0
      %2823 = vmatprep.subr.mxu0 0.0
      %2824 = vmatpush1.msra.mxu0 0.0
      %2825 = vmatprep.subr.mxu0 0.0
      %2826 = vmatpush1.msra.mxu0 0.0
      %2827 = vmatprep.subr.mxu0 0.0
      %2828 = vmatpush1.msra.mxu0 0.0
      %2829 = vmatprep.subr.mxu0 0.0
      %2830 = vmatpush1.msra.mxu0 %v723
      %2831 = vmatprep.subr.mxu0 0.0
      %2832 = vmatpush1.msra.mxu0 %v722
      %2833 = vmatprep.subr.mxu0 0.0
      %2834 = vmatpush1.msra.mxu0 %v721
      %2835 = vmatprep.subr.mxu0 0.0
      %2836 = vmatpush1.msra.mxu0 %v720
      %2837 = vmatprep.subr.mxu0 0.0
      %2838 = vmatpush2.msra.mxu0 0.0
      %2839 = vmatprep.subr.mxu0 0.0
      %2840 = vmatpush2.msra.mxu0 0.0
      %2841 = vmatprep.subr.mxu0 0.0
      %2842 = vmatpush2.msra.mxu0 0.0
      %2843 = vmatprep.subr.mxu0 0.0
      %2844 = vmatpush2.msra.mxu0 0.0
      %2845 = vmatprep.subr.mxu0 0.0
      %2846 = vmatpush2.msra.mxu0 0.0
      %2847 = vmatprep.subr.mxu0 0.0
      %2848 = vmatpush2.msra.mxu0 0.0
      %2849 = vmatprep.subr.mxu0 0.0
      %2850 = vmatpush2.msra.mxu0 0.0
      %2851 = vmatprep.subr.mxu0 0.0
      %2852 = vmatpush2.msra.mxu0 0.0
      %2853 = vmatprep.subr.mxu0 0.0
      %2854 = vmatpush2.msra.mxu0 0.0
      %2855 = vmatprep.subr.mxu0 0.0
      %2856 = vmatpush2.msra.mxu0 0.0
      %2857 = vmatprep.subr.mxu0 0.0
      %2858 = vmatpush2.msra.mxu0 0.0
      %2859 = vmatprep.subr.mxu0 0.0
      %2860 = vmatpush2.msra.mxu0 0.0
      %2861 = vmatprep.subr.mxu0 0.0
      %2862 = vmatpush2.msra.mxu0 0.0
      %2863 = vmatprep.subr.mxu0 0.0
      %2864 = vmatpush2.msra.mxu0 0.0
      %2865 = vmatprep.subr.mxu0 0.0
      %2866 = vmatpush2.msra.mxu0 0.0
      %2867 = vmatprep.subr.mxu0 0.0
      %2868 = vmatpush2.msra.mxu0 0.0
      %2869 = vmatprep.mubr.f32.mxu0 0.0
      %2870 = vmatmul.mubr.f32.gmra.mxu0 %v2803
      %v2871 = vpop.f32.mrf.mxu0
      %v2872 = vadd.f32 %v2800, %v2871
      %v2873 = vpop.f32.mrf.mxu0
      %2874 = vdwg.mxu0
      %v2875 = vmax.f32 %v2872, 0.0
      %v2877 = vlaneseq
      %v2878 = vshrl.u32 %v2877, 7
      %v2879 = vsub.s32 0, %v2878
      %v2880 = vrot.slane %v741, %v2879
      %vm2882 = vcmask 523264
      %v2884 = vsel %vm2882, %v2875, 0
      %2886 = vmatprep.subr.mxu0 0.0
      %2887 = vmatpush1.msra.mxu0 0.0
      %2888 = vmatprep.subr.mxu0 0.0
      %2889 = vmatpush1.msra.mxu0 0.0
      %2890 = vmatprep.subr.mxu0 0.0
      %2891 = vmatpush1.msra.mxu0 0.0
      %2892 = vmatprep.subr.mxu0 0.0
      %2893 = vmatpush1.msra.mxu0 0.0
      %2894 = vmatprep.subr.mxu0 0.0
      %2895 = vmatpush1.msra.mxu0 0.0
      %2896 = vmatprep.subr.mxu0 0.0
      %2897 = vmatpush1.msra.mxu0 0.0
      %2898 = vmatprep.subr.mxu0 0.0
      %2899 = vmatpush1.msra.mxu0 0.0
      %2900 = vmatprep.subr.mxu0 0.0
      %2901 = vmatpush1.msra.mxu0 0.0
      %2902 = vmatprep.subr.mxu0 0.0
      %2903 = vmatpush1.msra.mxu0 %v739
      %2904 = vmatprep.subr.mxu0 0.0
      %2905 = vmatpush1.msra.mxu0 %v738
      %2906 = vmatprep.subr.mxu0 0.0
      %2907 = vmatpush1.msra.mxu0 %v737
      %2908 = vmatprep.subr.mxu0 0.0
      %2909 = vmatpush1.msra.mxu0 %v736
      %2910 = vmatprep.subr.mxu0 0.0
      %2911 = vmatpush1.msra.mxu0 %v735
      %2912 = vmatprep.subr.mxu0 0.0
      %2913 = vmatpush1.msra.mxu0 %v734
      %2914 = vmatprep.subr.mxu0 0.0
      %2915 = vmatpush1.msra.mxu0 %v733
      %2916 = vmatprep.subr.mxu0 0.0
      %2917 = vmatpush1.msra.mxu0 %v732
      %2918 = vmatprep.subr.mxu0 0.0
      %2919 = vmatpush2.msra.mxu0 0.0
      %2920 = vmatprep.subr.mxu0 0.0
      %2921 = vmatpush2.msra.mxu0 0.0
      %2922 = vmatprep.subr.mxu0 0.0
      %2923 = vmatpush2.msra.mxu0 0.0
      %2924 = vmatprep.subr.mxu0 0.0
      %2925 = vmatpush2.msra.mxu0 0.0
      %2926 = vmatprep.subr.mxu0 0.0
      %2927 = vmatpush2.msra.mxu0 0.0
      %2928 = vmatprep.subr.mxu0 0.0
      %2929 = vmatpush2.msra.mxu0 0.0
      %2930 = vmatprep.subr.mxu0 0.0
      %2931 = vmatpush2.msra.mxu0 0.0
      %2932 = vmatprep.subr.mxu0 0.0
      %2933 = vmatpush2.msra.mxu0 0.0
      %2934 = vmatprep.subr.mxu0 0.0
      %2935 = vmatpush2.msra.mxu0 0.0
      %2936 = vmatprep.subr.mxu0 0.0
      %2937 = vmatpush2.msra.mxu0 0.0
      %2938 = vmatprep.subr.mxu0 0.0
      %2939 = vmatpush2.msra.mxu0 0.0
      %2940 = vmatprep.subr.mxu0 0.0
      %2941 = vmatpush2.msra.mxu0 0.0
      %2942 = vmatprep.subr.mxu0 0.0
      %2943 = vmatpush2.msra.mxu0 0.0
      %2944 = vmatprep.subr.mxu0 0.0
      %2945 = vmatpush2.msra.mxu0 0.0
      %2946 = vmatprep.subr.mxu0 0.0
      %2947 = vmatpush2.msra.mxu0 0.0
      %2948 = vmatprep.subr.mxu0 0.0
      %2949 = vmatpush2.msra.mxu0 0.0
      %2950 = vmatprep.mubr.f32.mxu0 0.0
      %2951 = vmatmul.mubr.f32.gmra.mxu0 %v2884
      %v2952 = vpop.f32.mrf.mxu0
      %v2953 = vadd.f32 %v2880, %v2952
      %v2954 = vpop.f32.mrf.mxu0
      %2955 = vdwg.mxu0
      %v2956 = vadd.f32 %v2795, %v2953
      %v2957 = vsel %vm750, %v2956, 0.0
      %2958 = vadd.xlane.f32.xlu0 %v2957
      %v2959 = vpop.xlane.xlu0 %2958
      %v2960 = vmul.f32 %v2959, %v1687
      %v2961 = vsub.f32 %v2956, %v2960
      %v2962 = vmul.f32 %v2961, %v2961
      %v2963 = vsel %vm750, %v2962, 0.0
      %2964 = vadd.xlane.f32.xlu0 %v2963
      %v2965 = vpop.xlane.xlu0 %2964
      %v2966 = vmul.f32 %v2965, %v1687
      %v2967 = vadd.f32 %v2966, 1e-05
      %v2968 = vrsqrt.pop %v2967
      %v2969 = vmul.f32 %v2961, %v2968
      %v2970 = vlaneseq
      %v2971 = vshrl.u32 %v2970, 7
      %v2972 = vsub.s32 4, %v2971
      %v2973 = vrot.slane %v742, %v2972
      %v2974 = vmul.f32 %v2969, %v2973
      %v2975 = vlaneseq
      %v2976 = vshrl.u32 %v2975, 7
      %v2977 = vsub.s32 5, %v2976
      %v2978 = vrot.slane %v742, %v2977
      %v2979 = vadd.f32 %v2974, %v2978
      %2980 = vst.msk [vmem:[%s684] sm:$0xff] %vm750, %v2979
      %p2981 = scmp.eq.s32.totalorder %s30, 1
      // Predicated region
      $region81: #{transformer_decoder_fwd.1} parent=75 // pred_check
        %p2982 = pneg %p2981
      $region82: #{transformer_decoder_fwd.1} parent=75 // pred_check_branch
        %2984 = sbr.rel (%p2982) target = $region84
      $region83: #{transformer_decoder_fwd.1} parent=75 // pred_region
        %v2985 = vld [vmem:[%s13] sm:$0x3]
        %v2986 = vsel %vm750, %v2979, 0.0
        %2987 = vadd.xlane.f32.xlu0 %v2986
        %v2988 = vpop.xlane.xlu0 %2987
        %v2989 = vmul.f32 %v2988, %v1687
        %v2990 = vsub.f32 %v2979, %v2989
        %v2991 = vmul.f32 %v2990, %v2990
        %v2992 = vsel %vm750, %v2991, 0.0
        %2993 = vadd.xlane.f32.xlu0 %v2992
        %v2994 = vpop.xlane.xlu0 %2993
        %v2995 = vmul.f32 %v2994, %v1687
        %v2996 = vadd.f32 %v2995, 1e-05
        %v2997 = vrsqrt.pop %v2996
        %v2998 = vmul.f32 %v2990, %v2997
        %v2999 = vlaneseq
        %v3000 = vshrl.u32 %v2999, 7
        %v3001 = vsub.s32 0, %v3000
        %v3002 = vrot.slane %v2985, %v3001
        %v3003 = vmul.f32 %v2998, %v3002
        %v3004 = vlaneseq
        %v3005 = vshrl.u32 %v3004, 7
        %v3006 = vsub.s32 1, %v3005
        %v3007 = vrot.slane %v2985, %v3006
        %v3008 = vadd.f32 %v3003, %v3007
        %3009 = vst.msk [vmem:[%s684] sm:$0xff] %vm750, %v3008
      $region84: #{transformer_decoder_fwd.1} parent=75 // pred_fallthru
        _
      %p3010 = scmp.lt.s32.totalorder %s29, 1
      %s3011 = scalar_select %p3010, %s29, 1
      %s3012 = smul.addr %s3011, 8
      %s3013 = scalar_lea.vmem %s14, %s3012
      // Predicated region
      $region85: #{transformer_decoder_fwd.1} parent=75 // pred_check
        %p3014 = pneg %p414
      $region86: #{transformer_decoder_fwd.1} parent=75 // pred_check_branch
        %3016 = sbr.rel (%p3014) target = $region88
      $region87: #{transformer_decoder_fwd.1} parent=75 // pred_region
        _
      $region88: #{transformer_decoder_fwd.1} parent=75 // pred_fallthru
        _
    $region76: #{transformer_decoder_fwd.1} parent=5 // pred_fallthru
      _
    %p3017 = scmp.le.s32.totalorder 2, %s20
    // Predicated region
    $region89: #{transformer_decoder_fwd.1} parent=5 // pred_check
      %p3018 = pneg %p3017
    $region90: #{transformer_decoder_fwd.1} parent=5 // pred_check_branch
      %3020 = sbr.rel (%p3018) target = $region92
    $region91: #{transformer_decoder_fwd.1} parent=5 // pred_region
      %s3021 = ssub.s32 %s20, 2
      // Predicated region
      $region93: #{transformer_decoder_fwd.1} parent=91 // pred_check
        %p3022 = pneg %p420
      $region94: #{transformer_decoder_fwd.1} parent=91 // pred_check_branch
        %3024 = sbr.rel (%p3022) target = $region96
      $region95: #{transformer_decoder_fwd.1} parent=91 // pred_region
        %p3025 = scmp.lt.s32.totalorder %s31, 1
        %s3026 = scalar_select %p3025, %s31, 1
        %s3027 = smul.addr %s3026, 8
        %s3028 = scalar_lea.vmem %s14, %s3027
      $region96: #{transformer_decoder_fwd.1} parent=91 // pred_fallthru
        _
    $region92: #{transformer_decoder_fwd.1} parent=5 // pred_fallthru
      _
  $region6: #{transformer_decoder_fwd.1} parent=0 // loop_footer
    %s24 = sadd.s32 1, %s20
  $region7: #{transformer_decoder_fwd.1} parent=0 // loop_footer_branch
    %19 = sbr.rel target = $region3
  $region8: #{transformer_decoder_fwd.1} parent=0 // loop_exit
    _

</llo_original>
